<compile_context>
chip_gen: v6e
topology: v6e:2x2x1
jax: 0.10.0
libtpu: 0.0.40
codegen_flags: <defaults>
</compile_context>

<pallas_src>
import functools

import jax
import jax.numpy as jnp
from jax.experimental import pallas as pl
from jax.experimental.pallas import tpu as pltpu


# ----------------------------- kernel ----------------------------------------

def _inception_res_block_kernel(x_ref, wb_ref, bb_ref, wpb_ref, wpx_ref,
                                bp_ref, o_ref, *, K, L, Lh, pad_l, pad_r):
    # x_ref:   (1, L, Ci)    bf16  input tile, channels lane-padded to 128*
    # wb_ref:  (K*Ci, Cb)    bf16  stacked branch conv weights (BN scale folded)
    # bb_ref:  (1, Cb)       f32   folded branch BN shift
    # wpb_ref: (Cb, Co)      bf16  1x1 projection weights, branch part
    # wpx_ref: (Ci, Co)      bf16  1x1 projection weights, residual part
    # bp_ref:  (1, Co)       f32   folded projection BN shift
    # o_ref:   (1, Lh, Co)   bf16  pooled output
    x = x_ref[0]                                            # (L, Ci) bf16
    ci = x.shape[1]
    xp = jnp.concatenate(
        [jnp.zeros((pad_l, ci), x.dtype), x, jnp.zeros((pad_r, ci), x.dtype)],
        axis=0)                                             # (L + K - 1, Ci)

    # im2col: (L, K*Ci) so all 5 branch convolutions are a single MXU matmul
    # with a long contraction dimension.
    xcol = jnp.concatenate([xp[t:t + L, :] for t in range(K)], axis=1)
    acc = jnp.dot(xcol, wb_ref[...], preferred_element_type=jnp.float32)
    br = acc + bb_ref[...]                                  # folded BN shift
    br = br * jax.nn.sigmoid(br)                            # SiLU (f32)

    # concat([c1..c5, x], channel) @ Wproj  ==  br @ Wpb + x @ Wpx
    z = (jnp.dot(br.astype(jnp.bfloat16), wpb_ref[...],
                 preferred_element_type=jnp.float32)
         + jnp.dot(x, wpx_ref[...], preferred_element_type=jnp.float32)
         + bp_ref[...])
    z = z * jax.nn.sigmoid(z)                               # SiLU (f32)

    # MaxPool1d(kernel=2, stride=2) fused before the single HBM writeback
    # (reshape-and-max; no strided ref indexing).
    pooled = jnp.max(z[:2 * Lh, :].reshape(Lh, 2, z.shape[1]), axis=1)
    o_ref[0] = pooled.astype(o_ref.dtype)


# ----------------------------- wrapper ----------------------------------------

def inception_res_block(x_blc, p):
    """x_blc: (B, L, ci_p) bf16, lane-padded.  Returns (B, L//2, co_p) bf16."""
    B, L, ci_p = x_blc.shape
    K, cb_p, co_p = p["K"], p["cb_p"], p["co_p"]
    Lh = L // 2
    pad_l = (K - 1) // 2
    pad_r = K - 1 - pad_l
    kernel = functools.partial(_inception_res_block_kernel,
                               K=K, L=L, Lh=Lh, pad_l=pad_l, pad_r=pad_r)
    return pl.pallas_call(
        kernel,
        out_shape=jax.ShapeDtypeStruct((B, Lh, co_p), jnp.bfloat16),
        grid=(B,),
        in_specs=[
            pl.BlockSpec((1, L, ci_p), lambda b: (b, 0, 0)),
            pl.BlockSpec((K * ci_p, cb_p), lambda b: (0, 0)),
            pl.BlockSpec((1, cb_p), lambda b: (0, 0)),
            pl.BlockSpec((cb_p, co_p), lambda b: (0, 0)),
            pl.BlockSpec((ci_p, co_p), lambda b: (0, 0)),
            pl.BlockSpec((1, co_p), lambda b: (0, 0)),
        ],
        out_specs=pl.BlockSpec((1, Lh, co_p), lambda b: (b, 0, 0)),
        compiler_params=pltpu.CompilerParams(
            dimension_semantics=("parallel",)),
    )(x_blc, p["wb"], p["bb"], p["wpb"], p["wpx"], p["bp"])


# ----------------------------- parameters -------------------------------------

def _round_up(n, m):
    return ((n + m - 1) // m) * m


def _fold_bn(cout):
    eps = 1e-5
    gamma = jnp.ones((cout,), jnp.float32)
    beta = jnp.zeros((cout,), jnp.float32)
    running_mean = jnp.zeros((cout,), jnp.float32)
    running_var = jnp.ones((cout,), jnp.float32)
    scale = gamma / jnp.sqrt(running_var + eps)
    shift = beta - running_mean * scale
    return scale, shift


def build_block_params(key, cin, feat, k):
    """One InceptionResBlock.  Weights are generated directly in (K, Cin, Cout)
    layout; real nn.Conv1d weights (Cout, Cin, K) would need .permute(2, 1, 0).
    Note: InceptionResBlock.conv1 exists in __init__ but is unused in forward.
    """
    kmax = k + 16                       # largest branch kernel; same parity as k
    ci_p = _round_up(cin, 128)
    cb, cb_p = 5 * feat, _round_up(5 * feat, 128)
    co_p = _round_up(feat, 128)
    pad_l_max = (kmax - 1) // 2

    # 5 branch convs, stacked along Cout, taps zero-padded to kmax and centered.
    wb = jnp.zeros((kmax, ci_p, cb_p), jnp.float32)
    bb = jnp.zeros((cb_p,), jnp.float32)
    for i, kb in enumerate((k, k + 2, k + 4, k + 8, k + 16)):
        kw = jax.random.fold_in(key, i)
        w = jax.random.normal(kw, (kb, cin, feat), jnp.float32) / jnp.sqrt(cin * kb)
        scale, shift = _fold_bn(feat)
        off = pad_l_max - (kb - 1) // 2           # center taps ('same', odd K)
        wb = wb.at[off:off + kb, :cin, i * feat:(i + 1) * feat].set(w * scale)
        bb = bb.at[i * feat:(i + 1) * feat].set(shift)

    # 1x1 projection (c6) over concat([c1..c5, x]); split into branch/residual.
    wp = jax.random.normal(jax.random.fold_in(key, 5),
                           (cb + cin, feat), jnp.float32) / jnp.sqrt(cb + cin)
    scale_p, shift_p = _fold_bn(feat)
    wpb = jnp.zeros((cb_p, co_p), jnp.float32).at[:cb, :feat].set(wp[:cb] * scale_p)
    wpx = jnp.zeros((ci_p, co_p), jnp.float32).at[:cin, :feat].set(wp[cb:] * scale_p)
    bp = jnp.zeros((co_p,), jnp.float32).at[:feat].set(shift_p)

    return {
        "wb": wb.reshape(kmax * ci_p, cb_p).astype(jnp.bfloat16),   # im2col layout
        "bb": bb.reshape(1, cb_p),
        "wpb": wpb.astype(jnp.bfloat16),
        "wpx": wpx.astype(jnp.bfloat16),
        "bp": bp.reshape(1, co_p),
        "K": kmax, "feat": feat, "cin": cin,
        "ci_p": ci_p, "cb_p": cb_p, "co_p": co_p,
    }


def build_encoder_params(key, in_channels, features, kernel_sizes):
    params = []
    for n, (feat, k) in enumerate(zip(features, kernel_sizes)):
        params.append(build_block_params(jax.random.fold_in(key, n),
                                         in_channels, feat, k))
        in_channels = feat
    return params


# ----------------------------- forward pass ------------------------------------

def conv1d_inception_encoder(x_ncl, params):
    """x_ncl: (N, C, L) float32 (PyTorch Conv1d layout).
    Returns (N, features[-1], L // 2**num_blocks) float32."""
    x = jnp.transpose(x_ncl, (0, 2, 1))                       # -> (B, L, C)
    ci_p = params[0]["ci_p"]
    x = jnp.pad(x, ((0, 0), (0, 0), (0, ci_p - x.shape[-1]))) # lane-pad channels
    x = x.astype(jnp.bfloat16)
    for p in params:
        # Dropout1d -> identity (inference semantics).
        x = inception_res_block(x, p)
    x = x[:, :, :params[-1]["feat"]].astype(jnp.float32)      # strip lane padding
    return jnp.transpose(x, (0, 2, 1))                        # -> (N, C_out, L_out)


# ----------------------------- main ---------------------------------------------

if __name__ == "__main__":
    key = jax.random.PRNGKey(0)

    # Small, module-consistent configuration.
    B, C_in, L = 2, 4, 64
    features = [8, 16, 32, 64]
    kernel_sizes = [3, 3, 5, 5]

    x = jax.random.normal(jax.random.fold_in(key, 12345),
                          (B, C_in, L), jnp.float32)          # NCL, like PyTorch
    params = build_encoder_params(key, C_in, features, kernel_sizes)

    y = conv1d_inception_encoder(x, params)
    jax.block_until_ready(y)
    assert y.shape == (B, features[-1], L // (2 ** len(features))), y.shape
    print("KERNEL_OK")
</pallas_src>

<mosaic_0001>
module attributes {stable_mosaic.version = 11 : i64} {
  func.func @_inception_res_block_kernel(%arg0: i32, %arg1: memref<1x64x128xbf16, #tpu.memory_space<vmem>>, %arg2: memref<2432x128xbf16, #tpu.memory_space<vmem>>, %arg3: memref<1x128xf32, #tpu.memory_space<vmem>>, %arg4: memref<128x128xbf16, #tpu.memory_space<vmem>>, %arg5: memref<128x128xbf16, #tpu.memory_space<vmem>>, %arg6: memref<1x128xf32, #tpu.memory_space<vmem>>, %arg7: memref<1x32x128xbf16, #tpu.memory_space<vmem>>) attributes {dimension_semantics = [#tpu.dimension_semantics<parallel>], iteration_bounds = array<i64: 2>, scalar_prefetch = 0 : i64, scratch_operands = 0 : i64, tpu.core_type = #tpu.core_type<tc>, window_params = [{transform_indices = @transform_0, window_bounds = array<i64: 1, 64, 128>}, {pipeline_mode = #tpu.pipeline_mode<synchronous>, transform_indices = @transform_1, window_bounds = array<i64: 2432, 128>}, {pipeline_mode = #tpu.pipeline_mode<synchronous>, transform_indices = @transform_2, window_bounds = array<i64: 1, 128>}, {pipeline_mode = #tpu.pipeline_mode<synchronous>, transform_indices = @transform_3, window_bounds = array<i64: 128, 128>}, {pipeline_mode = #tpu.pipeline_mode<synchronous>, transform_indices = @transform_4, window_bounds = array<i64: 128, 128>}, {pipeline_mode = #tpu.pipeline_mode<synchronous>, transform_indices = @transform_5, window_bounds = array<i64: 1, 128>}, {transform_indices = @transform_6, window_bounds = array<i64: 1, 32, 128>}]} {
    %c0 = arith.constant 0 : index
    %c0_0 = arith.constant 0 : index
    %c0_1 = arith.constant 0 : index
    %0 = vector.load %arg1[%c0, %c0_0, %c0_1] : memref<1x64x128xbf16, #tpu.memory_space<vmem>>, vector<1x64x128xbf16>
    %1 = vector.shape_cast %0 : vector<1x64x128xbf16> to vector<64x128xbf16>
    %cst = arith.constant 0.000000e+00 : bf16
    %2 = vector.broadcast %cst : bf16 to vector<9x128xbf16>
    %cst_2 = arith.constant 0.000000e+00 : bf16
    %3 = vector.broadcast %cst_2 : bf16 to vector<9x128xbf16>
    %4 = tpu.concatenate %2, %1, %3 in 0 : vector<9x128xbf16>, vector<64x128xbf16>, vector<9x128xbf16> -> vector<82x128xbf16>
    %5 = vector.extract_strided_slice %4 {offsets = [0, 0], sizes = [64, 128], strides = [1, 1]} : vector<82x128xbf16> to vector<64x128xbf16>
    %6 = vector.extract_strided_slice %4 {offsets = [1, 0], sizes = [64, 128], strides = [1, 1]} : vector<82x128xbf16> to vector<64x128xbf16>
    %7 = vector.extract_strided_slice %4 {offsets = [2, 0], sizes = [64, 128], strides = [1, 1]} : vector<82x128xbf16> to vector<64x128xbf16>
    %8 = vector.extract_strided_slice %4 {offsets = [3, 0], sizes = [64, 128], strides = [1, 1]} : vector<82x128xbf16> to vector<64x128xbf16>
    %9 = vector.extract_strided_slice %4 {offsets = [4, 0], sizes = [64, 128], strides = [1, 1]} : vector<82x128xbf16> to vector<64x128xbf16>
    %10 = vector.extract_strided_slice %4 {offsets = [5, 0], sizes = [64, 128], strides = [1, 1]} : vector<82x128xbf16> to vector<64x128xbf16>
    %11 = vector.extract_strided_slice %4 {offsets = [6, 0], sizes = [64, 128], strides = [1, 1]} : vector<82x128xbf16> to vector<64x128xbf16>
    %12 = vector.extract_strided_slice %4 {offsets = [7, 0], sizes = [64, 128], strides = [1, 1]} : vector<82x128xbf16> to vector<64x128xbf16>
    %13 = vector.extract_strided_slice %4 {offsets = [8, 0], sizes = [64, 128], strides = [1, 1]} : vector<82x128xbf16> to vector<64x128xbf16>
    %14 = vector.extract_strided_slice %4 {offsets = [9, 0], sizes = [64, 128], strides = [1, 1]} : vector<82x128xbf16> to vector<64x128xbf16>
    %15 = vector.extract_strided_slice %4 {offsets = [10, 0], sizes = [64, 128], strides = [1, 1]} : vector<82x128xbf16> to vector<64x128xbf16>
    %16 = vector.extract_strided_slice %4 {offsets = [11, 0], sizes = [64, 128], strides = [1, 1]} : vector<82x128xbf16> to vector<64x128xbf16>
    %17 = vector.extract_strided_slice %4 {offsets = [12, 0], sizes = [64, 128], strides = [1, 1]} : vector<82x128xbf16> to vector<64x128xbf16>
    %18 = vector.extract_strided_slice %4 {offsets = [13, 0], sizes = [64, 128], strides = [1, 1]} : vector<82x128xbf16> to vector<64x128xbf16>
    %19 = vector.extract_strided_slice %4 {offsets = [14, 0], sizes = [64, 128], strides = [1, 1]} : vector<82x128xbf16> to vector<64x128xbf16>
    %20 = vector.extract_strided_slice %4 {offsets = [15, 0], sizes = [64, 128], strides = [1, 1]} : vector<82x128xbf16> to vector<64x128xbf16>
    %21 = vector.extract_strided_slice %4 {offsets = [16, 0], sizes = [64, 128], strides = [1, 1]} : vector<82x128xbf16> to vector<64x128xbf16>
    %22 = vector.extract_strided_slice %4 {offsets = [17, 0], sizes = [64, 128], strides = [1, 1]} : vector<82x128xbf16> to vector<64x128xbf16>
    %23 = vector.extract_strided_slice %4 {offsets = [18, 0], sizes = [64, 128], strides = [1, 1]} : vector<82x128xbf16> to vector<64x128xbf16>
    %24 = tpu.concatenate %5, %6, %7, %8, %9, %10, %11, %12, %13, %14, %15, %16, %17, %18, %19, %20 in 1 : vector<64x128xbf16>, vector<64x128xbf16>, vector<64x128xbf16>, vector<64x128xbf16>, vector<64x128xbf16>, vector<64x128xbf16>, vector<64x128xbf16>, vector<64x128xbf16>, vector<64x128xbf16>, vector<64x128xbf16>, vector<64x128xbf16>, vector<64x128xbf16>, vector<64x128xbf16>, vector<64x128xbf16>, vector<64x128xbf16>, vector<64x128xbf16> -> vector<64x2048xbf16>
    %25 = tpu.concatenate %21, %22, %23 in 1 : vector<64x128xbf16>, vector<64x128xbf16>, vector<64x128xbf16> -> vector<64x384xbf16>
    %26 = tpu.concatenate %24, %25 in 1 : vector<64x2048xbf16>, vector<64x384xbf16> -> vector<64x2432xbf16>
    %c0_3 = arith.constant 0 : index
    %c0_4 = arith.constant 0 : index
    %27 = vector.load %arg2[%c0_3, %c0_4] : memref<2432x128xbf16, #tpu.memory_space<vmem>>, vector<2432x128xbf16>
    %cst_5 = arith.constant dense<0.000000e+00> : vector<64x128xf32>
    %28 = tpu.matmul %26, %27, %cst_5 {dimension_numbers = #tpu.dot_dimension_numbers<[1], [0], [0], [1], [0, 0, 1, 1], [], []>} : vector<64x2432xbf16>, vector<2432x128xbf16>, vector<64x128xf32> -> vector<64x128xf32>
    %c0_6 = arith.constant 0 : index
    %c0_7 = arith.constant 0 : index
    %29 = vector.load %arg3[%c0_6, %c0_7] : memref<1x128xf32, #tpu.memory_space<vmem>>, vector<1x128xf32>
    %30 = vector.broadcast %29 : vector<1x128xf32> to vector<64x128xf32>
    %31 = arith.addf %28, %30 : vector<64x128xf32>
    %32 = arith.negf %31 : vector<64x128xf32>
    %33 = math.exp %32 : vector<64x128xf32>
    %cst_8 = arith.constant 1.000000e+00 : f32
    %34 = vector.broadcast %cst_8 : f32 to vector<64x128xf32>
    %35 = arith.addf %34, %33 : vector<64x128xf32>
    %36 = arith.divf %34, %35 : vector<64x128xf32>
    %37 = arith.mulf %31, %36 : vector<64x128xf32>
    %38 = arith.truncf %37 : vector<64x128xf32> to vector<64x128xbf16>
    %c0_9 = arith.constant 0 : index
    %c0_10 = arith.constant 0 : index
    %39 = vector.load %arg4[%c0_9, %c0_10] : memref<128x128xbf16, #tpu.memory_space<vmem>>, vector<128x128xbf16>
    %cst_11 = arith.constant dense<0.000000e+00> : vector<64x128xf32>
    %40 = tpu.matmul %38, %39, %cst_11 {dimension_numbers = #tpu.dot_dimension_numbers<[1], [0], [0], [1], [0, 0, 1, 1], [], []>} : vector<64x128xbf16>, vector<128x128xbf16>, vector<64x128xf32> -> vector<64x128xf32>
    %c0_12 = arith.constant 0 : index
    %c0_13 = arith.constant 0 : index
    %41 = vector.load %arg5[%c0_12, %c0_13] : memref<128x128xbf16, #tpu.memory_space<vmem>>, vector<128x128xbf16>
    %cst_14 = arith.constant dense<0.000000e+00> : vector<64x128xf32>
    %42 = tpu.matmul %1, %41, %cst_14 {dimension_numbers = #tpu.dot_dimension_numbers<[1], [0], [0], [1], [0, 0, 1, 1], [], []>} : vector<64x128xbf16>, vector<128x128xbf16>, vector<64x128xf32> -> vector<64x128xf32>
    %43 = arith.addf %40, %42 : vector<64x128xf32>
    %c0_15 = arith.constant 0 : index
    %c0_16 = arith.constant 0 : index
    %44 = vector.load %arg6[%c0_15, %c0_16] : memref<1x128xf32, #tpu.memory_space<vmem>>, vector<1x128xf32>
    %45 = vector.broadcast %44 : vector<1x128xf32> to vector<64x128xf32>
    %46 = arith.addf %43, %45 : vector<64x128xf32>
    %47 = arith.negf %46 : vector<64x128xf32>
    %48 = math.exp %47 : vector<64x128xf32>
    %cst_17 = arith.constant 1.000000e+00 : f32
    %49 = vector.broadcast %cst_17 : f32 to vector<64x128xf32>
    %50 = arith.addf %49, %48 : vector<64x128xf32>
    %51 = arith.divf %49, %50 : vector<64x128xf32>
    %52 = arith.mulf %46, %51 : vector<64x128xf32>
    %53 = vector.shape_cast %52 : vector<64x128xf32> to vector<32x2x128xf32>
    %cst_18 = arith.constant dense<0xFF800000> : vector<32x128xf32>
    %54 = vector.multi_reduction <maximumf>, %53, %cst_18 [1] : vector<32x2x128xf32> to vector<32x128xf32>
    %55 = arith.truncf %54 : vector<32x128xf32> to vector<32x128xbf16>
    %c0_19 = arith.constant 0 : index
    %c0_20 = arith.constant 0 : index
    %c0_21 = arith.constant 0 : index
    %56 = vector.load %arg7[%c0_19, %c0_20, %c0_21] : memref<1x32x128xbf16, #tpu.memory_space<vmem>>, vector<1x32x128xbf16>
    %57 = vector.shape_cast %56 : vector<1x32x128xbf16> to vector<32x128xbf16>
    %58 = vector.shape_cast %55 : vector<32x128xbf16> to vector<1x32x128xbf16>
    tpu.vector_store %arg7[%c0_19, %c0_20, %c0_21], %58 {strides = array<i32>} : memref<1x32x128xbf16, #tpu.memory_space<vmem>>, vector<1x32x128xbf16>,
    return
  }
  func.func @transform_0(%arg0: i32) -> (i32, i32, i32) {
    %c0_i32 = arith.constant 0 : i32
    %c0_i32_0 = arith.constant 0 : i32
    %c0_i32_1 = arith.constant 0 : i32
    return %arg0, %c0_i32, %c0_i32_0 : i32, i32, i32
  }
  func.func @transform_1(%arg0: i32) -> (i32, i32) {
    %c0_i32 = arith.constant 0 : i32
    %c0_i32_0 = arith.constant 0 : i32
    %c0_i32_1 = arith.constant 0 : i32
    return %c0_i32, %c0_i32_0 : i32, i32
  }
  func.func @transform_2(%arg0: i32) -> (i32, i32) {
    %c0_i32 = arith.constant 0 : i32
    %c0_i32_0 = arith.constant 0 : i32
    %c0_i32_1 = arith.constant 0 : i32
    return %c0_i32, %c0_i32_0 : i32, i32
  }
  func.func @transform_3(%arg0: i32) -> (i32, i32) {
    %c0_i32 = arith.constant 0 : i32
    %c0_i32_0 = arith.constant 0 : i32
    %c0_i32_1 = arith.constant 0 : i32
    return %c0_i32, %c0_i32_0 : i32, i32
  }
  func.func @transform_4(%arg0: i32) -> (i32, i32) {
    %c0_i32 = arith.constant 0 : i32
    %c0_i32_0 = arith.constant 0 : i32
    %c0_i32_1 = arith.constant 0 : i32
    return %c0_i32, %c0_i32_0 : i32, i32
  }
  func.func @transform_5(%arg0: i32) -> (i32, i32) {
    %c0_i32 = arith.constant 0 : i32
    %c0_i32_0 = arith.constant 0 : i32
    %c0_i32_1 = arith.constant 0 : i32
    return %c0_i32, %c0_i32_0 : i32, i32
  }
  func.func @transform_6(%arg0: i32) -> (i32, i32, i32) {
    %c0_i32 = arith.constant 0 : i32
    %c0_i32_0 = arith.constant 0 : i32
    %c0_i32_1 = arith.constant 0 : i32
    return %arg0, %c0_i32, %c0_i32_0 : i32, i32, i32
  }
}

</mosaic_0001>

<llo_original>
// kernel: tpu_custom_call.1
$region0: #{tpu_custom_call.1}
  #allocation0 [shape = 'u32[]', space=smem, size = 0x4, offset = 0x4, fixed_abs, tag = 'smem constant byte address 0x4 - core index']
  #allocation1 [shape = 'u32[144,128]{1,0:T(1,128)}', space=vmem, size = 0x12000, scoped, tag = 'internal scratch']
  %s0 = inlined_call_operand.hbm [shape: bf16[2,64,128], index: 0, kind: input, shape index: {}]
  %s1 = inlined_call_operand.hbm [shape: bf16[2432,128], index: 1, kind: input, shape index: {}]
  %s2 = inlined_call_operand.vmem [shape: f32[1,128], index: 2, kind: input, shape index: {}]
  %s3 = inlined_call_operand.hbm [shape: bf16[128,128], index: 3, kind: input, shape index: {}]
  %s4 = inlined_call_operand.hbm [shape: bf16[128,128], index: 4, kind: input, shape index: {}]
  %s5 = inlined_call_operand.vmem [shape: f32[1,128], index: 5, kind: input, shape index: {}]
  %s6 = inlined_call_operand.hbm [shape: bf16[2,32,128], index: 6, kind: output, shape index: {}]
  %s7 = sld [smem:[#allocation0]]
  $region73: #{tpu_custom_call.1} parent=0
    _
  %s9 = ssub.s32 1, %s7
  %s10 = scalar_select 0, %s9, %s7
  $region1: #{tpu_custom_call.1} parent=0
    #allocation2 [shape = 'u8[32768]{0}', space=vmem, size = 0x8000, scoped, tag = 'input window, operand 0']
    #allocation3 [shape = 's32[2]{0}', space=sflag, size = 0x8, scoped, tag = 'scoped memory for tpu_custom_call.1']
    #allocation4 [shape = 's32[2]{0}', space=sflag, size = 0x8, scoped, tag = 'scoped memory for tpu_custom_call.1']
    #allocation5 [shape = 'u8[622592]{0}', space=vmem, size = 0x98000, scoped, tag = 'input window, operand 1, single buffered']
    #allocation6 [shape = 's32[1]{0}', space=sflag, size = 0x4, scoped, tag = 'scoped memory for tpu_custom_call.1']
    #allocation7 [shape = 'u8[32768]{0}', space=vmem, size = 0x8000, scoped, tag = 'input window, operand 3, single buffered']
    #allocation8 [shape = 'u8[32768]{0}', space=vmem, size = 0x8000, scoped, tag = 'input window, operand 4, single buffered']
    #allocation9 [shape = 's32[1]{0}', space=sflag, size = 0x4, scoped, tag = 'scoped memory for tpu_custom_call.1']
    #allocation10 [shape = 'u8[16384]{0}', space=vmem, size = 0x4000, scoped, tag = 'output window, operand 0']
    %11 = vsyncpa [#allocation3], 0
    %s12 = scalar_lea.sflag [#allocation3], 1
    %13 = vsyncpa %s12, 0
    %14 = vsyncpa [#allocation6], 0
    %15 = vsyncpa [#allocation9], 0
    %16 = vsyncpa [#allocation4], 0
    %s17 = scalar_lea.sflag [#allocation4], 1
    %18 = vsyncpa %s17, 0
    loop: start=0, step=1, limit=4
    $region2: #{tpu_custom_call.1} parent=1 // loop_pre_header
      _
    $region3: #{tpu_custom_call.1} parent=1 // loop_header
      %s20 = sphi 0, %s24
      %p21 = scmp.ge.s32.totalorder %s20, 4
      %s30 = sphi 0, %s32
      %s33 = sphi 0, %s30
      %s34 = sphi 0, %s33
      %s50 = sphi 0, %s34
      %s54 = sphi 0, %s54
      %s56 = sphi 0, %s54
      %s57 = sphi 0, %s56
      %s71 = sphi 0, %s57
      %s75 = sphi 0, %s75
      %s77 = sphi 0, %s75
      %s78 = sphi 0, %s77
      %s92 = sphi 0, %s78
      %s96 = sphi 0, %s96
      %s98 = sphi 0, %s96
      %s99 = sphi 0, %s98
      %s113 = sphi 0, %s99
      %s117 = sphi 0, %s117
      %s119 = sphi 0, %s117
      %s120 = sphi 0, %s119
      %s134 = sphi 0, %s120
      %s138 = sphi 0, %s138
      %s140 = sphi 0, %s138
      %s141 = sphi 0, %s140
      %s155 = sphi 0, %s141
      %s161 = sphi 0, %s163
      %s164 = sphi 0, %s161
      %s165 = sphi 0, %s164
      %s181 = sphi 0, %s165
    $region4: #{tpu_custom_call.1} parent=1 // loop_header_branch
      %23 = sbr.rel (%p21) target = $region8
    $region5: #{tpu_custom_call.1} parent=1 // loop_body
      %s25 = ssub.s32 %s20, 1
      %s26 = ssub.s32 %s20, 2
      %s27 = sadd.s32 %s20, 1
      %s28 = ssub.s32 %s20, %s27
      %p29 = scmp.eq.s32.totalorder %s28, 0
      %s31 = sadd.s32 %s30, 1
      %s32 = scalar_select %p29, %s30, %s31
      %p35 = pneg %p29
      %p36 = scmp.eq.s32.totalorder %s20, 1
      %p37 = por %p35, %p36
      %p38 = scmp.ne.s32.totalorder %s30, %s33
      %p39 = scmp.eq.s32.totalorder %s20, 0
      %p40 = por %p38, %p39
      %p41 = scmp.ne.s32.totalorder %s30, %s33
      %p42 = scmp.eq.s32.totalorder %s25, 1
      %p43 = por %p41, %p42
      %p44 = scmp.ne.s32.totalorder %s33, %s34
      %p45 = scmp.eq.s32.totalorder %s25, 0
      %p46 = por %p44, %p45
      %p47 = scmp.ne.s32.totalorder %s33, %s34
      %p48 = scmp.eq.s32.totalorder %s26, 1
      %p49 = por %p47, %p48
      %p51 = scmp.ne.s32.totalorder %s34, %s50
      %p52 = scmp.eq.s32.totalorder %s26, 0
      %p53 = por %p51, %p52
      %s55 = sadd.s32 %s54, 1
      %p58 = scmp.eq.s32.totalorder %s20, 1
      %p59 = scmp.ne.s32.totalorder %s54, %s56
      %p60 = scmp.eq.s32.totalorder %s20, 0
      %p61 = por %p59, %p60
      %p62 = scmp.ne.s32.totalorder %s54, %s56
      %p63 = scmp.eq.s32.totalorder %s25, 1
      %p64 = por %p62, %p63
      %p65 = scmp.ne.s32.totalorder %s56, %s57
      %p66 = scmp.eq.s32.totalorder %s25, 0
      %p67 = por %p65, %p66
      %p68 = scmp.ne.s32.totalorder %s56, %s57
      %p69 = scmp.eq.s32.totalorder %s26, 1
      %p70 = por %p68, %p69
      %p72 = scmp.ne.s32.totalorder %s57, %s71
      %p73 = scmp.eq.s32.totalorder %s26, 0
      %p74 = por %p72, %p73
      %s76 = sadd.s32 %s75, 1
      %p79 = scmp.eq.s32.totalorder %s20, 1
      %p80 = scmp.ne.s32.totalorder %s75, %s77
      %p81 = scmp.eq.s32.totalorder %s20, 0
      %p82 = por %p80, %p81
      %p83 = scmp.ne.s32.totalorder %s75, %s77
      %p84 = scmp.eq.s32.totalorder %s25, 1
      %p85 = por %p83, %p84
      %p86 = scmp.ne.s32.totalorder %s77, %s78
      %p87 = scmp.eq.s32.totalorder %s25, 0
      %p88 = por %p86, %p87
      %p89 = scmp.ne.s32.totalorder %s77, %s78
      %p90 = scmp.eq.s32.totalorder %s26, 1
      %p91 = por %p89, %p90
      %p93 = scmp.ne.s32.totalorder %s78, %s92
      %p94 = scmp.eq.s32.totalorder %s26, 0
      %p95 = por %p93, %p94
      %s97 = sadd.s32 %s96, 1
      %p100 = scmp.eq.s32.totalorder %s20, 1
      %p101 = scmp.ne.s32.totalorder %s96, %s98
      %p102 = scmp.eq.s32.totalorder %s20, 0
      %p103 = por %p101, %p102
      %p104 = scmp.ne.s32.totalorder %s96, %s98
      %p105 = scmp.eq.s32.totalorder %s25, 1
      %p106 = por %p104, %p105
      %p107 = scmp.ne.s32.totalorder %s98, %s99
      %p108 = scmp.eq.s32.totalorder %s25, 0
      %p109 = por %p107, %p108
      %p110 = scmp.ne.s32.totalorder %s98, %s99
      %p111 = scmp.eq.s32.totalorder %s26, 1
      %p112 = por %p110, %p111
      %p114 = scmp.ne.s32.totalorder %s99, %s113
      %p115 = scmp.eq.s32.totalorder %s26, 0
      %p116 = por %p114, %p115
      %s118 = sadd.s32 %s117, 1
      %p121 = scmp.eq.s32.totalorder %s20, 1
      %p122 = scmp.ne.s32.totalorder %s117, %s119
      %p123 = scmp.eq.s32.totalorder %s20, 0
      %p124 = por %p122, %p123
      %p125 = scmp.ne.s32.totalorder %s117, %s119
      %p126 = scmp.eq.s32.totalorder %s25, 1
      %p127 = por %p125, %p126
      %p128 = scmp.ne.s32.totalorder %s119, %s120
      %p129 = scmp.eq.s32.totalorder %s25, 0
      %p130 = por %p128, %p129
      %p131 = scmp.ne.s32.totalorder %s119, %s120
      %p132 = scmp.eq.s32.totalorder %s26, 1
      %p133 = por %p131, %p132
      %p135 = scmp.ne.s32.totalorder %s120, %s134
      %p136 = scmp.eq.s32.totalorder %s26, 0
      %p137 = por %p135, %p136
      %s139 = sadd.s32 %s138, 1
      %p142 = scmp.eq.s32.totalorder %s20, 1
      %p143 = scmp.ne.s32.totalorder %s138, %s140
      %p144 = scmp.eq.s32.totalorder %s20, 0
      %p145 = por %p143, %p144
      %p146 = scmp.ne.s32.totalorder %s138, %s140
      %p147 = scmp.eq.s32.totalorder %s25, 1
      %p148 = por %p146, %p147
      %p149 = scmp.ne.s32.totalorder %s140, %s141
      %p150 = scmp.eq.s32.totalorder %s25, 0
      %p151 = por %p149, %p150
      %p152 = scmp.ne.s32.totalorder %s140, %s141
      %p153 = scmp.eq.s32.totalorder %s26, 1
      %p154 = por %p152, %p153
      %p156 = scmp.ne.s32.totalorder %s141, %s155
      %p157 = scmp.eq.s32.totalorder %s26, 0
      %p158 = por %p156, %p157
      %s159 = ssub.s32 %s20, %s27
      %p160 = scmp.eq.s32.totalorder %s159, 0
      %s162 = sadd.s32 %s161, 1
      %s163 = scalar_select %p160, %s161, %s162
      %p166 = pneg %p160
      %p167 = scmp.eq.s32.totalorder %s20, 1
      %p168 = por %p166, %p167
      %p169 = scmp.ne.s32.totalorder %s161, %s164
      %p170 = scmp.eq.s32.totalorder %s20, 0
      %p171 = por %p169, %p170
      %p172 = scmp.ne.s32.totalorder %s161, %s164
      %p173 = scmp.eq.s32.totalorder %s25, 1
      %p174 = por %p172, %p173
      %p175 = scmp.ne.s32.totalorder %s164, %s165
      %p176 = scmp.eq.s32.totalorder %s25, 0
      %p177 = por %p175, %p176
      %p178 = scmp.ne.s32.totalorder %s164, %s165
      %p179 = scmp.eq.s32.totalorder %s26, 1
      %p180 = por %p178, %p179
      %p182 = scmp.ne.s32.totalorder %s165, %s181
      %p183 = scmp.eq.s32.totalorder %s26, 0
      %p184 = por %p182, %p183
      %p185 = scmp.le.s32.totalorder 1, %s20
      %p186 = scmp.lt.s32.totalorder %s20, 3
      %p187 = pnand %p185, %p186
      %p188 = pneg %p187
      // Predicated region
      $region9: #{tpu_custom_call.1} parent=5 // pred_check
        _
      $region10: #{tpu_custom_call.1} parent=5 // pred_check_branch
        %190 = sbr.rel (%p187) target = $region12
      $region11: #{tpu_custom_call.1} parent=5 // pred_region
        %s191 = ssub.s32 %s20, 1
        // Predicated region
        $region13: #{tpu_custom_call.1} parent=11 // pred_check
          %p192 = pneg %p67
        $region14: #{tpu_custom_call.1} parent=11 // pred_check_branch
          %194 = sbr.rel (%p192) target = $region16
        $region15: #{tpu_custom_call.1} parent=11 // pred_region
          %s196 = ssub.s32 19456, 19456
          %197 = vsyncadd [#allocation6], %s196
          %s198 = sshll.u32 [#allocation5], 4
          %s199 = int_to_ptr.vmem [resolvable:$true] %s198
          %204 = dma.hbm_to_vmem [thread:$0]  %s1, 19456, %s199, [#allocation6], 64, 64, 4
        $region16: #{tpu_custom_call.1} parent=11 // pred_fallthru
          _
        // Predicated region
        $region17: #{tpu_custom_call.1} parent=11 // pred_check
          %p205 = pneg %p88
        $region18: #{tpu_custom_call.1} parent=11 // pred_check_branch
          %207 = sbr.rel (%p205) target = $region20
        $region19: #{tpu_custom_call.1} parent=11 // pred_region
          _
        $region20: #{tpu_custom_call.1} parent=11 // pred_fallthru
          _
        // Predicated region
        $region21: #{tpu_custom_call.1} parent=11 // pred_check
          %p208 = pneg %p109
        $region22: #{tpu_custom_call.1} parent=11 // pred_check_branch
          %210 = sbr.rel (%p208) target = $region24
        $region23: #{tpu_custom_call.1} parent=11 // pred_region
          %s212 = ssub.s32 1024, 1024
          %213 = vsyncadd [#allocation6], %s212
          %s214 = sshll.u32 [#allocation7], 4
          %s215 = int_to_ptr.vmem [resolvable:$true] %s214
          %220 = dma.hbm_to_vmem [thread:$0]  %s3, 1024, %s215, [#allocation6], 64, 64, 4
        $region24: #{tpu_custom_call.1} parent=11 // pred_fallthru
          _
        // Predicated region
        $region25: #{tpu_custom_call.1} parent=11 // pred_check
          %p221 = pneg %p130
        $region26: #{tpu_custom_call.1} parent=11 // pred_check_branch
          %223 = sbr.rel (%p221) target = $region28
        $region27: #{tpu_custom_call.1} parent=11 // pred_region
          %s225 = ssub.s32 1024, 1024
          %226 = vsyncadd [#allocation9], %s225
          %s227 = sshll.u32 [#allocation8], 4
          %s228 = int_to_ptr.vmem [resolvable:$true] %s227
          %233 = dma.hbm_to_vmem [thread:$0]  %s4, 1024, %s228, [#allocation9], 64, 64, 4
        $region28: #{tpu_custom_call.1} parent=11 // pred_fallthru
          _
        // Predicated region
        $region29: #{tpu_custom_call.1} parent=11 // pred_check
          %p234 = pneg %p151
        $region30: #{tpu_custom_call.1} parent=11 // pred_check_branch
          %236 = sbr.rel (%p234) target = $region32
        $region31: #{tpu_custom_call.1} parent=11 // pred_region
          _
        $region32: #{tpu_custom_call.1} parent=11 // pred_fallthru
          _
      $region12: #{tpu_custom_call.1} parent=5 // pred_fallthru
        _
      %p237 = scmp.lt.s32.totalorder %s20, 2
      // Predicated region
      $region33: #{tpu_custom_call.1} parent=5 // pred_check
        %p238 = pneg %p237
      $region34: #{tpu_custom_call.1} parent=5 // pred_check_branch
        %240 = sbr.rel (%p238) target = $region36
      $region35: #{tpu_custom_call.1} parent=5 // pred_region
        // Predicated region
        $region37: #{tpu_custom_call.1} parent=35 // pred_check
          %p241 = pneg %p40
        $region38: #{tpu_custom_call.1} parent=35 // pred_check_branch
          %243 = sbr.rel (%p241) target = $region40
        $region39: #{tpu_custom_call.1} parent=35 // pred_region
          %s244 = sand.u32 %s30, 1
          %s245 = scalar_lea.sflag [#allocation3], %s244
          %s246 = sand.u32 %s30, 1
          %s247 = smul.addr %s246, 32
          %s248 = scalar_lea.vmem [#allocation2], %s247
          %s250 = ssub.s32 512, 512
          %251 = vsyncadd %s245, %s250
          %s252 = smul.addr %s20, 8
          %s253 = smul.addr %s252, 64
          %s254 = scalar_lea.hbm %s0, %s253
          %s255 = sshll.u32 %s248, 4
          %s256 = int_to_ptr.vmem [resolvable:$true] %s255
          %261 = dma.hbm_to_vmem [thread:$0]  %s254, 512, %s256, %s245, 64, 64, 4
        $region40: #{tpu_custom_call.1} parent=35 // pred_fallthru
          _
      $region36: #{tpu_custom_call.1} parent=5 // pred_fallthru
        _
      %p262 = scmp.le.s32.totalorder 1, %s20
      %p263 = scmp.lt.s32.totalorder %s20, 3
      %p264 = pnand %p262, %p263
      %p265 = pneg %p264
      // Predicated region
      $region41: #{tpu_custom_call.1} parent=5 // pred_check
        _
      $region42: #{tpu_custom_call.1} parent=5 // pred_check_branch
        %267 = sbr.rel (%p264) target = $region44
      $region43: #{tpu_custom_call.1} parent=5 // pred_region
        %s268 = ssub.s32 %s20, 1
        %s269 = sand.u32 %s33, 1
        %s270 = scalar_lea.sflag [#allocation3], %s269
        %s271 = sand.u32 %s33, 1
        %s272 = smul.addr %s271, 32
        %s273 = scalar_lea.vmem [#allocation2], %s272
        // Predicated region
        $region45: #{tpu_custom_call.1} parent=43 // pred_check
          %p274 = pneg %p46
        $region46: #{tpu_custom_call.1} parent=43 // pred_check_branch
          %276 = sbr.rel (%p274) target = $region48
        $region47: #{tpu_custom_call.1} parent=43 // pred_region
          %277 = dma.done %s270, 512
        $region48: #{tpu_custom_call.1} parent=43 // pred_fallthru
          _
        // Predicated region
        $region49: #{tpu_custom_call.1} parent=43 // pred_check
          %p278 = pneg %p67
        $region50: #{tpu_custom_call.1} parent=43 // pred_check_branch
          %280 = sbr.rel (%p278) target = $region52
        $region51: #{tpu_custom_call.1} parent=43 // pred_region
          %281 = dma.done [#allocation6], 19456
        $region52: #{tpu_custom_call.1} parent=43 // pred_fallthru
          _
        // Predicated region
        $region53: #{tpu_custom_call.1} parent=43 // pred_check
          %p282 = pneg %p109
        $region54: #{tpu_custom_call.1} parent=43 // pred_check_branch
          %284 = sbr.rel (%p282) target = $region56
        $region55: #{tpu_custom_call.1} parent=43 // pred_region
          %285 = dma.done [#allocation6], 1024
        $region56: #{tpu_custom_call.1} parent=43 // pred_fallthru
          _
        // Predicated region
        $region57: #{tpu_custom_call.1} parent=43 // pred_check
          %p286 = pneg %p130
        $region58: #{tpu_custom_call.1} parent=43 // pred_check_branch
          %288 = sbr.rel (%p286) target = $region60
        $region59: #{tpu_custom_call.1} parent=43 // pred_region
          %289 = dma.done [#allocation9], 1024
        $region60: #{tpu_custom_call.1} parent=43 // pred_fallthru
          _
        %s290 = sand.u32 %s33, 1
        %s291 = scalar_lea.sflag [#allocation3], %s290
        %s292 = sand.u32 %s33, 1
        %s293 = smul.addr %s292, 32
        %s294 = scalar_lea.vmem [#allocation2], %s293
        %p295 = pneg %p46
        %p296 = pneg %p43
        %p297 = pneg %p67
        %p298 = pneg %p64
        %p299 = pneg %p88
        %p300 = pneg %p85
        %p301 = pneg %p109
        %p302 = pneg %p106
        %p303 = pneg %p130
        %p304 = pneg %p127
        %p305 = pneg %p151
        %p306 = pneg %p148
        %p307 = pneg %p177
        %p308 = pneg %p174
        %s309 = sand.u32 %s164, 1
        %s310 = scalar_lea.sflag [#allocation4], %s309
        %s311 = sand.u32 %s164, 1
        %s312 = smul.addr %s311, 16
        %s313 = scalar_lea.vmem [#allocation10], %s312
        %v315 = vld [vmem:[%s273] sm:$0xf]
        %v316 = vld [vmem:[%s273 + $0x4] sm:$0xf]
        %v317 = vld [vmem:[%s273 + $0x8] sm:$0xf]
        %v318 = vld [vmem:[%s273 + $0xc] sm:$0xf]
        %v319 = vld [vmem:[%s273 + $0x10] sm:$0xf]
        %v320 = vld [vmem:[%s273 + $0x14] sm:$0xf]
        %v321 = vld [vmem:[%s273 + $0x18] sm:$0xf]
        %v322 = vld [vmem:[%s273 + $0x1c] sm:$0xf]
        %v331 = vunpack.c.l.b16 %v315
        %v332 = vunpack.c.l.b16 %v316
        %v333 = vunpack.c.l.b16 %v317
        %v334 = vunpack.c.l.b16 %v318
        %v335 = vunpack.c.l.b16 %v319
        %v336 = vunpack.c.l.b16 %v320
        %v337 = vunpack.c.l.b16 %v321
        %v338 = vunpack.c.l.b16 %v322
        %v339 = vpack.c.b16 %v332, %v331
        %v340 = vpack.c.b16 %v334, %v333
        %v341 = vpack.c.b16 %v336, %v335
        %v342 = vpack.c.b16 %v338, %v337
        %vm343 = vsmask.f32 4352
        %v345 = vshrl.u32 %v339, 16
        %v347 = vrot.slane %v345, 3
        %v348 = vshll.u32 %v339, 16
        %v350 = vrot.slane %v348, 4
        %v351 = vor.u32 %v347, %v350
        %v353 = vshrl.u32 %v340, 16
        %v355 = vrot.slane %v353, 3
        %v356 = vshll.u32 %v340, 16
        %v358 = vrot.slane %v356, 4
        %v359 = vor.u32 %v355, %v358
        %v360 = vsel %vm343, %v351, %v359
        %v362 = vshrl.u32 %v341, 16
        %v364 = vrot.slane %v362, 3
        %v365 = vshll.u32 %v341, 16
        %v367 = vrot.slane %v365, 4
        %v368 = vor.u32 %v364, %v367
        %v369 = vsel %vm343, %v359, %v368
        %v371 = vshrl.u32 %v342, 16
        %v373 = vrot.slane %v371, 3
        %v374 = vshll.u32 %v342, 16
        %v376 = vrot.slane %v374, 4
        %v377 = vor.u32 %v373, %v376
        %v378 = vsel %vm343, %v368, %v377
        %vm384 = vcmask 1044480
        %vm385 = vmand %vm384, %vm343
        %v386 = vsel %vm385, 0, %v351
        %v387 = vsel %vm385, %v377, 0
        %vm388 = vsmask.f32 7424
        %v390 = vshrl.u32 %v386, 16
        %v392 = vshll.u32 %v386, 16
        %v394 = vrot.slane %v392, 1
        %v395 = vor.u32 %v390, %v394
        %v397 = vshll.u32 %v360, 16
        %v399 = vrot.slane %v397, 1
        %v400 = vsel %vm388, %v395, %v399
        %v401 = vshrl.u32 %v360, 16
        %v403 = vor.u32 %v401, %v399
        %v405 = vshll.u32 %v369, 16
        %v407 = vrot.slane %v405, 1
        %v408 = vsel %vm388, %v403, %v407
        %v409 = vshrl.u32 %v369, 16
        %v411 = vor.u32 %v409, %v407
        %v413 = vshll.u32 %v378, 16
        %v415 = vrot.slane %v413, 1
        %v416 = vsel %vm388, %v411, %v415
        %v417 = vshrl.u32 %v378, 16
        %v419 = vor.u32 %v417, %v415
        %v421 = vshll.u32 %v387, 16
        %v423 = vrot.slane %v421, 1
        %v424 = vsel %vm388, %v419, %v423
        %vm431 = vcmask 1046528
        %v432 = vrot.slane %v386, 1
        %v433 = vrot.slane %v360, 1
        %v434 = vsel %vm431, %v432, %v433
        %v435 = vrot.slane %v369, 1
        %v436 = vsel %vm431, %v433, %v435
        %v437 = vrot.slane %v378, 1
        %v438 = vsel %vm431, %v435, %v437
        %v439 = vrot.slane %v387, 1
        %v440 = vsel %vm431, %v437, %v439
        %vm445 = vsmask.f32 6400
        %v446 = vrot.slane %v390, 1
        %v447 = vrot.slane %v392, 2
        %v448 = vor.u32 %v446, %v447
        %v449 = vrot.slane %v401, 1
        %v450 = vrot.slane %v397, 2
        %v451 = vor.u32 %v449, %v450
        %v452 = vsel %vm445, %v448, %v451
        %v453 = vrot.slane %v409, 1
        %v454 = vrot.slane %v405, 2
        %v455 = vor.u32 %v453, %v454
        %v456 = vsel %vm445, %v451, %v455
        %v457 = vrot.slane %v417, 1
        %v458 = vrot.slane %v413, 2
        %v459 = vor.u32 %v457, %v458
        %v460 = vsel %vm445, %v455, %v459
        %v461 = vshrl.u32 %v387, 16
        %v463 = vrot.slane %v461, 1
        %v464 = vrot.slane %v421, 2
        %v465 = vor.u32 %v463, %v464
        %v466 = vsel %vm445, %v459, %v465
        %vm471 = vcmask 1045504
        %v472 = vrot.slane %v386, 2
        %v473 = vrot.slane %v360, 2
        %v474 = vsel %vm471, %v472, %v473
        %v475 = vrot.slane %v369, 2
        %v476 = vsel %vm471, %v473, %v475
        %v477 = vrot.slane %v378, 2
        %v478 = vsel %vm471, %v475, %v477
        %v479 = vrot.slane %v387, 2
        %v480 = vsel %vm471, %v477, %v479
        %vm485 = vsmask.f32 5376
        %v486 = vrot.slane %v390, 2
        %v487 = vrot.slane %v392, 3
        %v488 = vor.u32 %v486, %v487
        %v489 = vrot.slane %v401, 2
        %v490 = vrot.slane %v397, 3
        %v491 = vor.u32 %v489, %v490
        %v492 = vsel %vm485, %v488, %v491
        %v493 = vrot.slane %v409, 2
        %v494 = vrot.slane %v405, 3
        %v495 = vor.u32 %v493, %v494
        %v496 = vsel %vm485, %v491, %v495
        %v497 = vrot.slane %v417, 2
        %v498 = vrot.slane %v413, 3
        %v499 = vor.u32 %v497, %v498
        %v500 = vsel %vm485, %v495, %v499
        %v501 = vrot.slane %v461, 2
        %v502 = vrot.slane %v421, 3
        %v503 = vor.u32 %v501, %v502
        %v504 = vsel %vm485, %v499, %v503
        %v509 = vrot.slane %v386, 3
        %v510 = vrot.slane %v360, 3
        %v511 = vsel %vm384, %v509, %v510
        %v512 = vrot.slane %v369, 3
        %v513 = vsel %vm384, %v510, %v512
        %v514 = vrot.slane %v378, 3
        %v515 = vsel %vm384, %v512, %v514
        %v516 = vrot.slane %v387, 3
        %v517 = vsel %vm384, %v514, %v516
        %v522 = vrot.slane %v390, 3
        %v523 = vrot.slane %v392, 4
        %v524 = vor.u32 %v522, %v523
        %v525 = vrot.slane %v401, 3
        %v526 = vrot.slane %v397, 4
        %v527 = vor.u32 %v525, %v526
        %v528 = vsel %vm343, %v524, %v527
        %v529 = vrot.slane %v409, 3
        %v530 = vrot.slane %v405, 4
        %v531 = vor.u32 %v529, %v530
        %v532 = vsel %vm343, %v527, %v531
        %v533 = vrot.slane %v417, 3
        %v534 = vrot.slane %v413, 4
        %v535 = vor.u32 %v533, %v534
        %v536 = vsel %vm343, %v531, %v535
        %v537 = vrot.slane %v461, 3
        %v538 = vrot.slane %v421, 4
        %v539 = vor.u32 %v537, %v538
        %v540 = vsel %vm343, %v535, %v539
        %vm545 = vcmask 1043456
        %v546 = vrot.slane %v386, 4
        %v547 = vrot.slane %v360, 4
        %v548 = vsel %vm545, %v546, %v547
        %v549 = vrot.slane %v369, 4
        %v550 = vsel %vm545, %v547, %v549
        %v551 = vrot.slane %v378, 4
        %v552 = vsel %vm545, %v549, %v551
        %v553 = vrot.slane %v387, 4
        %v554 = vsel %vm545, %v551, %v553
        %vm559 = vsmask.f32 3328
        %v560 = vrot.slane %v390, 4
        %v561 = vrot.slane %v392, 5
        %v562 = vor.u32 %v560, %v561
        %v563 = vrot.slane %v401, 4
        %v564 = vrot.slane %v397, 5
        %v565 = vor.u32 %v563, %v564
        %v566 = vsel %vm559, %v562, %v565
        %v567 = vrot.slane %v409, 4
        %v568 = vrot.slane %v405, 5
        %v569 = vor.u32 %v567, %v568
        %v570 = vsel %vm559, %v565, %v569
        %v571 = vrot.slane %v417, 4
        %v572 = vrot.slane %v413, 5
        %v573 = vor.u32 %v571, %v572
        %v574 = vsel %vm559, %v569, %v573
        %v575 = vrot.slane %v461, 4
        %v576 = vrot.slane %v421, 5
        %v577 = vor.u32 %v575, %v576
        %v578 = vsel %vm559, %v573, %v577
        %vm583 = vcmask 1042432
        %v584 = vrot.slane %v386, 5
        %v585 = vrot.slane %v360, 5
        %v586 = vsel %vm583, %v584, %v585
        %v587 = vrot.slane %v369, 5
        %v588 = vsel %vm583, %v585, %v587
        %v589 = vrot.slane %v378, 5
        %v590 = vsel %vm583, %v587, %v589
        %v591 = vrot.slane %v387, 5
        %v592 = vsel %vm583, %v589, %v591
        %vm597 = vsmask.f32 2304
        %v598 = vrot.slane %v390, 5
        %v599 = vrot.slane %v392, 6
        %v600 = vor.u32 %v598, %v599
        %v601 = vrot.slane %v401, 5
        %v602 = vrot.slane %v397, 6
        %v603 = vor.u32 %v601, %v602
        %v604 = vsel %vm597, %v600, %v603
        %v605 = vrot.slane %v409, 5
        %v606 = vrot.slane %v405, 6
        %v607 = vor.u32 %v605, %v606
        %v608 = vsel %vm597, %v603, %v607
        %v609 = vrot.slane %v417, 5
        %v610 = vrot.slane %v413, 6
        %v611 = vor.u32 %v609, %v610
        %v612 = vsel %vm597, %v607, %v611
        %v613 = vrot.slane %v461, 5
        %v614 = vrot.slane %v421, 6
        %v615 = vor.u32 %v613, %v614
        %v616 = vsel %vm597, %v611, %v615
        %vm621 = vcmask 1041408
        %v622 = vrot.slane %v386, 6
        %v623 = vrot.slane %v360, 6
        %v624 = vsel %vm621, %v622, %v623
        %v625 = vrot.slane %v369, 6
        %v626 = vsel %vm621, %v623, %v625
        %v627 = vrot.slane %v378, 6
        %v628 = vsel %vm621, %v625, %v627
        %v629 = vrot.slane %v387, 6
        %v630 = vsel %vm621, %v627, %v629
        %vm635 = vsmask.f32 1280
        %v636 = vrot.slane %v390, 6
        %v637 = vrot.slane %v392, 7
        %v638 = vor.u32 %v636, %v637
        %v639 = vrot.slane %v401, 6
        %v640 = vrot.slane %v397, 7
        %v641 = vor.u32 %v639, %v640
        %v642 = vsel %vm635, %v638, %v641
        %v643 = vrot.slane %v409, 6
        %v644 = vrot.slane %v405, 7
        %v645 = vor.u32 %v643, %v644
        %v646 = vsel %vm635, %v641, %v645
        %v647 = vrot.slane %v417, 6
        %v648 = vrot.slane %v413, 7
        %v649 = vor.u32 %v647, %v648
        %v650 = vsel %vm635, %v645, %v649
        %v651 = vrot.slane %v461, 6
        %v652 = vrot.slane %v421, 7
        %v653 = vor.u32 %v651, %v652
        %v654 = vsel %vm635, %v649, %v653
        %vm659 = vcmask 1040384
        %v660 = vrot.slane %v386, 7
        %v661 = vrot.slane %v360, 7
        %v662 = vsel %vm659, %v660, %v661
        %v663 = vrot.slane %v369, 7
        %v664 = vsel %vm659, %v661, %v663
        %v665 = vrot.slane %v378, 7
        %v666 = vsel %vm659, %v663, %v665
        %v667 = vrot.slane %v387, 7
        %v668 = vsel %vm659, %v665, %v667
        %vm673 = vsmask.f32 256
        %v674 = vrot.slane %v390, 7
        %v675 = vrot.slane %v401, 7
        %v676 = vor.u32 %v675, %v397
        %v677 = vsel %vm673, %v674, %v676
        %v678 = vrot.slane %v409, 7
        %v679 = vor.u32 %v678, %v405
        %v680 = vsel %vm673, %v675, %v679
        %v681 = vrot.slane %v417, 7
        %v682 = vor.u32 %v681, %v413
        %v683 = vsel %vm673, %v678, %v682
        %v684 = vrot.slane %v461, 7
        %v685 = vor.u32 %v684, %v421
        %v686 = vsel %vm673, %v681, %v685
        %v691 = vor.u32 %v461, %v423
        %v693 = vshll.u32 0, 16
        %v695 = vrot.slane %v693, 1
        %v696 = vsel %vm388, %v691, %v695
        %v699 = vrot.slane 0, 1
        %v700 = vsel %vm431, %v439, %v699
        %v702 = vld [vmem:[#allocation5] sm:$0xf]
        %v703 = vld [vmem:[#allocation5 + $0x4] sm:$0xf]
        %v704 = vld [vmem:[#allocation5 + $0x8] sm:$0xf]
        %v705 = vld [vmem:[#allocation5 + $0xc] sm:$0xf]
        %v706 = vld [vmem:[#allocation5 + $0x10] sm:$0xf]
        %v707 = vld [vmem:[#allocation5 + $0x14] sm:$0xf]
        %v708 = vld [vmem:[#allocation5 + $0x18] sm:$0xf]
        %v709 = vld [vmem:[#allocation5 + $0x1c] sm:$0xf]
        %v710 = vld [vmem:[#allocation5 + $0x20] sm:$0xf]
        %v711 = vld [vmem:[#allocation5 + $0x24] sm:$0xf]
        %v712 = vld [vmem:[#allocation5 + $0x28] sm:$0xf]
        %v713 = vld [vmem:[#allocation5 + $0x2c] sm:$0xf]
        %v714 = vld [vmem:[#allocation5 + $0x30] sm:$0xf]
        %v715 = vld [vmem:[#allocation5 + $0x34] sm:$0xf]
        %v716 = vld [vmem:[#allocation5 + $0x38] sm:$0xf]
        %v717 = vld [vmem:[#allocation5 + $0x3c] sm:$0xf]
        %v718 = vld [vmem:[#allocation5 + $0x40] sm:$0xf]
        %v719 = vld [vmem:[#allocation5 + $0x44] sm:$0xf]
        %v720 = vld [vmem:[#allocation5 + $0x48] sm:$0xf]
        %v721 = vld [vmem:[#allocation5 + $0x4c] sm:$0xf]
        %v722 = vld [vmem:[#allocation5 + $0x50] sm:$0xf]
        %v723 = vld [vmem:[#allocation5 + $0x54] sm:$0xf]
        %v724 = vld [vmem:[#allocation5 + $0x58] sm:$0xf]
        %v725 = vld [vmem:[#allocation5 + $0x5c] sm:$0xf]
        %v726 = vld [vmem:[#allocation5 + $0x60] sm:$0xf]
        %v727 = vld [vmem:[#allocation5 + $0x64] sm:$0xf]
        %v728 = vld [vmem:[#allocation5 + $0x68] sm:$0xf]
        %v729 = vld [vmem:[#allocation5 + $0x6c] sm:$0xf]
        %v730 = vld [vmem:[#allocation5 + $0x70] sm:$0xf]
        %v731 = vld [vmem:[#allocation5 + $0x74] sm:$0xf]
        %v732 = vld [vmem:[#allocation5 + $0x78] sm:$0xf]
        %v733 = vld [vmem:[#allocation5 + $0x7c] sm:$0xf]
        %v734 = vld [vmem:[#allocation5 + $0x80] sm:$0xf]
        %v735 = vld [vmem:[#allocation5 + $0x84] sm:$0xf]
        %v736 = vld [vmem:[#allocation5 + $0x88] sm:$0xf]
        %v737 = vld [vmem:[#allocation5 + $0x8c] sm:$0xf]
        %v738 = vld [vmem:[#allocation5 + $0x90] sm:$0xf]
        %v739 = vld [vmem:[#allocation5 + $0x94] sm:$0xf]
        %v740 = vld [vmem:[#allocation5 + $0x98] sm:$0xf]
        %v741 = vld [vmem:[#allocation5 + $0x9c] sm:$0xf]
        %v742 = vld [vmem:[#allocation5 + $0xa0] sm:$0xf]
        %v743 = vld [vmem:[#allocation5 + $0xa4] sm:$0xf]
        %v744 = vld [vmem:[#allocation5 + $0xa8] sm:$0xf]
        %v745 = vld [vmem:[#allocation5 + $0xac] sm:$0xf]
        %v746 = vld [vmem:[#allocation5 + $0xb0] sm:$0xf]
        %v747 = vld [vmem:[#allocation5 + $0xb4] sm:$0xf]
        %v748 = vld [vmem:[#allocation5 + $0xb8] sm:$0xf]
        %v749 = vld [vmem:[#allocation5 + $0xbc] sm:$0xf]
        %v750 = vld [vmem:[#allocation5 + $0xc0] sm:$0xf]
        %v751 = vld [vmem:[#allocation5 + $0xc4] sm:$0xf]
        %v752 = vld [vmem:[#allocation5 + $0xc8] sm:$0xf]
        %v753 = vld [vmem:[#allocation5 + $0xcc] sm:$0xf]
        %v754 = vld [vmem:[#allocation5 + $0xd0] sm:$0xf]
        %v755 = vld [vmem:[#allocation5 + $0xd4] sm:$0xf]
        %v756 = vld [vmem:[#allocation5 + $0xd8] sm:$0xf]
        %v757 = vld [vmem:[#allocation5 + $0xdc] sm:$0xf]
        %v758 = vld [vmem:[#allocation5 + $0xe0] sm:$0xf]
        %v759 = vld [vmem:[#allocation5 + $0xe4] sm:$0xf]
        %v760 = vld [vmem:[#allocation5 + $0xe8] sm:$0xf]
        %v761 = vld [vmem:[#allocation5 + $0xec] sm:$0xf]
        %v762 = vld [vmem:[#allocation5 + $0xf0] sm:$0xf]
        %v763 = vld [vmem:[#allocation5 + $0xf4] sm:$0xf]
        %v764 = vld [vmem:[#allocation5 + $0xf8] sm:$0xf]
        %v765 = vld [vmem:[#allocation5 + $0xfc] sm:$0xf]
        %v766 = vld [vmem:[#allocation5 + $0x100] sm:$0xf]
        %v767 = vld [vmem:[#allocation5 + $0x104] sm:$0xf]
        %v768 = vld [vmem:[#allocation5 + $0x108] sm:$0xf]
        %v769 = vld [vmem:[#allocation5 + $0x10c] sm:$0xf]
        %v770 = vld [vmem:[#allocation5 + $0x110] sm:$0xf]
        %v771 = vld [vmem:[#allocation5 + $0x114] sm:$0xf]
        %v772 = vld [vmem:[#allocation5 + $0x118] sm:$0xf]
        %v773 = vld [vmem:[#allocation5 + $0x11c] sm:$0xf]
        %v774 = vld [vmem:[#allocation5 + $0x120] sm:$0xf]
        %v775 = vld [vmem:[#allocation5 + $0x124] sm:$0xf]
        %v776 = vld [vmem:[#allocation5 + $0x128] sm:$0xf]
        %v777 = vld [vmem:[#allocation5 + $0x12c] sm:$0xf]
        %v778 = vld [vmem:[#allocation5 + $0x130] sm:$0xf]
        %v779 = vld [vmem:[#allocation5 + $0x134] sm:$0xf]
        %v780 = vld [vmem:[#allocation5 + $0x138] sm:$0xf]
        %v781 = vld [vmem:[#allocation5 + $0x13c] sm:$0xf]
        %v782 = vld [vmem:[#allocation5 + $0x140] sm:$0xf]
        %v783 = vld [vmem:[#allocation5 + $0x144] sm:$0xf]
        %v784 = vld [vmem:[#allocation5 + $0x148] sm:$0xf]
        %v785 = vld [vmem:[#allocation5 + $0x14c] sm:$0xf]
        %v786 = vld [vmem:[#allocation5 + $0x150] sm:$0xf]
        %v787 = vld [vmem:[#allocation5 + $0x154] sm:$0xf]
        %v788 = vld [vmem:[#allocation5 + $0x158] sm:$0xf]
        %v789 = vld [vmem:[#allocation5 + $0x15c] sm:$0xf]
        %v790 = vld [vmem:[#allocation5 + $0x160] sm:$0xf]
        %v791 = vld [vmem:[#allocation5 + $0x164] sm:$0xf]
        %v792 = vld [vmem:[#allocation5 + $0x168] sm:$0xf]
        %v793 = vld [vmem:[#allocation5 + $0x16c] sm:$0xf]
        %v794 = vld [vmem:[#allocation5 + $0x170] sm:$0xf]
        %v795 = vld [vmem:[#allocation5 + $0x174] sm:$0xf]
        %v796 = vld [vmem:[#allocation5 + $0x178] sm:$0xf]
        %v797 = vld [vmem:[#allocation5 + $0x17c] sm:$0xf]
        %v798 = vld [vmem:[#allocation5 + $0x180] sm:$0xf]
        %v799 = vld [vmem:[#allocation5 + $0x184] sm:$0xf]
        %v800 = vld [vmem:[#allocation5 + $0x188] sm:$0xf]
        %v801 = vld [vmem:[#allocation5 + $0x18c] sm:$0xf]
        %v802 = vld [vmem:[#allocation5 + $0x190] sm:$0xf]
        %v803 = vld [vmem:[#allocation5 + $0x194] sm:$0xf]
        %v804 = vld [vmem:[#allocation5 + $0x198] sm:$0xf]
        %v805 = vld [vmem:[#allocation5 + $0x19c] sm:$0xf]
        %v806 = vld [vmem:[#allocation5 + $0x1a0] sm:$0xf]
        %v807 = vld [vmem:[#allocation5 + $0x1a4] sm:$0xf]
        %v808 = vld [vmem:[#allocation5 + $0x1a8] sm:$0xf]
        %v809 = vld [vmem:[#allocation5 + $0x1ac] sm:$0xf]
        %v810 = vld [vmem:[#allocation5 + $0x1b0] sm:$0xf]
        %v811 = vld [vmem:[#allocation5 + $0x1b4] sm:$0xf]
        %v812 = vld [vmem:[#allocation5 + $0x1b8] sm:$0xf]
        %v813 = vld [vmem:[#allocation5 + $0x1bc] sm:$0xf]
        %v814 = vld [vmem:[#allocation5 + $0x1c0] sm:$0xf]
        %v815 = vld [vmem:[#allocation5 + $0x1c4] sm:$0xf]
        %v816 = vld [vmem:[#allocation5 + $0x1c8] sm:$0xf]
        %v817 = vld [vmem:[#allocation5 + $0x1cc] sm:$0xf]
        %v818 = vld [vmem:[#allocation5 + $0x1d0] sm:$0xf]
        %v819 = vld [vmem:[#allocation5 + $0x1d4] sm:$0xf]
        %v820 = vld [vmem:[#allocation5 + $0x1d8] sm:$0xf]
        %v821 = vld [vmem:[#allocation5 + $0x1dc] sm:$0xf]
        %v822 = vld [vmem:[#allocation5 + $0x1e0] sm:$0xf]
        %v823 = vld [vmem:[#allocation5 + $0x1e4] sm:$0xf]
        %v824 = vld [vmem:[#allocation5 + $0x1e8] sm:$0xf]
        %v825 = vld [vmem:[#allocation5 + $0x1ec] sm:$0xf]
        %v826 = vld [vmem:[#allocation5 + $0x1f0] sm:$0xf]
        %v827 = vld [vmem:[#allocation5 + $0x1f4] sm:$0xf]
        %v828 = vld [vmem:[#allocation5 + $0x1f8] sm:$0xf]
        %v829 = vld [vmem:[#allocation5 + $0x1fc] sm:$0xf]
        %v830 = vld [vmem:[#allocation5 + $0x200] sm:$0xf]
        %v831 = vld [vmem:[#allocation5 + $0x204] sm:$0xf]
        %v832 = vld [vmem:[#allocation5 + $0x208] sm:$0xf]
        %v833 = vld [vmem:[#allocation5 + $0x20c] sm:$0xf]
        %v834 = vld [vmem:[#allocation5 + $0x210] sm:$0xf]
        %v835 = vld [vmem:[#allocation5 + $0x214] sm:$0xf]
        %v836 = vld [vmem:[#allocation5 + $0x218] sm:$0xf]
        %v837 = vld [vmem:[#allocation5 + $0x21c] sm:$0xf]
        %v838 = vld [vmem:[#allocation5 + $0x220] sm:$0xf]
        %v839 = vld [vmem:[#allocation5 + $0x224] sm:$0xf]
        %v840 = vld [vmem:[#allocation5 + $0x228] sm:$0xf]
        %v841 = vld [vmem:[#allocation5 + $0x22c] sm:$0xf]
        %v842 = vld [vmem:[#allocation5 + $0x230] sm:$0xf]
        %v843 = vld [vmem:[#allocation5 + $0x234] sm:$0xf]
        %v844 = vld [vmem:[#allocation5 + $0x238] sm:$0xf]
        %v845 = vld [vmem:[#allocation5 + $0x23c] sm:$0xf]
        %v846 = vld [vmem:[#allocation5 + $0x240] sm:$0xf]
        %v847 = vld [vmem:[#allocation5 + $0x244] sm:$0xf]
        %v848 = vld [vmem:[#allocation5 + $0x248] sm:$0xf]
        %v849 = vld [vmem:[#allocation5 + $0x24c] sm:$0xf]
        %v850 = vld [vmem:[#allocation5 + $0x250] sm:$0xf]
        %v851 = vld [vmem:[#allocation5 + $0x254] sm:$0xf]
        %v852 = vld [vmem:[#allocation5 + $0x258] sm:$0xf]
        %v853 = vld [vmem:[#allocation5 + $0x25c] sm:$0xf]
        %v854 = vld [vmem:[#allocation5 + $0x260] sm:$0xf]
        %v855 = vld [vmem:[#allocation5 + $0x264] sm:$0xf]
        %v856 = vld [vmem:[#allocation5 + $0x268] sm:$0xf]
        %v857 = vld [vmem:[#allocation5 + $0x26c] sm:$0xf]
        %v858 = vld [vmem:[#allocation5 + $0x270] sm:$0xf]
        %v859 = vld [vmem:[#allocation5 + $0x274] sm:$0xf]
        %v860 = vld [vmem:[#allocation5 + $0x278] sm:$0xf]
        %v861 = vld [vmem:[#allocation5 + $0x27c] sm:$0xf]
        %v862 = vld [vmem:[#allocation5 + $0x280] sm:$0xf]
        %v863 = vld [vmem:[#allocation5 + $0x284] sm:$0xf]
        %v864 = vld [vmem:[#allocation5 + $0x288] sm:$0xf]
        %v865 = vld [vmem:[#allocation5 + $0x28c] sm:$0xf]
        %v866 = vld [vmem:[#allocation5 + $0x290] sm:$0xf]
        %v867 = vld [vmem:[#allocation5 + $0x294] sm:$0xf]
        %v868 = vld [vmem:[#allocation5 + $0x298] sm:$0xf]
        %v869 = vld [vmem:[#allocation5 + $0x29c] sm:$0xf]
        %v870 = vld [vmem:[#allocation5 + $0x2a0] sm:$0xf]
        %v871 = vld [vmem:[#allocation5 + $0x2a4] sm:$0xf]
        %v872 = vld [vmem:[#allocation5 + $0x2a8] sm:$0xf]
        %v873 = vld [vmem:[#allocation5 + $0x2ac] sm:$0xf]
        %v874 = vld [vmem:[#allocation5 + $0x2b0] sm:$0xf]
        %v875 = vld [vmem:[#allocation5 + $0x2b4] sm:$0xf]
        %v876 = vld [vmem:[#allocation5 + $0x2b8] sm:$0xf]
        %v877 = vld [vmem:[#allocation5 + $0x2bc] sm:$0xf]
        %v878 = vld [vmem:[#allocation5 + $0x2c0] sm:$0xf]
        %v879 = vld [vmem:[#allocation5 + $0x2c4] sm:$0xf]
        %v880 = vld [vmem:[#allocation5 + $0x2c8] sm:$0xf]
        %v881 = vld [vmem:[#allocation5 + $0x2cc] sm:$0xf]
        %v882 = vld [vmem:[#allocation5 + $0x2d0] sm:$0xf]
        %v883 = vld [vmem:[#allocation5 + $0x2d4] sm:$0xf]
        %v884 = vld [vmem:[#allocation5 + $0x2d8] sm:$0xf]
        %v885 = vld [vmem:[#allocation5 + $0x2dc] sm:$0xf]
        %v886 = vld [vmem:[#allocation5 + $0x2e0] sm:$0xf]
        %v887 = vld [vmem:[#allocation5 + $0x2e4] sm:$0xf]
        %v888 = vld [vmem:[#allocation5 + $0x2e8] sm:$0xf]
        %v889 = vld [vmem:[#allocation5 + $0x2ec] sm:$0xf]
        %v890 = vld [vmem:[#allocation5 + $0x2f0] sm:$0xf]
        %v891 = vld [vmem:[#allocation5 + $0x2f4] sm:$0xf]
        %v892 = vld [vmem:[#allocation5 + $0x2f8] sm:$0xf]
        %v893 = vld [vmem:[#allocation5 + $0x2fc] sm:$0xf]
        %v894 = vld [vmem:[#allocation5 + $0x300] sm:$0xf]
        %v895 = vld [vmem:[#allocation5 + $0x304] sm:$0xf]
        %v896 = vld [vmem:[#allocation5 + $0x308] sm:$0xf]
        %v897 = vld [vmem:[#allocation5 + $0x30c] sm:$0xf]
        %v898 = vld [vmem:[#allocation5 + $0x310] sm:$0xf]
        %v899 = vld [vmem:[#allocation5 + $0x314] sm:$0xf]
        %v900 = vld [vmem:[#allocation5 + $0x318] sm:$0xf]
        %v901 = vld [vmem:[#allocation5 + $0x31c] sm:$0xf]
        %v902 = vld [vmem:[#allocation5 + $0x320] sm:$0xf]
        %v903 = vld [vmem:[#allocation5 + $0x324] sm:$0xf]
        %v904 = vld [vmem:[#allocation5 + $0x328] sm:$0xf]
        %v905 = vld [vmem:[#allocation5 + $0x32c] sm:$0xf]
        %v906 = vld [vmem:[#allocation5 + $0x330] sm:$0xf]
        %v907 = vld [vmem:[#allocation5 + $0x334] sm:$0xf]
        %v908 = vld [vmem:[#allocation5 + $0x338] sm:$0xf]
        %v909 = vld [vmem:[#allocation5 + $0x33c] sm:$0xf]
        %v910 = vld [vmem:[#allocation5 + $0x340] sm:$0xf]
        %v911 = vld [vmem:[#allocation5 + $0x344] sm:$0xf]
        %v912 = vld [vmem:[#allocation5 + $0x348] sm:$0xf]
        %v913 = vld [vmem:[#allocation5 + $0x34c] sm:$0xf]
        %v914 = vld [vmem:[#allocation5 + $0x350] sm:$0xf]
        %v915 = vld [vmem:[#allocation5 + $0x354] sm:$0xf]
        %v916 = vld [vmem:[#allocation5 + $0x358] sm:$0xf]
        %v917 = vld [vmem:[#allocation5 + $0x35c] sm:$0xf]
        %v918 = vld [vmem:[#allocation5 + $0x360] sm:$0xf]
        %v919 = vld [vmem:[#allocation5 + $0x364] sm:$0xf]
        %v920 = vld [vmem:[#allocation5 + $0x368] sm:$0xf]
        %v921 = vld [vmem:[#allocation5 + $0x36c] sm:$0xf]
        %v922 = vld [vmem:[#allocation5 + $0x370] sm:$0xf]
        %v923 = vld [vmem:[#allocation5 + $0x374] sm:$0xf]
        %v924 = vld [vmem:[#allocation5 + $0x378] sm:$0xf]
        %v925 = vld [vmem:[#allocation5 + $0x37c] sm:$0xf]
        %v926 = vld [vmem:[#allocation5 + $0x380] sm:$0xf]
        %v927 = vld [vmem:[#allocation5 + $0x384] sm:$0xf]
        %v928 = vld [vmem:[#allocation5 + $0x388] sm:$0xf]
        %v929 = vld [vmem:[#allocation5 + $0x38c] sm:$0xf]
        %v930 = vld [vmem:[#allocation5 + $0x390] sm:$0xf]
        %v931 = vld [vmem:[#allocation5 + $0x394] sm:$0xf]
        %v932 = vld [vmem:[#allocation5 + $0x398] sm:$0xf]
        %v933 = vld [vmem:[#allocation5 + $0x39c] sm:$0xf]
        %v934 = vld [vmem:[#allocation5 + $0x3a0] sm:$0xf]
        %v935 = vld [vmem:[#allocation5 + $0x3a4] sm:$0xf]
        %v936 = vld [vmem:[#allocation5 + $0x3a8] sm:$0xf]
        %v937 = vld [vmem:[#allocation5 + $0x3ac] sm:$0xf]
        %v938 = vld [vmem:[#allocation5 + $0x3b0] sm:$0xf]
        %v939 = vld [vmem:[#allocation5 + $0x3b4] sm:$0xf]
        %v940 = vld [vmem:[#allocation5 + $0x3b8] sm:$0xf]
        %v941 = vld [vmem:[#allocation5 + $0x3bc] sm:$0xf]
        %v942 = vld [vmem:[#allocation5 + $0x3c0] sm:$0xf]
        %v943 = vld [vmem:[#allocation5 + $0x3c4] sm:$0xf]
        %v944 = vld [vmem:[#allocation5 + $0x3c8] sm:$0xf]
        %v945 = vld [vmem:[#allocation5 + $0x3cc] sm:$0xf]
        %v946 = vld [vmem:[#allocation5 + $0x3d0] sm:$0xf]
        %v947 = vld [vmem:[#allocation5 + $0x3d4] sm:$0xf]
        %v948 = vld [vmem:[#allocation5 + $0x3d8] sm:$0xf]
        %v949 = vld [vmem:[#allocation5 + $0x3dc] sm:$0xf]
        %v950 = vld [vmem:[#allocation5 + $0x3e0] sm:$0xf]
        %v951 = vld [vmem:[#allocation5 + $0x3e4] sm:$0xf]
        %v952 = vld [vmem:[#allocation5 + $0x3e8] sm:$0xf]
        %v953 = vld [vmem:[#allocation5 + $0x3ec] sm:$0xf]
        %v954 = vld [vmem:[#allocation5 + $0x3f0] sm:$0xf]
        %v955 = vld [vmem:[#allocation5 + $0x3f4] sm:$0xf]
        %v956 = vld [vmem:[#allocation5 + $0x3f8] sm:$0xf]
        %v957 = vld [vmem:[#allocation5 + $0x3fc] sm:$0xf]
        %v958 = vld [vmem:[#allocation5 + $0x400] sm:$0xf]
        %v959 = vld [vmem:[#allocation5 + $0x404] sm:$0xf]
        %v960 = vld [vmem:[#allocation5 + $0x408] sm:$0xf]
        %v961 = vld [vmem:[#allocation5 + $0x40c] sm:$0xf]
        %v962 = vld [vmem:[#allocation5 + $0x410] sm:$0xf]
        %v963 = vld [vmem:[#allocation5 + $0x414] sm:$0xf]
        %v964 = vld [vmem:[#allocation5 + $0x418] sm:$0xf]
        %v965 = vld [vmem:[#allocation5 + $0x41c] sm:$0xf]
        %v966 = vld [vmem:[#allocation5 + $0x420] sm:$0xf]
        %v967 = vld [vmem:[#allocation5 + $0x424] sm:$0xf]
        %v968 = vld [vmem:[#allocation5 + $0x428] sm:$0xf]
        %v969 = vld [vmem:[#allocation5 + $0x42c] sm:$0xf]
        %v970 = vld [vmem:[#allocation5 + $0x430] sm:$0xf]
        %v971 = vld [vmem:[#allocation5 + $0x434] sm:$0xf]
        %v972 = vld [vmem:[#allocation5 + $0x438] sm:$0xf]
        %v973 = vld [vmem:[#allocation5 + $0x43c] sm:$0xf]
        %v974 = vld [vmem:[#allocation5 + $0x440] sm:$0xf]
        %v975 = vld [vmem:[#allocation5 + $0x444] sm:$0xf]
        %v976 = vld [vmem:[#allocation5 + $0x448] sm:$0xf]
        %v977 = vld [vmem:[#allocation5 + $0x44c] sm:$0xf]
        %v978 = vld [vmem:[#allocation5 + $0x450] sm:$0xf]
        %v979 = vld [vmem:[#allocation5 + $0x454] sm:$0xf]
        %v980 = vld [vmem:[#allocation5 + $0x458] sm:$0xf]
        %v981 = vld [vmem:[#allocation5 + $0x45c] sm:$0xf]
        %v982 = vld [vmem:[#allocation5 + $0x460] sm:$0xf]
        %v983 = vld [vmem:[#allocation5 + $0x464] sm:$0xf]
        %v984 = vld [vmem:[#allocation5 + $0x468] sm:$0xf]
        %v985 = vld [vmem:[#allocation5 + $0x46c] sm:$0xf]
        %v986 = vld [vmem:[#allocation5 + $0x470] sm:$0xf]
        %v987 = vld [vmem:[#allocation5 + $0x474] sm:$0xf]
        %v988 = vld [vmem:[#allocation5 + $0x478] sm:$0xf]
        %v989 = vld [vmem:[#allocation5 + $0x47c] sm:$0xf]
        %v990 = vld [vmem:[#allocation5 + $0x480] sm:$0xf]
        %v991 = vld [vmem:[#allocation5 + $0x484] sm:$0xf]
        %v992 = vld [vmem:[#allocation5 + $0x488] sm:$0xf]
        %v993 = vld [vmem:[#allocation5 + $0x48c] sm:$0xf]
        %v994 = vld [vmem:[#allocation5 + $0x490] sm:$0xf]
        %v995 = vld [vmem:[#allocation5 + $0x494] sm:$0xf]
        %v996 = vld [vmem:[#allocation5 + $0x498] sm:$0xf]
        %v997 = vld [vmem:[#allocation5 + $0x49c] sm:$0xf]
        %v998 = vld [vmem:[#allocation5 + $0x4a0] sm:$0xf]
        %v999 = vld [vmem:[#allocation5 + $0x4a4] sm:$0xf]
        %v1000 = vld [vmem:[#allocation5 + $0x4a8] sm:$0xf]
        %v1001 = vld [vmem:[#allocation5 + $0x4ac] sm:$0xf]
        %v1002 = vld [vmem:[#allocation5 + $0x4b0] sm:$0xf]
        %v1003 = vld [vmem:[#allocation5 + $0x4b4] sm:$0xf]
        %v1004 = vld [vmem:[#allocation5 + $0x4b8] sm:$0xf]
        %v1005 = vld [vmem:[#allocation5 + $0x4bc] sm:$0xf]
        %v1006 = vld [vmem:[%s2] sm:$0x1]
        %v1008 = vlaneseq
        %v1009 = vshrl.u32 %v1008, 7
        %v1010 = vsub.s32 0, %v1009
        %v1011 = vrot.slane %v1006, %v1010
        %v1317 = vunpack.c.l.b16 %v702
        %v1318 = vunpack.c.l.b16 %v703
        %v1319 = vunpack.c.l.b16 %v704
        %v1320 = vunpack.c.l.b16 %v705
        %v1321 = vunpack.c.l.b16 %v706
        %v1322 = vunpack.c.l.b16 %v707
        %v1323 = vunpack.c.l.b16 %v708
        %v1324 = vunpack.c.l.b16 %v709
        %v1325 = vunpack.c.l.b16 %v710
        %v1326 = vunpack.c.l.b16 %v711
        %v1327 = vunpack.c.l.b16 %v712
        %v1328 = vunpack.c.l.b16 %v713
        %v1329 = vunpack.c.l.b16 %v714
        %v1330 = vunpack.c.l.b16 %v715
        %v1331 = vunpack.c.l.b16 %v716
        %v1332 = vunpack.c.l.b16 %v717
        %v1333 = vunpack.c.l.b16 %v718
        %v1334 = vunpack.c.l.b16 %v719
        %v1335 = vunpack.c.l.b16 %v720
        %v1336 = vunpack.c.l.b16 %v721
        %v1337 = vunpack.c.l.b16 %v722
        %v1338 = vunpack.c.l.b16 %v723
        %v1339 = vunpack.c.l.b16 %v724
        %v1340 = vunpack.c.l.b16 %v725
        %v1341 = vunpack.c.l.b16 %v726
        %v1342 = vunpack.c.l.b16 %v727
        %v1343 = vunpack.c.l.b16 %v728
        %v1344 = vunpack.c.l.b16 %v729
        %v1345 = vunpack.c.l.b16 %v730
        %v1346 = vunpack.c.l.b16 %v731
        %v1347 = vunpack.c.l.b16 %v732
        %v1348 = vunpack.c.l.b16 %v733
        %v1349 = vunpack.c.l.b16 %v734
        %v1350 = vunpack.c.l.b16 %v735
        %v1351 = vunpack.c.l.b16 %v736
        %v1352 = vunpack.c.l.b16 %v737
        %v1353 = vunpack.c.l.b16 %v738
        %v1354 = vunpack.c.l.b16 %v739
        %v1355 = vunpack.c.l.b16 %v740
        %v1356 = vunpack.c.l.b16 %v741
        %v1357 = vunpack.c.l.b16 %v742
        %v1358 = vunpack.c.l.b16 %v743
        %v1359 = vunpack.c.l.b16 %v744
        %v1360 = vunpack.c.l.b16 %v745
        %v1361 = vunpack.c.l.b16 %v746
        %v1362 = vunpack.c.l.b16 %v747
        %v1363 = vunpack.c.l.b16 %v748
        %v1364 = vunpack.c.l.b16 %v749
        %v1365 = vunpack.c.l.b16 %v750
        %v1366 = vunpack.c.l.b16 %v751
        %v1367 = vunpack.c.l.b16 %v752
        %v1368 = vunpack.c.l.b16 %v753
        %v1369 = vunpack.c.l.b16 %v754
        %v1370 = vunpack.c.l.b16 %v755
        %v1371 = vunpack.c.l.b16 %v756
        %v1372 = vunpack.c.l.b16 %v757
        %v1373 = vunpack.c.l.b16 %v758
        %v1374 = vunpack.c.l.b16 %v759
        %v1375 = vunpack.c.l.b16 %v760
        %v1376 = vunpack.c.l.b16 %v761
        %v1377 = vunpack.c.l.b16 %v762
        %v1378 = vunpack.c.l.b16 %v763
        %v1379 = vunpack.c.l.b16 %v764
        %v1380 = vunpack.c.l.b16 %v765
        %v1381 = vunpack.c.l.b16 %v766
        %v1382 = vunpack.c.l.b16 %v767
        %v1383 = vunpack.c.l.b16 %v768
        %v1384 = vunpack.c.l.b16 %v769
        %v1385 = vunpack.c.l.b16 %v770
        %v1386 = vunpack.c.l.b16 %v771
        %v1387 = vunpack.c.l.b16 %v772
        %v1388 = vunpack.c.l.b16 %v773
        %v1389 = vunpack.c.l.b16 %v774
        %v1390 = vunpack.c.l.b16 %v775
        %v1391 = vunpack.c.l.b16 %v776
        %v1392 = vunpack.c.l.b16 %v777
        %v1393 = vunpack.c.l.b16 %v778
        %v1394 = vunpack.c.l.b16 %v779
        %v1395 = vunpack.c.l.b16 %v780
        %v1396 = vunpack.c.l.b16 %v781
        %v1397 = vunpack.c.l.b16 %v782
        %v1398 = vunpack.c.l.b16 %v783
        %v1399 = vunpack.c.l.b16 %v784
        %v1400 = vunpack.c.l.b16 %v785
        %v1401 = vunpack.c.l.b16 %v786
        %v1402 = vunpack.c.l.b16 %v787
        %v1403 = vunpack.c.l.b16 %v788
        %v1404 = vunpack.c.l.b16 %v789
        %v1405 = vunpack.c.l.b16 %v790
        %v1406 = vunpack.c.l.b16 %v791
        %v1407 = vunpack.c.l.b16 %v792
        %v1408 = vunpack.c.l.b16 %v793
        %v1409 = vunpack.c.l.b16 %v794
        %v1410 = vunpack.c.l.b16 %v795
        %v1411 = vunpack.c.l.b16 %v796
        %v1412 = vunpack.c.l.b16 %v797
        %v1413 = vunpack.c.l.b16 %v798
        %v1414 = vunpack.c.l.b16 %v799
        %v1415 = vunpack.c.l.b16 %v800
        %v1416 = vunpack.c.l.b16 %v801
        %v1417 = vunpack.c.l.b16 %v802
        %v1418 = vunpack.c.l.b16 %v803
        %v1419 = vunpack.c.l.b16 %v804
        %v1420 = vunpack.c.l.b16 %v805
        %v1421 = vunpack.c.l.b16 %v806
        %v1422 = vunpack.c.l.b16 %v807
        %v1423 = vunpack.c.l.b16 %v808
        %v1424 = vunpack.c.l.b16 %v809
        %v1425 = vunpack.c.l.b16 %v810
        %v1426 = vunpack.c.l.b16 %v811
        %v1427 = vunpack.c.l.b16 %v812
        %v1428 = vunpack.c.l.b16 %v813
        %v1429 = vunpack.c.l.b16 %v814
        %v1430 = vunpack.c.l.b16 %v815
        %v1431 = vunpack.c.l.b16 %v816
        %v1432 = vunpack.c.l.b16 %v817
        %v1433 = vunpack.c.l.b16 %v818
        %v1434 = vunpack.c.l.b16 %v819
        %v1435 = vunpack.c.l.b16 %v820
        %v1436 = vunpack.c.l.b16 %v821
        %v1437 = vunpack.c.l.b16 %v822
        %v1438 = vunpack.c.l.b16 %v823
        %v1439 = vunpack.c.l.b16 %v824
        %v1440 = vunpack.c.l.b16 %v825
        %v1441 = vunpack.c.l.b16 %v826
        %v1442 = vunpack.c.l.b16 %v827
        %v1443 = vunpack.c.l.b16 %v828
        %v1444 = vunpack.c.l.b16 %v829
        %v1445 = vunpack.c.l.b16 %v830
        %v1446 = vunpack.c.l.b16 %v831
        %v1447 = vunpack.c.l.b16 %v832
        %v1448 = vunpack.c.l.b16 %v833
        %v1449 = vunpack.c.l.b16 %v834
        %v1450 = vunpack.c.l.b16 %v835
        %v1451 = vunpack.c.l.b16 %v836
        %v1452 = vunpack.c.l.b16 %v837
        %v1453 = vunpack.c.l.b16 %v838
        %v1454 = vunpack.c.l.b16 %v839
        %v1455 = vunpack.c.l.b16 %v840
        %v1456 = vunpack.c.l.b16 %v841
        %v1457 = vunpack.c.l.b16 %v842
        %v1458 = vunpack.c.l.b16 %v843
        %v1459 = vunpack.c.l.b16 %v844
        %v1460 = vunpack.c.l.b16 %v845
        %v1461 = vunpack.c.l.b16 %v846
        %v1462 = vunpack.c.l.b16 %v847
        %v1463 = vunpack.c.l.b16 %v848
        %v1464 = vunpack.c.l.b16 %v849
        %v1465 = vunpack.c.l.b16 %v850
        %v1466 = vunpack.c.l.b16 %v851
        %v1467 = vunpack.c.l.b16 %v852
        %v1468 = vunpack.c.l.b16 %v853
        %v1469 = vunpack.c.l.b16 %v854
        %v1470 = vunpack.c.l.b16 %v855
        %v1471 = vunpack.c.l.b16 %v856
        %v1472 = vunpack.c.l.b16 %v857
        %v1473 = vunpack.c.l.b16 %v858
        %v1474 = vunpack.c.l.b16 %v859
        %v1475 = vunpack.c.l.b16 %v860
        %v1476 = vunpack.c.l.b16 %v861
        %v1477 = vunpack.c.l.b16 %v862
        %v1478 = vunpack.c.l.b16 %v863
        %v1479 = vunpack.c.l.b16 %v864
        %v1480 = vunpack.c.l.b16 %v865
        %v1481 = vunpack.c.l.b16 %v866
        %v1482 = vunpack.c.l.b16 %v867
        %v1483 = vunpack.c.l.b16 %v868
        %v1484 = vunpack.c.l.b16 %v869
        %v1485 = vunpack.c.l.b16 %v870
        %v1486 = vunpack.c.l.b16 %v871
        %v1487 = vunpack.c.l.b16 %v872
        %v1488 = vunpack.c.l.b16 %v873
        %v1489 = vunpack.c.l.b16 %v874
        %v1490 = vunpack.c.l.b16 %v875
        %v1491 = vunpack.c.l.b16 %v876
        %v1492 = vunpack.c.l.b16 %v877
        %v1493 = vunpack.c.l.b16 %v878
        %v1494 = vunpack.c.l.b16 %v879
        %v1495 = vunpack.c.l.b16 %v880
        %v1496 = vunpack.c.l.b16 %v881
        %v1497 = vunpack.c.l.b16 %v882
        %v1498 = vunpack.c.l.b16 %v883
        %v1499 = vunpack.c.l.b16 %v884
        %v1500 = vunpack.c.l.b16 %v885
        %v1501 = vunpack.c.l.b16 %v886
        %v1502 = vunpack.c.l.b16 %v887
        %v1503 = vunpack.c.l.b16 %v888
        %v1504 = vunpack.c.l.b16 %v889
        %v1505 = vunpack.c.l.b16 %v890
        %v1506 = vunpack.c.l.b16 %v891
        %v1507 = vunpack.c.l.b16 %v892
        %v1508 = vunpack.c.l.b16 %v893
        %v1509 = vunpack.c.l.b16 %v894
        %v1510 = vunpack.c.l.b16 %v895
        %v1511 = vunpack.c.l.b16 %v896
        %v1512 = vunpack.c.l.b16 %v897
        %v1513 = vunpack.c.l.b16 %v898
        %v1514 = vunpack.c.l.b16 %v899
        %v1515 = vunpack.c.l.b16 %v900
        %v1516 = vunpack.c.l.b16 %v901
        %v1517 = vunpack.c.l.b16 %v902
        %v1518 = vunpack.c.l.b16 %v903
        %v1519 = vunpack.c.l.b16 %v904
        %v1520 = vunpack.c.l.b16 %v905
        %v1521 = vunpack.c.l.b16 %v906
        %v1522 = vunpack.c.l.b16 %v907
        %v1523 = vunpack.c.l.b16 %v908
        %v1524 = vunpack.c.l.b16 %v909
        %v1525 = vunpack.c.l.b16 %v910
        %v1526 = vunpack.c.l.b16 %v911
        %v1527 = vunpack.c.l.b16 %v912
        %v1528 = vunpack.c.l.b16 %v913
        %v1529 = vunpack.c.l.b16 %v914
        %v1530 = vunpack.c.l.b16 %v915
        %v1531 = vunpack.c.l.b16 %v916
        %v1532 = vunpack.c.l.b16 %v917
        %v1533 = vunpack.c.l.b16 %v918
        %v1534 = vunpack.c.l.b16 %v919
        %v1535 = vunpack.c.l.b16 %v920
        %v1536 = vunpack.c.l.b16 %v921
        %v1537 = vunpack.c.l.b16 %v922
        %v1538 = vunpack.c.l.b16 %v923
        %v1539 = vunpack.c.l.b16 %v924
        %v1540 = vunpack.c.l.b16 %v925
        %v1541 = vunpack.c.l.b16 %v926
        %v1542 = vunpack.c.l.b16 %v927
        %v1543 = vunpack.c.l.b16 %v928
        %v1544 = vunpack.c.l.b16 %v929
        %v1545 = vunpack.c.l.b16 %v930
        %v1546 = vunpack.c.l.b16 %v931
        %v1547 = vunpack.c.l.b16 %v932
        %v1548 = vunpack.c.l.b16 %v933
        %v1549 = vunpack.c.l.b16 %v934
        %v1550 = vunpack.c.l.b16 %v935
        %v1551 = vunpack.c.l.b16 %v936
        %v1552 = vunpack.c.l.b16 %v937
        %v1553 = vunpack.c.l.b16 %v938
        %v1554 = vunpack.c.l.b16 %v939
        %v1555 = vunpack.c.l.b16 %v940
        %v1556 = vunpack.c.l.b16 %v941
        %v1557 = vunpack.c.l.b16 %v942
        %v1558 = vunpack.c.l.b16 %v943
        %v1559 = vunpack.c.l.b16 %v944
        %v1560 = vunpack.c.l.b16 %v945
        %v1561 = vunpack.c.l.b16 %v946
        %v1562 = vunpack.c.l.b16 %v947
        %v1563 = vunpack.c.l.b16 %v948
        %v1564 = vunpack.c.l.b16 %v949
        %v1565 = vunpack.c.l.b16 %v950
        %v1566 = vunpack.c.l.b16 %v951
        %v1567 = vunpack.c.l.b16 %v952
        %v1568 = vunpack.c.l.b16 %v953
        %v1569 = vunpack.c.l.b16 %v954
        %v1570 = vunpack.c.l.b16 %v955
        %v1571 = vunpack.c.l.b16 %v956
        %v1572 = vunpack.c.l.b16 %v957
        %v1573 = vunpack.c.l.b16 %v958
        %v1574 = vunpack.c.l.b16 %v959
        %v1575 = vunpack.c.l.b16 %v960
        %v1576 = vunpack.c.l.b16 %v961
        %v1577 = vunpack.c.l.b16 %v962
        %v1578 = vunpack.c.l.b16 %v963
        %v1579 = vunpack.c.l.b16 %v964
        %v1580 = vunpack.c.l.b16 %v965
        %v1581 = vunpack.c.l.b16 %v966
        %v1582 = vunpack.c.l.b16 %v967
        %v1583 = vunpack.c.l.b16 %v968
        %v1584 = vunpack.c.l.b16 %v969
        %v1585 = vunpack.c.l.b16 %v970
        %v1586 = vunpack.c.l.b16 %v971
        %v1587 = vunpack.c.l.b16 %v972
        %v1588 = vunpack.c.l.b16 %v973
        %v1589 = vunpack.c.l.b16 %v974
        %v1590 = vunpack.c.l.b16 %v975
        %v1591 = vunpack.c.l.b16 %v976
        %v1592 = vunpack.c.l.b16 %v977
        %v1593 = vunpack.c.l.b16 %v978
        %v1594 = vunpack.c.l.b16 %v979
        %v1595 = vunpack.c.l.b16 %v980
        %v1596 = vunpack.c.l.b16 %v981
        %v1597 = vunpack.c.l.b16 %v982
        %v1598 = vunpack.c.l.b16 %v983
        %v1599 = vunpack.c.l.b16 %v984
        %v1600 = vunpack.c.l.b16 %v985
        %v1601 = vunpack.c.l.b16 %v986
        %v1602 = vunpack.c.l.b16 %v987
        %v1603 = vunpack.c.l.b16 %v988
        %v1604 = vunpack.c.l.b16 %v989
        %v1605 = vunpack.c.l.b16 %v990
        %v1606 = vunpack.c.l.b16 %v991
        %v1607 = vunpack.c.l.b16 %v992
        %v1608 = vunpack.c.l.b16 %v993
        %v1609 = vunpack.c.l.b16 %v994
        %v1610 = vunpack.c.l.b16 %v995
        %v1611 = vunpack.c.l.b16 %v996
        %v1612 = vunpack.c.l.b16 %v997
        %v1613 = vunpack.c.l.b16 %v998
        %v1614 = vunpack.c.l.b16 %v999
        %v1615 = vunpack.c.l.b16 %v1000
        %v1616 = vunpack.c.l.b16 %v1001
        %v1617 = vunpack.c.l.b16 %v1002
        %v1618 = vunpack.c.l.b16 %v1003
        %v1619 = vunpack.c.l.b16 %v1004
        %v1620 = vunpack.c.l.b16 %v1005
        %v1621 = vpack.c.b16 %v1318, %v1317
        %v1622 = vpack.c.b16 %v1320, %v1319
        %v1623 = vpack.c.b16 %v1322, %v1321
        %v1624 = vpack.c.b16 %v1324, %v1323
        %v1625 = vpack.c.b16 %v1326, %v1325
        %v1626 = vpack.c.b16 %v1328, %v1327
        %v1627 = vpack.c.b16 %v1330, %v1329
        %v1628 = vpack.c.b16 %v1332, %v1331
        %v1629 = vpack.c.b16 %v1334, %v1333
        %v1630 = vpack.c.b16 %v1336, %v1335
        %v1631 = vpack.c.b16 %v1338, %v1337
        %v1632 = vpack.c.b16 %v1340, %v1339
        %v1633 = vpack.c.b16 %v1342, %v1341
        %v1634 = vpack.c.b16 %v1344, %v1343
        %v1635 = vpack.c.b16 %v1346, %v1345
        %v1636 = vpack.c.b16 %v1348, %v1347
        %v1637 = vpack.c.b16 %v1350, %v1349
        %v1638 = vpack.c.b16 %v1352, %v1351
        %v1639 = vpack.c.b16 %v1354, %v1353
        %v1640 = vpack.c.b16 %v1356, %v1355
        %v1641 = vpack.c.b16 %v1358, %v1357
        %v1642 = vpack.c.b16 %v1360, %v1359
        %v1643 = vpack.c.b16 %v1362, %v1361
        %v1644 = vpack.c.b16 %v1364, %v1363
        %v1645 = vpack.c.b16 %v1366, %v1365
        %v1646 = vpack.c.b16 %v1368, %v1367
        %v1647 = vpack.c.b16 %v1370, %v1369
        %v1648 = vpack.c.b16 %v1372, %v1371
        %v1649 = vpack.c.b16 %v1374, %v1373
        %v1650 = vpack.c.b16 %v1376, %v1375
        %v1651 = vpack.c.b16 %v1378, %v1377
        %v1652 = vpack.c.b16 %v1380, %v1379
        %v1653 = vpack.c.b16 %v1382, %v1381
        %v1654 = vpack.c.b16 %v1384, %v1383
        %v1655 = vpack.c.b16 %v1386, %v1385
        %v1656 = vpack.c.b16 %v1388, %v1387
        %v1657 = vpack.c.b16 %v1390, %v1389
        %v1658 = vpack.c.b16 %v1392, %v1391
        %v1659 = vpack.c.b16 %v1394, %v1393
        %v1660 = vpack.c.b16 %v1396, %v1395
        %v1661 = vpack.c.b16 %v1398, %v1397
        %v1662 = vpack.c.b16 %v1400, %v1399
        %v1663 = vpack.c.b16 %v1402, %v1401
        %v1664 = vpack.c.b16 %v1404, %v1403
        %v1665 = vpack.c.b16 %v1406, %v1405
        %v1666 = vpack.c.b16 %v1408, %v1407
        %v1667 = vpack.c.b16 %v1410, %v1409
        %v1668 = vpack.c.b16 %v1412, %v1411
        %v1669 = vpack.c.b16 %v1414, %v1413
        %v1670 = vpack.c.b16 %v1416, %v1415
        %v1671 = vpack.c.b16 %v1418, %v1417
        %v1672 = vpack.c.b16 %v1420, %v1419
        %v1673 = vpack.c.b16 %v1422, %v1421
        %v1674 = vpack.c.b16 %v1424, %v1423
        %v1675 = vpack.c.b16 %v1426, %v1425
        %v1676 = vpack.c.b16 %v1428, %v1427
        %v1677 = vpack.c.b16 %v1430, %v1429
        %v1678 = vpack.c.b16 %v1432, %v1431
        %v1679 = vpack.c.b16 %v1434, %v1433
        %v1680 = vpack.c.b16 %v1436, %v1435
        %v1681 = vpack.c.b16 %v1438, %v1437
        %v1682 = vpack.c.b16 %v1440, %v1439
        %v1683 = vpack.c.b16 %v1442, %v1441
        %v1684 = vpack.c.b16 %v1444, %v1443
        %v1685 = vpack.c.b16 %v1446, %v1445
        %v1686 = vpack.c.b16 %v1448, %v1447
        %v1687 = vpack.c.b16 %v1450, %v1449
        %v1688 = vpack.c.b16 %v1452, %v1451
        %v1689 = vpack.c.b16 %v1454, %v1453
        %v1690 = vpack.c.b16 %v1456, %v1455
        %v1691 = vpack.c.b16 %v1458, %v1457
        %v1692 = vpack.c.b16 %v1460, %v1459
        %v1693 = vpack.c.b16 %v1462, %v1461
        %v1694 = vpack.c.b16 %v1464, %v1463
        %v1695 = vpack.c.b16 %v1466, %v1465
        %v1696 = vpack.c.b16 %v1468, %v1467
        %v1697 = vpack.c.b16 %v1470, %v1469
        %v1698 = vpack.c.b16 %v1472, %v1471
        %v1699 = vpack.c.b16 %v1474, %v1473
        %v1700 = vpack.c.b16 %v1476, %v1475
        %v1701 = vpack.c.b16 %v1478, %v1477
        %v1702 = vpack.c.b16 %v1480, %v1479
        %v1703 = vpack.c.b16 %v1482, %v1481
        %v1704 = vpack.c.b16 %v1484, %v1483
        %v1705 = vpack.c.b16 %v1486, %v1485
        %v1706 = vpack.c.b16 %v1488, %v1487
        %v1707 = vpack.c.b16 %v1490, %v1489
        %v1708 = vpack.c.b16 %v1492, %v1491
        %v1709 = vpack.c.b16 %v1494, %v1493
        %v1710 = vpack.c.b16 %v1496, %v1495
        %v1711 = vpack.c.b16 %v1498, %v1497
        %v1712 = vpack.c.b16 %v1500, %v1499
        %v1713 = vpack.c.b16 %v1502, %v1501
        %v1714 = vpack.c.b16 %v1504, %v1503
        %v1715 = vpack.c.b16 %v1506, %v1505
        %v1716 = vpack.c.b16 %v1508, %v1507
        %v1717 = vpack.c.b16 %v1510, %v1509
        %v1718 = vpack.c.b16 %v1512, %v1511
        %v1719 = vpack.c.b16 %v1514, %v1513
        %v1720 = vpack.c.b16 %v1516, %v1515
        %v1721 = vpack.c.b16 %v1518, %v1517
        %v1722 = vpack.c.b16 %v1520, %v1519
        %v1723 = vpack.c.b16 %v1522, %v1521
        %v1724 = vpack.c.b16 %v1524, %v1523
        %v1725 = vpack.c.b16 %v1526, %v1525
        %v1726 = vpack.c.b16 %v1528, %v1527
        %v1727 = vpack.c.b16 %v1530, %v1529
        %v1728 = vpack.c.b16 %v1532, %v1531
        %v1729 = vpack.c.b16 %v1534, %v1533
        %v1730 = vpack.c.b16 %v1536, %v1535
        %v1731 = vpack.c.b16 %v1538, %v1537
        %v1732 = vpack.c.b16 %v1540, %v1539
        %v1733 = vpack.c.b16 %v1542, %v1541
        %v1734 = vpack.c.b16 %v1544, %v1543
        %v1735 = vpack.c.b16 %v1546, %v1545
        %v1736 = vpack.c.b16 %v1548, %v1547
        %v1737 = vpack.c.b16 %v1550, %v1549
        %v1738 = vpack.c.b16 %v1552, %v1551
        %v1739 = vpack.c.b16 %v1554, %v1553
        %v1740 = vpack.c.b16 %v1556, %v1555
        %v1741 = vpack.c.b16 %v1558, %v1557
        %v1742 = vpack.c.b16 %v1560, %v1559
        %v1743 = vpack.c.b16 %v1562, %v1561
        %v1744 = vpack.c.b16 %v1564, %v1563
        %v1745 = vpack.c.b16 %v1566, %v1565
        %v1746 = vpack.c.b16 %v1568, %v1567
        %v1747 = vpack.c.b16 %v1570, %v1569
        %v1748 = vpack.c.b16 %v1572, %v1571
        %v1749 = vpack.c.b16 %v1574, %v1573
        %v1750 = vpack.c.b16 %v1576, %v1575
        %v1751 = vpack.c.b16 %v1578, %v1577
        %v1752 = vpack.c.b16 %v1580, %v1579
        %v1753 = vpack.c.b16 %v1582, %v1581
        %v1754 = vpack.c.b16 %v1584, %v1583
        %v1755 = vpack.c.b16 %v1586, %v1585
        %v1756 = vpack.c.b16 %v1588, %v1587
        %v1757 = vpack.c.b16 %v1590, %v1589
        %v1758 = vpack.c.b16 %v1592, %v1591
        %v1759 = vpack.c.b16 %v1594, %v1593
        %v1760 = vpack.c.b16 %v1596, %v1595
        %v1761 = vpack.c.b16 %v1598, %v1597
        %v1762 = vpack.c.b16 %v1600, %v1599
        %v1763 = vpack.c.b16 %v1602, %v1601
        %v1764 = vpack.c.b16 %v1604, %v1603
        %v1765 = vpack.c.b16 %v1606, %v1605
        %v1766 = vpack.c.b16 %v1608, %v1607
        %v1767 = vpack.c.b16 %v1610, %v1609
        %v1768 = vpack.c.b16 %v1612, %v1611
        %v1769 = vpack.c.b16 %v1614, %v1613
        %v1770 = vpack.c.b16 %v1616, %v1615
        %v1771 = vpack.c.b16 %v1618, %v1617
        %v1772 = vpack.c.b16 %v1620, %v1619
        %1925 = vmatprep.subr.bf16.mxu0 0
        %1926 = vmatpush1.bf16.msra.mxu0 %v1628
        %1927 = vmatprep.subr.bf16.mxu0 0
        %1928 = vmatpush1.bf16.msra.mxu0 %v1627
        %1929 = vmatprep.subr.bf16.mxu0 0
        %1930 = vmatpush1.bf16.msra.mxu0 %v1626
        %1931 = vmatprep.subr.bf16.mxu0 0
        %1932 = vmatpush1.bf16.msra.mxu0 %v1625
        %1933 = vmatprep.subr.bf16.mxu0 0
        %1934 = vmatpush1.bf16.msra.mxu0 %v1624
        %1935 = vmatprep.subr.bf16.mxu0 0
        %1936 = vmatpush1.bf16.msra.mxu0 %v1623
        %1937 = vmatprep.subr.bf16.mxu0 0
        %1938 = vmatpush1.bf16.msra.mxu0 %v1622
        %1939 = vmatprep.subr.bf16.mxu0 0
        %1940 = vmatpush1.bf16.msra.mxu0 %v1621
        %1941 = vmatprep.subr.bf16.mxu0 0
        %1942 = vmatpush2.bf16.msra.mxu0 %v1636
        %1943 = vmatprep.subr.bf16.mxu0 0
        %1944 = vmatpush2.bf16.msra.mxu0 %v1635
        %1945 = vmatprep.subr.bf16.mxu0 0
        %1946 = vmatpush2.bf16.msra.mxu0 %v1634
        %1947 = vmatprep.subr.bf16.mxu0 0
        %1948 = vmatpush2.bf16.msra.mxu0 %v1633
        %1949 = vmatprep.subr.bf16.mxu0 0
        %1950 = vmatpush2.bf16.msra.mxu0 %v1632
        %1951 = vmatprep.subr.bf16.mxu0 0
        %1952 = vmatpush2.bf16.msra.mxu0 %v1631
        %1953 = vmatprep.subr.bf16.mxu0 0
        %1954 = vmatpush2.bf16.msra.mxu0 %v1630
        %1955 = vmatprep.subr.bf16.mxu0 0
        %1956 = vmatpush2.bf16.msra.mxu0 %v1629
        %1957 = vmatprep.mubr.bf16.mxu0 %v400
        %1958 = vmatmul.mubr.bf16.gmra.mxu0 %v386
        %v1959 = vpop.f32.mrf.mxu0
        %v1960 = vadd.f32 %v1011, %v1959
        %v1961 = vpop.f32.mrf.mxu0
        %v1962 = vpop.f32.mrf.mxu0
        %v1963 = vadd.f32 %v1011, %v1962
        %v1964 = vpop.f32.mrf.mxu0
        %1965 = vmatprep.mubr.bf16.mxu0 %v408
        %1966 = vmatmul.mubr.bf16.gmra.mxu0 %v360
        %v1967 = vpop.f32.mrf.mxu0
        %v1968 = vadd.f32 %v1011, %v1967
        %v1969 = vpop.f32.mrf.mxu0
        %v1970 = vpop.f32.mrf.mxu0
        %v1971 = vadd.f32 %v1011, %v1970
        %v1972 = vpop.f32.mrf.mxu0
        %1973 = vmatprep.mubr.bf16.mxu0 %v416
        %1974 = vmatmul.mubr.bf16.gmra.mxu0 %v369
        %v1975 = vpop.f32.mrf.mxu0
        %v1976 = vadd.f32 %v1011, %v1975
        %v1977 = vpop.f32.mrf.mxu0
        %v1978 = vpop.f32.mrf.mxu0
        %v1979 = vadd.f32 %v1011, %v1978
        %v1980 = vpop.f32.mrf.mxu0
        %1981 = vmatprep.mubr.bf16.mxu0 %v424
        %1982 = vmatmul.mubr.bf16.gmra.mxu0 %v378
        %v1983 = vpop.f32.mrf.mxu0
        %v1984 = vadd.f32 %v1011, %v1983
        %v1985 = vpop.f32.mrf.mxu0
        %v1986 = vpop.f32.mrf.mxu0
        %v1987 = vadd.f32 %v1011, %v1986
        %v1988 = vpop.f32.mrf.mxu0
        %1989 = vdwg.mxu0
        %1990 = vmatprep.subr.bf16.mxu0 0
        %1991 = vmatpush1.bf16.msra.mxu0 %v1644
        %1992 = vmatprep.subr.bf16.mxu0 0
        %1993 = vmatpush1.bf16.msra.mxu0 %v1643
        %1994 = vmatprep.subr.bf16.mxu0 0
        %1995 = vmatpush1.bf16.msra.mxu0 %v1642
        %1996 = vmatprep.subr.bf16.mxu0 0
        %1997 = vmatpush1.bf16.msra.mxu0 %v1641
        %1998 = vmatprep.subr.bf16.mxu0 0
        %1999 = vmatpush1.bf16.msra.mxu0 %v1640
        %2000 = vmatprep.subr.bf16.mxu0 0
        %2001 = vmatpush1.bf16.msra.mxu0 %v1639
        %2002 = vmatprep.subr.bf16.mxu0 0
        %2003 = vmatpush1.bf16.msra.mxu0 %v1638
        %2004 = vmatprep.subr.bf16.mxu0 0
        %2005 = vmatpush1.bf16.msra.mxu0 %v1637
        %2006 = vmatprep.subr.bf16.mxu0 0
        %2007 = vmatpush2.bf16.msra.mxu0 %v1652
        %2008 = vmatprep.subr.bf16.mxu0 0
        %2009 = vmatpush2.bf16.msra.mxu0 %v1651
        %2010 = vmatprep.subr.bf16.mxu0 0
        %2011 = vmatpush2.bf16.msra.mxu0 %v1650
        %2012 = vmatprep.subr.bf16.mxu0 0
        %2013 = vmatpush2.bf16.msra.mxu0 %v1649
        %2014 = vmatprep.subr.bf16.mxu0 0
        %2015 = vmatpush2.bf16.msra.mxu0 %v1648
        %2016 = vmatprep.subr.bf16.mxu0 0
        %2017 = vmatpush2.bf16.msra.mxu0 %v1647
        %2018 = vmatprep.subr.bf16.mxu0 0
        %2019 = vmatpush2.bf16.msra.mxu0 %v1646
        %2020 = vmatprep.subr.bf16.mxu0 0
        %2021 = vmatpush2.bf16.msra.mxu0 %v1645
        %2022 = vmatprep.mubr.bf16.mxu0 %v452
        %2023 = vmatmul.mubr.bf16.gmra.mxu0 %v434
        %v2024 = vpop.f32.mrf.mxu0
        %v2025 = vadd.f32 %v1960, %v2024
        %v2026 = vpop.f32.mrf.mxu0
        %v2027 = vpop.f32.mrf.mxu0
        %v2028 = vadd.f32 %v1963, %v2027
        %v2029 = vpop.f32.mrf.mxu0
        %2030 = vmatprep.mubr.bf16.mxu0 %v456
        %2031 = vmatmul.mubr.bf16.gmra.mxu0 %v436
        %v2032 = vpop.f32.mrf.mxu0
        %v2033 = vadd.f32 %v1968, %v2032
        %v2034 = vpop.f32.mrf.mxu0
        %v2035 = vpop.f32.mrf.mxu0
        %v2036 = vadd.f32 %v1971, %v2035
        %v2037 = vpop.f32.mrf.mxu0
        %2038 = vmatprep.mubr.bf16.mxu0 %v460
        %2039 = vmatmul.mubr.bf16.gmra.mxu0 %v438
        %v2040 = vpop.f32.mrf.mxu0
        %v2041 = vadd.f32 %v1976, %v2040
        %v2042 = vpop.f32.mrf.mxu0
        %v2043 = vpop.f32.mrf.mxu0
        %v2044 = vadd.f32 %v1979, %v2043
        %v2045 = vpop.f32.mrf.mxu0
        %2046 = vmatprep.mubr.bf16.mxu0 %v466
        %2047 = vmatmul.mubr.bf16.gmra.mxu0 %v440
        %v2048 = vpop.f32.mrf.mxu0
        %v2049 = vadd.f32 %v1984, %v2048
        %v2050 = vpop.f32.mrf.mxu0
        %v2051 = vpop.f32.mrf.mxu0
        %v2052 = vadd.f32 %v1987, %v2051
        %v2053 = vpop.f32.mrf.mxu0
        %2054 = vdwg.mxu0
        %2055 = vmatprep.subr.bf16.mxu0 0
        %2056 = vmatpush1.bf16.msra.mxu0 %v1660
        %2057 = vmatprep.subr.bf16.mxu0 0
        %2058 = vmatpush1.bf16.msra.mxu0 %v1659
        %2059 = vmatprep.subr.bf16.mxu0 0
        %2060 = vmatpush1.bf16.msra.mxu0 %v1658
        %2061 = vmatprep.subr.bf16.mxu0 0
        %2062 = vmatpush1.bf16.msra.mxu0 %v1657
        %2063 = vmatprep.subr.bf16.mxu0 0
        %2064 = vmatpush1.bf16.msra.mxu0 %v1656
        %2065 = vmatprep.subr.bf16.mxu0 0
        %2066 = vmatpush1.bf16.msra.mxu0 %v1655
        %2067 = vmatprep.subr.bf16.mxu0 0
        %2068 = vmatpush1.bf16.msra.mxu0 %v1654
        %2069 = vmatprep.subr.bf16.mxu0 0
        %2070 = vmatpush1.bf16.msra.mxu0 %v1653
        %2071 = vmatprep.subr.bf16.mxu0 0
        %2072 = vmatpush2.bf16.msra.mxu0 %v1668
        %2073 = vmatprep.subr.bf16.mxu0 0
        %2074 = vmatpush2.bf16.msra.mxu0 %v1667
        %2075 = vmatprep.subr.bf16.mxu0 0
        %2076 = vmatpush2.bf16.msra.mxu0 %v1666
        %2077 = vmatprep.subr.bf16.mxu0 0
        %2078 = vmatpush2.bf16.msra.mxu0 %v1665
        %2079 = vmatprep.subr.bf16.mxu0 0
        %2080 = vmatpush2.bf16.msra.mxu0 %v1664
        %2081 = vmatprep.subr.bf16.mxu0 0
        %2082 = vmatpush2.bf16.msra.mxu0 %v1663
        %2083 = vmatprep.subr.bf16.mxu0 0
        %2084 = vmatpush2.bf16.msra.mxu0 %v1662
        %2085 = vmatprep.subr.bf16.mxu0 0
        %2086 = vmatpush2.bf16.msra.mxu0 %v1661
        %2087 = vmatprep.mubr.bf16.mxu0 %v492
        %2088 = vmatmul.mubr.bf16.gmra.mxu0 %v474
        %v2089 = vpop.f32.mrf.mxu0
        %v2090 = vadd.f32 %v2025, %v2089
        %v2091 = vpop.f32.mrf.mxu0
        %v2092 = vpop.f32.mrf.mxu0
        %v2093 = vadd.f32 %v2028, %v2092
        %v2094 = vpop.f32.mrf.mxu0
        %2095 = vmatprep.mubr.bf16.mxu0 %v496
        %2096 = vmatmul.mubr.bf16.gmra.mxu0 %v476
        %v2097 = vpop.f32.mrf.mxu0
        %v2098 = vadd.f32 %v2033, %v2097
        %v2099 = vpop.f32.mrf.mxu0
        %v2100 = vpop.f32.mrf.mxu0
        %v2101 = vadd.f32 %v2036, %v2100
        %v2102 = vpop.f32.mrf.mxu0
        %2103 = vmatprep.mubr.bf16.mxu0 %v500
        %2104 = vmatmul.mubr.bf16.gmra.mxu0 %v478
        %v2105 = vpop.f32.mrf.mxu0
        %v2106 = vadd.f32 %v2041, %v2105
        %v2107 = vpop.f32.mrf.mxu0
        %v2108 = vpop.f32.mrf.mxu0
        %v2109 = vadd.f32 %v2044, %v2108
        %v2110 = vpop.f32.mrf.mxu0
        %2111 = vmatprep.mubr.bf16.mxu0 %v504
        %2112 = vmatmul.mubr.bf16.gmra.mxu0 %v480
        %v2113 = vpop.f32.mrf.mxu0
        %v2114 = vadd.f32 %v2049, %v2113
        %v2115 = vpop.f32.mrf.mxu0
        %v2116 = vpop.f32.mrf.mxu0
        %v2117 = vadd.f32 %v2052, %v2116
        %v2118 = vpop.f32.mrf.mxu0
        %2119 = vdwg.mxu0
        %2120 = vmatprep.subr.bf16.mxu0 0
        %2121 = vmatpush1.bf16.msra.mxu0 %v1676
        %2122 = vmatprep.subr.bf16.mxu0 0
        %2123 = vmatpush1.bf16.msra.mxu0 %v1675
        %2124 = vmatprep.subr.bf16.mxu0 0
        %2125 = vmatpush1.bf16.msra.mxu0 %v1674
        %2126 = vmatprep.subr.bf16.mxu0 0
        %2127 = vmatpush1.bf16.msra.mxu0 %v1673
        %2128 = vmatprep.subr.bf16.mxu0 0
        %2129 = vmatpush1.bf16.msra.mxu0 %v1672
        %2130 = vmatprep.subr.bf16.mxu0 0
        %2131 = vmatpush1.bf16.msra.mxu0 %v1671
        %2132 = vmatprep.subr.bf16.mxu0 0
        %2133 = vmatpush1.bf16.msra.mxu0 %v1670
        %2134 = vmatprep.subr.bf16.mxu0 0
        %2135 = vmatpush1.bf16.msra.mxu0 %v1669
        %2136 = vmatprep.subr.bf16.mxu0 0
        %2137 = vmatpush2.bf16.msra.mxu0 %v1684
        %2138 = vmatprep.subr.bf16.mxu0 0
        %2139 = vmatpush2.bf16.msra.mxu0 %v1683
        %2140 = vmatprep.subr.bf16.mxu0 0
        %2141 = vmatpush2.bf16.msra.mxu0 %v1682
        %2142 = vmatprep.subr.bf16.mxu0 0
        %2143 = vmatpush2.bf16.msra.mxu0 %v1681
        %2144 = vmatprep.subr.bf16.mxu0 0
        %2145 = vmatpush2.bf16.msra.mxu0 %v1680
        %2146 = vmatprep.subr.bf16.mxu0 0
        %2147 = vmatpush2.bf16.msra.mxu0 %v1679
        %2148 = vmatprep.subr.bf16.mxu0 0
        %2149 = vmatpush2.bf16.msra.mxu0 %v1678
        %2150 = vmatprep.subr.bf16.mxu0 0
        %2151 = vmatpush2.bf16.msra.mxu0 %v1677
        %2152 = vmatprep.mubr.bf16.mxu0 %v528
        %2153 = vmatmul.mubr.bf16.gmra.mxu0 %v511
        %v2154 = vpop.f32.mrf.mxu0
        %v2155 = vadd.f32 %v2090, %v2154
        %v2156 = vpop.f32.mrf.mxu0
        %v2157 = vpop.f32.mrf.mxu0
        %v2158 = vadd.f32 %v2093, %v2157
        %v2159 = vpop.f32.mrf.mxu0
        %2160 = vmatprep.mubr.bf16.mxu0 %v532
        %2161 = vmatmul.mubr.bf16.gmra.mxu0 %v513
        %v2162 = vpop.f32.mrf.mxu0
        %v2163 = vadd.f32 %v2098, %v2162
        %v2164 = vpop.f32.mrf.mxu0
        %v2165 = vpop.f32.mrf.mxu0
        %v2166 = vadd.f32 %v2101, %v2165
        %v2167 = vpop.f32.mrf.mxu0
        %2168 = vmatprep.mubr.bf16.mxu0 %v536
        %2169 = vmatmul.mubr.bf16.gmra.mxu0 %v515
        %v2170 = vpop.f32.mrf.mxu0
        %v2171 = vadd.f32 %v2106, %v2170
        %v2172 = vpop.f32.mrf.mxu0
        %v2173 = vpop.f32.mrf.mxu0
        %v2174 = vadd.f32 %v2109, %v2173
        %v2175 = vpop.f32.mrf.mxu0
        %2176 = vmatprep.mubr.bf16.mxu0 %v540
        %2177 = vmatmul.mubr.bf16.gmra.mxu0 %v517
        %v2178 = vpop.f32.mrf.mxu0
        %v2179 = vadd.f32 %v2114, %v2178
        %v2180 = vpop.f32.mrf.mxu0
        %v2181 = vpop.f32.mrf.mxu0
        %v2182 = vadd.f32 %v2117, %v2181
        %v2183 = vpop.f32.mrf.mxu0
        %2184 = vdwg.mxu0
        %2185 = vmatprep.subr.bf16.mxu0 0
        %2186 = vmatpush1.bf16.msra.mxu0 %v1692
        %2187 = vmatprep.subr.bf16.mxu0 0
        %2188 = vmatpush1.bf16.msra.mxu0 %v1691
        %2189 = vmatprep.subr.bf16.mxu0 0
        %2190 = vmatpush1.bf16.msra.mxu0 %v1690
        %2191 = vmatprep.subr.bf16.mxu0 0
        %2192 = vmatpush1.bf16.msra.mxu0 %v1689
        %2193 = vmatprep.subr.bf16.mxu0 0
        %2194 = vmatpush1.bf16.msra.mxu0 %v1688
        %2195 = vmatprep.subr.bf16.mxu0 0
        %2196 = vmatpush1.bf16.msra.mxu0 %v1687
        %2197 = vmatprep.subr.bf16.mxu0 0
        %2198 = vmatpush1.bf16.msra.mxu0 %v1686
        %2199 = vmatprep.subr.bf16.mxu0 0
        %2200 = vmatpush1.bf16.msra.mxu0 %v1685
        %2201 = vmatprep.subr.bf16.mxu0 0
        %2202 = vmatpush2.bf16.msra.mxu0 %v1700
        %2203 = vmatprep.subr.bf16.mxu0 0
        %2204 = vmatpush2.bf16.msra.mxu0 %v1699
        %2205 = vmatprep.subr.bf16.mxu0 0
        %2206 = vmatpush2.bf16.msra.mxu0 %v1698
        %2207 = vmatprep.subr.bf16.mxu0 0
        %2208 = vmatpush2.bf16.msra.mxu0 %v1697
        %2209 = vmatprep.subr.bf16.mxu0 0
        %2210 = vmatpush2.bf16.msra.mxu0 %v1696
        %2211 = vmatprep.subr.bf16.mxu0 0
        %2212 = vmatpush2.bf16.msra.mxu0 %v1695
        %2213 = vmatprep.subr.bf16.mxu0 0
        %2214 = vmatpush2.bf16.msra.mxu0 %v1694
        %2215 = vmatprep.subr.bf16.mxu0 0
        %2216 = vmatpush2.bf16.msra.mxu0 %v1693
        %2217 = vmatprep.mubr.bf16.mxu0 %v566
        %2218 = vmatmul.mubr.bf16.gmra.mxu0 %v548
        %v2219 = vpop.f32.mrf.mxu0
        %v2220 = vadd.f32 %v2155, %v2219
        %v2221 = vpop.f32.mrf.mxu0
        %v2222 = vpop.f32.mrf.mxu0
        %v2223 = vadd.f32 %v2158, %v2222
        %v2224 = vpop.f32.mrf.mxu0
        %2225 = vmatprep.mubr.bf16.mxu0 %v570
        %2226 = vmatmul.mubr.bf16.gmra.mxu0 %v550
        %v2227 = vpop.f32.mrf.mxu0
        %v2228 = vadd.f32 %v2163, %v2227
        %v2229 = vpop.f32.mrf.mxu0
        %v2230 = vpop.f32.mrf.mxu0
        %v2231 = vadd.f32 %v2166, %v2230
        %v2232 = vpop.f32.mrf.mxu0
        %2233 = vmatprep.mubr.bf16.mxu0 %v574
        %2234 = vmatmul.mubr.bf16.gmra.mxu0 %v552
        %v2235 = vpop.f32.mrf.mxu0
        %v2236 = vadd.f32 %v2171, %v2235
        %v2237 = vpop.f32.mrf.mxu0
        %v2238 = vpop.f32.mrf.mxu0
        %v2239 = vadd.f32 %v2174, %v2238
        %v2240 = vpop.f32.mrf.mxu0
        %2241 = vmatprep.mubr.bf16.mxu0 %v578
        %2242 = vmatmul.mubr.bf16.gmra.mxu0 %v554
        %v2243 = vpop.f32.mrf.mxu0
        %v2244 = vadd.f32 %v2179, %v2243
        %v2245 = vpop.f32.mrf.mxu0
        %v2246 = vpop.f32.mrf.mxu0
        %v2247 = vadd.f32 %v2182, %v2246
        %v2248 = vpop.f32.mrf.mxu0
        %2249 = vdwg.mxu0
        %2250 = vmatprep.subr.bf16.mxu0 0
        %2251 = vmatpush1.bf16.msra.mxu0 %v1708
        %2252 = vmatprep.subr.bf16.mxu0 0
        %2253 = vmatpush1.bf16.msra.mxu0 %v1707
        %2254 = vmatprep.subr.bf16.mxu0 0
        %2255 = vmatpush1.bf16.msra.mxu0 %v1706
        %2256 = vmatprep.subr.bf16.mxu0 0
        %2257 = vmatpush1.bf16.msra.mxu0 %v1705
        %2258 = vmatprep.subr.bf16.mxu0 0
        %2259 = vmatpush1.bf16.msra.mxu0 %v1704
        %2260 = vmatprep.subr.bf16.mxu0 0
        %2261 = vmatpush1.bf16.msra.mxu0 %v1703
        %2262 = vmatprep.subr.bf16.mxu0 0
        %2263 = vmatpush1.bf16.msra.mxu0 %v1702
        %2264 = vmatprep.subr.bf16.mxu0 0
        %2265 = vmatpush1.bf16.msra.mxu0 %v1701
        %2266 = vmatprep.subr.bf16.mxu0 0
        %2267 = vmatpush2.bf16.msra.mxu0 %v1716
        %2268 = vmatprep.subr.bf16.mxu0 0
        %2269 = vmatpush2.bf16.msra.mxu0 %v1715
        %2270 = vmatprep.subr.bf16.mxu0 0
        %2271 = vmatpush2.bf16.msra.mxu0 %v1714
        %2272 = vmatprep.subr.bf16.mxu0 0
        %2273 = vmatpush2.bf16.msra.mxu0 %v1713
        %2274 = vmatprep.subr.bf16.mxu0 0
        %2275 = vmatpush2.bf16.msra.mxu0 %v1712
        %2276 = vmatprep.subr.bf16.mxu0 0
        %2277 = vmatpush2.bf16.msra.mxu0 %v1711
        %2278 = vmatprep.subr.bf16.mxu0 0
        %2279 = vmatpush2.bf16.msra.mxu0 %v1710
        %2280 = vmatprep.subr.bf16.mxu0 0
        %2281 = vmatpush2.bf16.msra.mxu0 %v1709
        %2282 = vmatprep.mubr.bf16.mxu0 %v604
        %2283 = vmatmul.mubr.bf16.gmra.mxu0 %v586
        %v2284 = vpop.f32.mrf.mxu0
        %v2285 = vadd.f32 %v2220, %v2284
        %v2286 = vpop.f32.mrf.mxu0
        %v2287 = vpop.f32.mrf.mxu0
        %v2288 = vadd.f32 %v2223, %v2287
        %v2289 = vpop.f32.mrf.mxu0
        %2290 = vmatprep.mubr.bf16.mxu0 %v608
        %2291 = vmatmul.mubr.bf16.gmra.mxu0 %v588
        %v2292 = vpop.f32.mrf.mxu0
        %v2293 = vadd.f32 %v2228, %v2292
        %v2294 = vpop.f32.mrf.mxu0
        %v2295 = vpop.f32.mrf.mxu0
        %v2296 = vadd.f32 %v2231, %v2295
        %v2297 = vpop.f32.mrf.mxu0
        %2298 = vmatprep.mubr.bf16.mxu0 %v612
        %2299 = vmatmul.mubr.bf16.gmra.mxu0 %v590
        %v2300 = vpop.f32.mrf.mxu0
        %v2301 = vadd.f32 %v2236, %v2300
        %v2302 = vpop.f32.mrf.mxu0
        %v2303 = vpop.f32.mrf.mxu0
        %v2304 = vadd.f32 %v2239, %v2303
        %v2305 = vpop.f32.mrf.mxu0
        %2306 = vmatprep.mubr.bf16.mxu0 %v616
        %2307 = vmatmul.mubr.bf16.gmra.mxu0 %v592
        %v2308 = vpop.f32.mrf.mxu0
        %v2309 = vadd.f32 %v2244, %v2308
        %v2310 = vpop.f32.mrf.mxu0
        %v2311 = vpop.f32.mrf.mxu0
        %v2312 = vadd.f32 %v2247, %v2311
        %v2313 = vpop.f32.mrf.mxu0
        %2314 = vdwg.mxu0
        %2315 = vmatprep.subr.bf16.mxu0 0
        %2316 = vmatpush1.bf16.msra.mxu0 %v1724
        %2317 = vmatprep.subr.bf16.mxu0 0
        %2318 = vmatpush1.bf16.msra.mxu0 %v1723
        %2319 = vmatprep.subr.bf16.mxu0 0
        %2320 = vmatpush1.bf16.msra.mxu0 %v1722
        %2321 = vmatprep.subr.bf16.mxu0 0
        %2322 = vmatpush1.bf16.msra.mxu0 %v1721
        %2323 = vmatprep.subr.bf16.mxu0 0
        %2324 = vmatpush1.bf16.msra.mxu0 %v1720
        %2325 = vmatprep.subr.bf16.mxu0 0
        %2326 = vmatpush1.bf16.msra.mxu0 %v1719
        %2327 = vmatprep.subr.bf16.mxu0 0
        %2328 = vmatpush1.bf16.msra.mxu0 %v1718
        %2329 = vmatprep.subr.bf16.mxu0 0
        %2330 = vmatpush1.bf16.msra.mxu0 %v1717
        %2331 = vmatprep.subr.bf16.mxu0 0
        %2332 = vmatpush2.bf16.msra.mxu0 %v1732
        %2333 = vmatprep.subr.bf16.mxu0 0
        %2334 = vmatpush2.bf16.msra.mxu0 %v1731
        %2335 = vmatprep.subr.bf16.mxu0 0
        %2336 = vmatpush2.bf16.msra.mxu0 %v1730
        %2337 = vmatprep.subr.bf16.mxu0 0
        %2338 = vmatpush2.bf16.msra.mxu0 %v1729
        %2339 = vmatprep.subr.bf16.mxu0 0
        %2340 = vmatpush2.bf16.msra.mxu0 %v1728
        %2341 = vmatprep.subr.bf16.mxu0 0
        %2342 = vmatpush2.bf16.msra.mxu0 %v1727
        %2343 = vmatprep.subr.bf16.mxu0 0
        %2344 = vmatpush2.bf16.msra.mxu0 %v1726
        %2345 = vmatprep.subr.bf16.mxu0 0
        %2346 = vmatpush2.bf16.msra.mxu0 %v1725
        %2347 = vmatprep.mubr.bf16.mxu0 %v642
        %2348 = vmatmul.mubr.bf16.gmra.mxu0 %v624
        %v2349 = vpop.f32.mrf.mxu0
        %v2350 = vadd.f32 %v2285, %v2349
        %v2351 = vpop.f32.mrf.mxu0
        %v2352 = vpop.f32.mrf.mxu0
        %v2353 = vadd.f32 %v2288, %v2352
        %v2354 = vpop.f32.mrf.mxu0
        %2355 = vmatprep.mubr.bf16.mxu0 %v646
        %2356 = vmatmul.mubr.bf16.gmra.mxu0 %v626
        %v2357 = vpop.f32.mrf.mxu0
        %v2358 = vadd.f32 %v2293, %v2357
        %v2359 = vpop.f32.mrf.mxu0
        %v2360 = vpop.f32.mrf.mxu0
        %v2361 = vadd.f32 %v2296, %v2360
        %v2362 = vpop.f32.mrf.mxu0
        %2363 = vmatprep.mubr.bf16.mxu0 %v650
        %2364 = vmatmul.mubr.bf16.gmra.mxu0 %v628
        %v2365 = vpop.f32.mrf.mxu0
        %v2366 = vadd.f32 %v2301, %v2365
        %v2367 = vpop.f32.mrf.mxu0
        %v2368 = vpop.f32.mrf.mxu0
        %v2369 = vadd.f32 %v2304, %v2368
        %v2370 = vpop.f32.mrf.mxu0
        %2371 = vmatprep.mubr.bf16.mxu0 %v654
        %2372 = vmatmul.mubr.bf16.gmra.mxu0 %v630
        %v2373 = vpop.f32.mrf.mxu0
        %v2374 = vadd.f32 %v2309, %v2373
        %v2375 = vpop.f32.mrf.mxu0
        %v2376 = vpop.f32.mrf.mxu0
        %v2377 = vadd.f32 %v2312, %v2376
        %v2378 = vpop.f32.mrf.mxu0
        %2379 = vdwg.mxu0
        %2380 = vmatprep.subr.bf16.mxu0 0
        %2381 = vmatpush1.bf16.msra.mxu0 %v1740
        %2382 = vmatprep.subr.bf16.mxu0 0
        %2383 = vmatpush1.bf16.msra.mxu0 %v1739
        %2384 = vmatprep.subr.bf16.mxu0 0
        %2385 = vmatpush1.bf16.msra.mxu0 %v1738
        %2386 = vmatprep.subr.bf16.mxu0 0
        %2387 = vmatpush1.bf16.msra.mxu0 %v1737
        %2388 = vmatprep.subr.bf16.mxu0 0
        %2389 = vmatpush1.bf16.msra.mxu0 %v1736
        %2390 = vmatprep.subr.bf16.mxu0 0
        %2391 = vmatpush1.bf16.msra.mxu0 %v1735
        %2392 = vmatprep.subr.bf16.mxu0 0
        %2393 = vmatpush1.bf16.msra.mxu0 %v1734
        %2394 = vmatprep.subr.bf16.mxu0 0
        %2395 = vmatpush1.bf16.msra.mxu0 %v1733
        %2396 = vmatprep.subr.bf16.mxu0 0
        %2397 = vmatpush2.bf16.msra.mxu0 %v1748
        %2398 = vmatprep.subr.bf16.mxu0 0
        %2399 = vmatpush2.bf16.msra.mxu0 %v1747
        %2400 = vmatprep.subr.bf16.mxu0 0
        %2401 = vmatpush2.bf16.msra.mxu0 %v1746
        %2402 = vmatprep.subr.bf16.mxu0 0
        %2403 = vmatpush2.bf16.msra.mxu0 %v1745
        %2404 = vmatprep.subr.bf16.mxu0 0
        %2405 = vmatpush2.bf16.msra.mxu0 %v1744
        %2406 = vmatprep.subr.bf16.mxu0 0
        %2407 = vmatpush2.bf16.msra.mxu0 %v1743
        %2408 = vmatprep.subr.bf16.mxu0 0
        %2409 = vmatpush2.bf16.msra.mxu0 %v1742
        %2410 = vmatprep.subr.bf16.mxu0 0
        %2411 = vmatpush2.bf16.msra.mxu0 %v1741
        %2412 = vmatprep.mubr.bf16.mxu0 %v677
        %2413 = vmatmul.mubr.bf16.gmra.mxu0 %v662
        %v2414 = vpop.f32.mrf.mxu0
        %v2415 = vadd.f32 %v2350, %v2414
        %v2416 = vpop.f32.mrf.mxu0
        %v2417 = vpop.f32.mrf.mxu0
        %v2418 = vadd.f32 %v2353, %v2417
        %v2419 = vpop.f32.mrf.mxu0
        %2420 = vmatprep.mubr.bf16.mxu0 %v680
        %2421 = vmatmul.mubr.bf16.gmra.mxu0 %v664
        %v2422 = vpop.f32.mrf.mxu0
        %v2423 = vadd.f32 %v2358, %v2422
        %v2424 = vpop.f32.mrf.mxu0
        %v2425 = vpop.f32.mrf.mxu0
        %v2426 = vadd.f32 %v2361, %v2425
        %v2427 = vpop.f32.mrf.mxu0
        %2428 = vmatprep.mubr.bf16.mxu0 %v683
        %2429 = vmatmul.mubr.bf16.gmra.mxu0 %v666
        %v2430 = vpop.f32.mrf.mxu0
        %v2431 = vadd.f32 %v2366, %v2430
        %v2432 = vpop.f32.mrf.mxu0
        %v2433 = vpop.f32.mrf.mxu0
        %v2434 = vadd.f32 %v2369, %v2433
        %v2435 = vpop.f32.mrf.mxu0
        %2436 = vmatprep.mubr.bf16.mxu0 %v686
        %2437 = vmatmul.mubr.bf16.gmra.mxu0 %v668
        %v2438 = vpop.f32.mrf.mxu0
        %v2439 = vadd.f32 %v2374, %v2438
        %v2440 = vpop.f32.mrf.mxu0
        %v2441 = vpop.f32.mrf.mxu0
        %v2442 = vadd.f32 %v2377, %v2441
        %v2443 = vpop.f32.mrf.mxu0
        %2444 = vdwg.mxu0
        %2445 = vmatprep.subr.bf16.mxu0 0
        %2446 = vmatpush1.bf16.msra.mxu0 %v1756
        %2447 = vmatprep.subr.bf16.mxu0 0
        %2448 = vmatpush1.bf16.msra.mxu0 %v1755
        %2449 = vmatprep.subr.bf16.mxu0 0
        %2450 = vmatpush1.bf16.msra.mxu0 %v1754
        %2451 = vmatprep.subr.bf16.mxu0 0
        %2452 = vmatpush1.bf16.msra.mxu0 %v1753
        %2453 = vmatprep.subr.bf16.mxu0 0
        %2454 = vmatpush1.bf16.msra.mxu0 %v1752
        %2455 = vmatprep.subr.bf16.mxu0 0
        %2456 = vmatpush1.bf16.msra.mxu0 %v1751
        %2457 = vmatprep.subr.bf16.mxu0 0
        %2458 = vmatpush1.bf16.msra.mxu0 %v1750
        %2459 = vmatprep.subr.bf16.mxu0 0
        %2460 = vmatpush1.bf16.msra.mxu0 %v1749
        %2461 = vmatprep.subr.bf16.mxu0 0
        %2462 = vmatpush2.bf16.msra.mxu0 %v1764
        %2463 = vmatprep.subr.bf16.mxu0 0
        %2464 = vmatpush2.bf16.msra.mxu0 %v1763
        %2465 = vmatprep.subr.bf16.mxu0 0
        %2466 = vmatpush2.bf16.msra.mxu0 %v1762
        %2467 = vmatprep.subr.bf16.mxu0 0
        %2468 = vmatpush2.bf16.msra.mxu0 %v1761
        %2469 = vmatprep.subr.bf16.mxu0 0
        %2470 = vmatpush2.bf16.msra.mxu0 %v1760
        %2471 = vmatprep.subr.bf16.mxu0 0
        %2472 = vmatpush2.bf16.msra.mxu0 %v1759
        %2473 = vmatprep.subr.bf16.mxu0 0
        %2474 = vmatpush2.bf16.msra.mxu0 %v1758
        %2475 = vmatprep.subr.bf16.mxu0 0
        %2476 = vmatpush2.bf16.msra.mxu0 %v1757
        %2477 = vmatprep.mubr.bf16.mxu0 %v408
        %2478 = vmatmul.mubr.bf16.gmra.mxu0 %v360
        %v2479 = vpop.f32.mrf.mxu0
        %v2480 = vadd.f32 %v2415, %v2479
        %v2481 = vpop.f32.mrf.mxu0
        %v2482 = vpop.f32.mrf.mxu0
        %v2483 = vadd.f32 %v2418, %v2482
        %v2484 = vpop.f32.mrf.mxu0
        %2485 = vmatprep.mubr.bf16.mxu0 %v416
        %2486 = vmatmul.mubr.bf16.gmra.mxu0 %v369
        %v2487 = vpop.f32.mrf.mxu0
        %v2488 = vadd.f32 %v2423, %v2487
        %v2489 = vpop.f32.mrf.mxu0
        %v2490 = vpop.f32.mrf.mxu0
        %v2491 = vadd.f32 %v2426, %v2490
        %v2492 = vpop.f32.mrf.mxu0
        %2493 = vmatprep.mubr.bf16.mxu0 %v424
        %2494 = vmatmul.mubr.bf16.gmra.mxu0 %v378
        %v2495 = vpop.f32.mrf.mxu0
        %v2496 = vadd.f32 %v2431, %v2495
        %v2497 = vpop.f32.mrf.mxu0
        %v2498 = vpop.f32.mrf.mxu0
        %v2499 = vadd.f32 %v2434, %v2498
        %v2500 = vpop.f32.mrf.mxu0
        %2501 = vmatprep.mubr.bf16.mxu0 %v696
        %2502 = vmatmul.mubr.bf16.gmra.mxu0 %v387
        %v2503 = vpop.f32.mrf.mxu0
        %v2504 = vadd.f32 %v2439, %v2503
        %v2505 = vpop.f32.mrf.mxu0
        %v2506 = vpop.f32.mrf.mxu0
        %v2507 = vadd.f32 %v2442, %v2506
        %v2508 = vpop.f32.mrf.mxu0
        %2509 = vdwg.mxu0
        %2510 = vmatprep.subr.bf16.mxu0 0
        %2511 = vmatpush1.bf16.msra.mxu0 %v1772
        %2512 = vmatprep.subr.bf16.mxu0 0
        %2513 = vmatpush1.bf16.msra.mxu0 %v1771
        %2514 = vmatprep.subr.bf16.mxu0 0
        %2515 = vmatpush1.bf16.msra.mxu0 %v1770
        %2516 = vmatprep.subr.bf16.mxu0 0
        %2517 = vmatpush1.bf16.msra.mxu0 %v1769
        %2518 = vmatprep.subr.bf16.mxu0 0
        %2519 = vmatpush1.bf16.msra.mxu0 %v1768
        %2520 = vmatprep.subr.bf16.mxu0 0
        %2521 = vmatpush1.bf16.msra.mxu0 %v1767
        %2522 = vmatprep.subr.bf16.mxu0 0
        %2523 = vmatpush1.bf16.msra.mxu0 %v1766
        %2524 = vmatprep.subr.bf16.mxu0 0
        %2525 = vmatpush1.bf16.msra.mxu0 %v1765
        %2526 = vmatprep.subr.bf16.mxu0 0
        %2527 = vmatpush2.bf16.msra.mxu0 0
        %2528 = vmatprep.subr.bf16.mxu0 0
        %2529 = vmatpush2.bf16.msra.mxu0 0
        %2530 = vmatprep.subr.bf16.mxu0 0
        %2531 = vmatpush2.bf16.msra.mxu0 0
        %2532 = vmatprep.subr.bf16.mxu0 0
        %2533 = vmatpush2.bf16.msra.mxu0 0
        %2534 = vmatprep.subr.bf16.mxu0 0
        %2535 = vmatpush2.bf16.msra.mxu0 0
        %2536 = vmatprep.subr.bf16.mxu0 0
        %2537 = vmatpush2.bf16.msra.mxu0 0
        %2538 = vmatprep.subr.bf16.mxu0 0
        %2539 = vmatpush2.bf16.msra.mxu0 0
        %2540 = vmatprep.subr.bf16.mxu0 0
        %2541 = vmatpush2.bf16.msra.mxu0 0
        %2542 = vmatprep.mubr.bf16.mxu0 0
        %2543 = vmatmul.mubr.bf16.gmra.mxu0 %v436
        %v2544 = vpop.f32.mrf.mxu0
        %v2545 = vadd.f32 %v2480, %v2544
        %v2546 = vpop.f32.mrf.mxu0
        %v2547 = vpop.f32.mrf.mxu0
        %v2548 = vadd.f32 %v2483, %v2547
        %v2549 = vpop.f32.mrf.mxu0
        %2550 = vmatprep.mubr.bf16.mxu0 0
        %2551 = vmatmul.mubr.bf16.gmra.mxu0 %v438
        %v2552 = vpop.f32.mrf.mxu0
        %v2553 = vadd.f32 %v2488, %v2552
        %v2554 = vpop.f32.mrf.mxu0
        %v2555 = vpop.f32.mrf.mxu0
        %v2556 = vadd.f32 %v2491, %v2555
        %v2557 = vpop.f32.mrf.mxu0
        %2558 = vmatprep.mubr.bf16.mxu0 0
        %2559 = vmatmul.mubr.bf16.gmra.mxu0 %v440
        %v2560 = vpop.f32.mrf.mxu0
        %v2561 = vadd.f32 %v2496, %v2560
        %v2562 = vpop.f32.mrf.mxu0
        %v2563 = vpop.f32.mrf.mxu0
        %v2564 = vadd.f32 %v2499, %v2563
        %v2565 = vpop.f32.mrf.mxu0
        %2566 = vmatprep.mubr.bf16.mxu0 0
        %2567 = vmatmul.mubr.bf16.gmra.mxu0 %v700
        %v2568 = vpop.f32.mrf.mxu0
        %v2569 = vadd.f32 %v2504, %v2568
        %v2570 = vpop.f32.mrf.mxu0
        %v2571 = vpop.f32.mrf.mxu0
        %v2572 = vadd.f32 %v2507, %v2571
        %v2573 = vpop.f32.mrf.mxu0
        %2574 = vdwg.mxu0
        %v2575 = vxor.u32 %v2545, 2147483648
        %v2576 = vxor.u32 %v2548, 2147483648
        %v2577 = vxor.u32 %v2553, 2147483648
        %v2578 = vxor.u32 %v2556, 2147483648
        %v2579 = vxor.u32 %v2561, 2147483648
        %v2580 = vxor.u32 %v2564, 2147483648
        %v2581 = vxor.u32 %v2569, 2147483648
        %v2582 = vxor.u32 %v2572, 2147483648
        %v2583 = vmul.f32 %v2575, 1.442695
        %v2584 = vpow.pop %v2583
        %v2585 = vmul.f32 %v2576, 1.442695
        %v2586 = vpow.pop %v2585
        %v2587 = vmul.f32 %v2577, 1.442695
        %v2588 = vpow.pop %v2587
        %v2589 = vmul.f32 %v2578, 1.442695
        %v2590 = vpow.pop %v2589
        %v2591 = vmul.f32 %v2579, 1.442695
        %v2592 = vpow.pop %v2591
        %v2593 = vmul.f32 %v2580, 1.442695
        %v2594 = vpow.pop %v2593
        %v2595 = vmul.f32 %v2581, 1.442695
        %v2596 = vpow.pop %v2595
        %v2597 = vmul.f32 %v2582, 1.442695
        %v2598 = vpow.pop %v2597
        %v2599 = vadd.f32 %v2584, 1.0
        %v2600 = vadd.f32 %v2586, 1.0
        %v2601 = vadd.f32 %v2588, 1.0
        %v2602 = vadd.f32 %v2590, 1.0
        %v2603 = vadd.f32 %v2592, 1.0
        %v2604 = vadd.f32 %v2594, 1.0
        %v2605 = vadd.f32 %v2596, 1.0
        %v2606 = vadd.f32 %v2598, 1.0
        %v2607 = vrcp.pop %v2599
        %v2608 = vmul.f32 1.0, %v2607
        %v2609 = vrcp.pop %v2600
        %v2610 = vmul.f32 1.0, %v2609
        %v2611 = vrcp.pop %v2601
        %v2612 = vmul.f32 1.0, %v2611
        %v2613 = vrcp.pop %v2602
        %v2614 = vmul.f32 1.0, %v2613
        %v2615 = vrcp.pop %v2603
        %v2616 = vmul.f32 1.0, %v2615
        %v2617 = vrcp.pop %v2604
        %v2618 = vmul.f32 1.0, %v2617
        %v2619 = vrcp.pop %v2605
        %v2620 = vmul.f32 1.0, %v2619
        %v2621 = vrcp.pop %v2606
        %v2622 = vmul.f32 1.0, %v2621
        %v2623 = vmul.f32 %v2545, %v2608
        %v2624 = vmul.f32 %v2548, %v2610
        %v2625 = vmul.f32 %v2553, %v2612
        %v2626 = vmul.f32 %v2556, %v2614
        %v2627 = vmul.f32 %v2561, %v2616
        %v2628 = vmul.f32 %v2564, %v2618
        %v2629 = vmul.f32 %v2569, %v2620
        %v2630 = vmul.f32 %v2572, %v2622
        %v2631 = vpack.c.bf16 %v2624, %v2623
        %v2632 = vpack.c.bf16 %v2626, %v2625
        %v2633 = vpack.c.bf16 %v2628, %v2627
        %v2634 = vpack.c.bf16 %v2630, %v2629
        %v2635 = vld [vmem:[#allocation7] sm:$0xf]
        %v2636 = vld [vmem:[#allocation7 + $0x4] sm:$0xf]
        %v2637 = vld [vmem:[#allocation7 + $0x8] sm:$0xf]
        %v2638 = vld [vmem:[#allocation7 + $0xc] sm:$0xf]
        %v2639 = vld [vmem:[#allocation7 + $0x10] sm:$0xf]
        %v2640 = vld [vmem:[#allocation7 + $0x14] sm:$0xf]
        %v2641 = vld [vmem:[#allocation7 + $0x18] sm:$0xf]
        %v2642 = vld [vmem:[#allocation7 + $0x1c] sm:$0xf]
        %v2643 = vld [vmem:[#allocation7 + $0x20] sm:$0xf]
        %v2644 = vld [vmem:[#allocation7 + $0x24] sm:$0xf]
        %v2645 = vld [vmem:[#allocation7 + $0x28] sm:$0xf]
        %v2646 = vld [vmem:[#allocation7 + $0x2c] sm:$0xf]
        %v2647 = vld [vmem:[#allocation7 + $0x30] sm:$0xf]
        %v2648 = vld [vmem:[#allocation7 + $0x34] sm:$0xf]
        %v2649 = vld [vmem:[#allocation7 + $0x38] sm:$0xf]
        %v2650 = vld [vmem:[#allocation7 + $0x3c] sm:$0xf]
        %v2651 = vld [vmem:[#allocation8] sm:$0xf]
        %v2652 = vld [vmem:[#allocation8 + $0x4] sm:$0xf]
        %v2653 = vld [vmem:[#allocation8 + $0x8] sm:$0xf]
        %v2654 = vld [vmem:[#allocation8 + $0xc] sm:$0xf]
        %v2655 = vld [vmem:[#allocation8 + $0x10] sm:$0xf]
        %v2656 = vld [vmem:[#allocation8 + $0x14] sm:$0xf]
        %v2657 = vld [vmem:[#allocation8 + $0x18] sm:$0xf]
        %v2658 = vld [vmem:[#allocation8 + $0x1c] sm:$0xf]
        %v2659 = vld [vmem:[#allocation8 + $0x20] sm:$0xf]
        %v2660 = vld [vmem:[#allocation8 + $0x24] sm:$0xf]
        %v2661 = vld [vmem:[#allocation8 + $0x28] sm:$0xf]
        %v2662 = vld [vmem:[#allocation8 + $0x2c] sm:$0xf]
        %v2663 = vld [vmem:[#allocation8 + $0x30] sm:$0xf]
        %v2664 = vld [vmem:[#allocation8 + $0x34] sm:$0xf]
        %v2665 = vld [vmem:[#allocation8 + $0x38] sm:$0xf]
        %v2666 = vld [vmem:[#allocation8 + $0x3c] sm:$0xf]
        %v2687 = vunpack.c.l.b16 %v2651
        %v2688 = vunpack.c.l.b16 %v2652
        %v2689 = vunpack.c.l.b16 %v2653
        %v2690 = vunpack.c.l.b16 %v2654
        %v2691 = vunpack.c.l.b16 %v2655
        %v2692 = vunpack.c.l.b16 %v2656
        %v2693 = vunpack.c.l.b16 %v2657
        %v2694 = vunpack.c.l.b16 %v2658
        %v2695 = vunpack.c.l.b16 %v2659
        %v2696 = vunpack.c.l.b16 %v2660
        %v2697 = vunpack.c.l.b16 %v2661
        %v2698 = vunpack.c.l.b16 %v2662
        %v2699 = vunpack.c.l.b16 %v2663
        %v2700 = vunpack.c.l.b16 %v2664
        %v2701 = vunpack.c.l.b16 %v2665
        %v2702 = vunpack.c.l.b16 %v2666
        %v2703 = vpack.c.b16 %v2688, %v2687
        %v2704 = vpack.c.b16 %v2690, %v2689
        %v2705 = vpack.c.b16 %v2692, %v2691
        %v2706 = vpack.c.b16 %v2694, %v2693
        %v2707 = vpack.c.b16 %v2696, %v2695
        %v2708 = vpack.c.b16 %v2698, %v2697
        %v2709 = vpack.c.b16 %v2700, %v2699
        %v2710 = vpack.c.b16 %v2702, %v2701
        %2719 = vmatprep.subr.bf16.mxu0 0
        %2720 = vmatpush1.bf16.msra.mxu0 %v2710
        %2721 = vmatprep.subr.bf16.mxu0 0
        %2722 = vmatpush1.bf16.msra.mxu0 %v2709
        %2723 = vmatprep.subr.bf16.mxu0 0
        %2724 = vmatpush1.bf16.msra.mxu0 %v2708
        %2725 = vmatprep.subr.bf16.mxu0 0
        %2726 = vmatpush1.bf16.msra.mxu0 %v2707
        %2727 = vmatprep.subr.bf16.mxu0 0
        %2728 = vmatpush1.bf16.msra.mxu0 %v2706
        %2729 = vmatprep.subr.bf16.mxu0 0
        %2730 = vmatpush1.bf16.msra.mxu0 %v2705
        %2731 = vmatprep.subr.bf16.mxu0 0
        %2732 = vmatpush1.bf16.msra.mxu0 %v2704
        %2733 = vmatprep.subr.bf16.mxu0 0
        %2734 = vmatpush1.bf16.msra.mxu0 %v2703
        %2735 = vmatprep.subr.bf16.mxu0 0
        %2736 = vmatpush2.bf16.msra.mxu0 0
        %2737 = vmatprep.subr.bf16.mxu0 0
        %2738 = vmatpush2.bf16.msra.mxu0 0
        %2739 = vmatprep.subr.bf16.mxu0 0
        %2740 = vmatpush2.bf16.msra.mxu0 0
        %2741 = vmatprep.subr.bf16.mxu0 0
        %2742 = vmatpush2.bf16.msra.mxu0 0
        %2743 = vmatprep.subr.bf16.mxu0 0
        %2744 = vmatpush2.bf16.msra.mxu0 0
        %2745 = vmatprep.subr.bf16.mxu0 0
        %2746 = vmatpush2.bf16.msra.mxu0 0
        %2747 = vmatprep.subr.bf16.mxu0 0
        %2748 = vmatpush2.bf16.msra.mxu0 0
        %2749 = vmatprep.subr.bf16.mxu0 0
        %2750 = vmatpush2.bf16.msra.mxu0 0
        %2751 = vmatprep.mubr.bf16.mxu0 0
        %2752 = vmatmul.mubr.bf16.gmra.mxu0 %v339
        %v2753 = vpop.f32.mrf.mxu0
        %v2754 = vadd.f32 0.0, %v2753
        %v2755 = vpop.f32.mrf.mxu0
        %v2756 = vpop.f32.mrf.mxu0
        %v2757 = vadd.f32 0.0, %v2756
        %v2758 = vpop.f32.mrf.mxu0
        %2759 = vmatprep.mubr.bf16.mxu0 0
        %2760 = vmatmul.mubr.bf16.gmra.mxu0 %v340
        %v2761 = vpop.f32.mrf.mxu0
        %v2762 = vadd.f32 0.0, %v2761
        %v2763 = vpop.f32.mrf.mxu0
        %v2764 = vpop.f32.mrf.mxu0
        %v2765 = vadd.f32 0.0, %v2764
        %v2766 = vpop.f32.mrf.mxu0
        %2767 = vmatprep.mubr.bf16.mxu0 0
        %2768 = vmatmul.mubr.bf16.gmra.mxu0 %v341
        %v2769 = vpop.f32.mrf.mxu0
        %v2770 = vadd.f32 0.0, %v2769
        %v2771 = vpop.f32.mrf.mxu0
        %v2772 = vpop.f32.mrf.mxu0
        %v2773 = vadd.f32 0.0, %v2772
        %v2774 = vpop.f32.mrf.mxu0
        %2775 = vmatprep.mubr.bf16.mxu0 0
        %2776 = vmatmul.mubr.bf16.gmra.mxu0 %v342
        %v2777 = vpop.f32.mrf.mxu0
        %v2778 = vadd.f32 0.0, %v2777
        %v2779 = vpop.f32.mrf.mxu0
        %v2780 = vpop.f32.mrf.mxu0
        %v2781 = vadd.f32 0.0, %v2780
        %v2782 = vpop.f32.mrf.mxu0
        %2783 = vdwg.mxu0
        %v2800 = vunpack.c.l.b16 %v2635
        %v2801 = vunpack.c.l.b16 %v2636
        %v2802 = vunpack.c.l.b16 %v2637
        %v2803 = vunpack.c.l.b16 %v2638
        %v2804 = vunpack.c.l.b16 %v2639
        %v2805 = vunpack.c.l.b16 %v2640
        %v2806 = vunpack.c.l.b16 %v2641
        %v2807 = vunpack.c.l.b16 %v2642
        %v2808 = vunpack.c.l.b16 %v2643
        %v2809 = vunpack.c.l.b16 %v2644
        %v2810 = vunpack.c.l.b16 %v2645
        %v2811 = vunpack.c.l.b16 %v2646
        %v2812 = vunpack.c.l.b16 %v2647
        %v2813 = vunpack.c.l.b16 %v2648
        %v2814 = vunpack.c.l.b16 %v2649
        %v2815 = vunpack.c.l.b16 %v2650
        %v2816 = vpack.c.b16 %v2801, %v2800
        %v2817 = vpack.c.b16 %v2803, %v2802
        %v2818 = vpack.c.b16 %v2805, %v2804
        %v2819 = vpack.c.b16 %v2807, %v2806
        %v2820 = vpack.c.b16 %v2809, %v2808
        %v2821 = vpack.c.b16 %v2811, %v2810
        %v2822 = vpack.c.b16 %v2813, %v2812
        %v2823 = vpack.c.b16 %v2815, %v2814
        %2832 = vmatprep.subr.bf16.mxu0 0
        %2833 = vmatpush1.bf16.msra.mxu0 %v2823
        %2834 = vmatprep.subr.bf16.mxu0 0
        %2835 = vmatpush1.bf16.msra.mxu0 %v2822
        %2836 = vmatprep.subr.bf16.mxu0 0
        %2837 = vmatpush1.bf16.msra.mxu0 %v2821
        %2838 = vmatprep.subr.bf16.mxu0 0
        %2839 = vmatpush1.bf16.msra.mxu0 %v2820
        %2840 = vmatprep.subr.bf16.mxu0 0
        %2841 = vmatpush1.bf16.msra.mxu0 %v2819
        %2842 = vmatprep.subr.bf16.mxu0 0
        %2843 = vmatpush1.bf16.msra.mxu0 %v2818
        %2844 = vmatprep.subr.bf16.mxu0 0
        %2845 = vmatpush1.bf16.msra.mxu0 %v2817
        %2846 = vmatprep.subr.bf16.mxu0 0
        %2847 = vmatpush1.bf16.msra.mxu0 %v2816
        %2848 = vmatprep.subr.bf16.mxu0 0
        %2849 = vmatpush2.bf16.msra.mxu0 0
        %2850 = vmatprep.subr.bf16.mxu0 0
        %2851 = vmatpush2.bf16.msra.mxu0 0
        %2852 = vmatprep.subr.bf16.mxu0 0
        %2853 = vmatpush2.bf16.msra.mxu0 0
        %2854 = vmatprep.subr.bf16.mxu0 0
        %2855 = vmatpush2.bf16.msra.mxu0 0
        %2856 = vmatprep.subr.bf16.mxu0 0
        %2857 = vmatpush2.bf16.msra.mxu0 0
        %2858 = vmatprep.subr.bf16.mxu0 0
        %2859 = vmatpush2.bf16.msra.mxu0 0
        %2860 = vmatprep.subr.bf16.mxu0 0
        %2861 = vmatpush2.bf16.msra.mxu0 0
        %2862 = vmatprep.subr.bf16.mxu0 0
        %2863 = vmatpush2.bf16.msra.mxu0 0
        %2864 = vmatprep.mubr.bf16.mxu0 0
        %2865 = vmatmul.mubr.bf16.gmra.mxu0 %v2631
        %v2866 = vpop.f32.mrf.mxu0
        %v2867 = vadd.f32 %v2754, %v2866
        %v2868 = vpop.f32.mrf.mxu0
        %v2869 = vpop.f32.mrf.mxu0
        %v2870 = vadd.f32 %v2757, %v2869
        %v2871 = vpop.f32.mrf.mxu0
        %2872 = vmatprep.mubr.bf16.mxu0 0
        %2873 = vmatmul.mubr.bf16.gmra.mxu0 %v2632
        %v2874 = vpop.f32.mrf.mxu0
        %v2875 = vadd.f32 %v2762, %v2874
        %v2876 = vpop.f32.mrf.mxu0
        %v2877 = vpop.f32.mrf.mxu0
        %v2878 = vadd.f32 %v2765, %v2877
        %v2879 = vpop.f32.mrf.mxu0
        %2880 = vmatprep.mubr.bf16.mxu0 0
        %2881 = vmatmul.mubr.bf16.gmra.mxu0 %v2633
        %v2882 = vpop.f32.mrf.mxu0
        %v2883 = vadd.f32 %v2770, %v2882
        %v2884 = vpop.f32.mrf.mxu0
        %v2885 = vpop.f32.mrf.mxu0
        %v2886 = vadd.f32 %v2773, %v2885
        %v2887 = vpop.f32.mrf.mxu0
        %2888 = vmatprep.mubr.bf16.mxu0 0
        %2889 = vmatmul.mubr.bf16.gmra.mxu0 %v2634
        %v2890 = vpop.f32.mrf.mxu0
        %v2891 = vadd.f32 %v2778, %v2890
        %v2892 = vpop.f32.mrf.mxu0
        %v2893 = vpop.f32.mrf.mxu0
        %v2894 = vadd.f32 %v2781, %v2893
        %v2895 = vpop.f32.mrf.mxu0
        %2896 = vdwg.mxu0
        %v2897 = vld [vmem:[%s5] sm:$0x1]
        %v2899 = vlaneseq
        %v2900 = vshrl.u32 %v2899, 7
        %v2901 = vsub.s32 0, %v2900
        %v2902 = vrot.slane %v2897, %v2901
        %v2904 = vadd.f32 %v2867, %v2902
        %v2905 = vadd.f32 %v2870, %v2902
        %v2906 = vadd.f32 %v2875, %v2902
        %v2907 = vadd.f32 %v2878, %v2902
        %v2908 = vadd.f32 %v2883, %v2902
        %v2909 = vadd.f32 %v2886, %v2902
        %v2910 = vadd.f32 %v2891, %v2902
        %v2911 = vadd.f32 %v2894, %v2902
        %v2912 = vxor.u32 %v2904, 2147483648
        %v2913 = vxor.u32 %v2905, 2147483648
        %v2914 = vxor.u32 %v2906, 2147483648
        %v2915 = vxor.u32 %v2907, 2147483648
        %v2916 = vxor.u32 %v2908, 2147483648
        %v2917 = vxor.u32 %v2909, 2147483648
        %v2918 = vxor.u32 %v2910, 2147483648
        %v2919 = vxor.u32 %v2911, 2147483648
        %v2920 = vmul.f32 %v2912, 1.442695
        %v2921 = vpow.pop %v2920
        %v2922 = vmul.f32 %v2913, 1.442695
        %v2923 = vpow.pop %v2922
        %v2924 = vmul.f32 %v2914, 1.442695
        %v2925 = vpow.pop %v2924
        %v2926 = vmul.f32 %v2915, 1.442695
        %v2927 = vpow.pop %v2926
        %v2928 = vmul.f32 %v2916, 1.442695
        %v2929 = vpow.pop %v2928
        %v2930 = vmul.f32 %v2917, 1.442695
        %v2931 = vpow.pop %v2930
        %v2932 = vmul.f32 %v2918, 1.442695
        %v2933 = vpow.pop %v2932
        %v2934 = vmul.f32 %v2919, 1.442695
        %v2935 = vpow.pop %v2934
        %v2936 = vadd.f32 %v2921, 1.0
        %v2937 = vadd.f32 %v2923, 1.0
        %v2938 = vadd.f32 %v2925, 1.0
        %v2939 = vadd.f32 %v2927, 1.0
        %v2940 = vadd.f32 %v2929, 1.0
        %v2941 = vadd.f32 %v2931, 1.0
        %v2942 = vadd.f32 %v2933, 1.0
        %v2943 = vadd.f32 %v2935, 1.0
        %v2944 = vrcp.pop %v2936
        %v2945 = vmul.f32 1.0, %v2944
        %v2946 = vrcp.pop %v2937
        %v2947 = vmul.f32 1.0, %v2946
        %v2948 = vrcp.pop %v2938
        %v2949 = vmul.f32 1.0, %v2948
        %v2950 = vrcp.pop %v2939
        %v2951 = vmul.f32 1.0, %v2950
        %v2952 = vrcp.pop %v2940
        %v2953 = vmul.f32 1.0, %v2952
        %v2954 = vrcp.pop %v2941
        %v2955 = vmul.f32 1.0, %v2954
        %v2956 = vrcp.pop %v2942
        %v2957 = vmul.f32 1.0, %v2956
        %v2958 = vrcp.pop %v2943
        %v2959 = vmul.f32 1.0, %v2958
        %v2960 = vmul.f32 %v2904, %v2945
        %v2961 = vmul.f32 %v2905, %v2947
        %v2962 = vmul.f32 %v2906, %v2949
        %v2963 = vmul.f32 %v2907, %v2951
        %v2964 = vmul.f32 %v2908, %v2953
        %v2965 = vmul.f32 %v2909, %v2955
        %v2966 = vmul.f32 %v2910, %v2957
        %v2967 = vmul.f32 %v2911, %v2959
        %v2976 = vcombine.high %v2960, %v2960
        %v2978 = vunpack.c.l.s4 1983009808
        %v2979 = vunpack.c.0.s8 %v2978
        %v2980 = vlaneseq
        %v2981 = vshrl.u32 %v2980, 7
        %v2982 = vsub.s32 %v2979, %v2981
        %v2983 = vrot.slane %v2960, %v2982
        %v2985 = vunpack.c.l.s4 1983009808
        %v2986 = vunpack.c.0.s8 %v2985
        %v2987 = vlaneseq
        %v2988 = vshrl.u32 %v2987, 7
        %v2989 = vsub.s32 %v2986, %v2988
        %v2990 = vrot.slane %v2976, %v2989
        %v2991 = vcombine.high %v2983, %v2983
        %v2992 = vcombine.high %v2990, %v2990
        %v2993 = vcombine.high %v2961, %v2961
        %v2995 = vunpack.c.l.s4 1983009808
        %v2996 = vunpack.c.0.s8 %v2995
        %v2997 = vlaneseq
        %v2998 = vshrl.u32 %v2997, 7
        %v2999 = vsub.s32 %v2996, %v2998
        %v3000 = vrot.slane %v2961, %v2999
        %v3002 = vunpack.c.l.s4 1983009808
        %v3003 = vunpack.c.0.s8 %v3002
        %v3004 = vlaneseq
        %v3005 = vshrl.u32 %v3004, 7
        %v3006 = vsub.s32 %v3003, %v3005
        %v3007 = vrot.slane %v2993, %v3006
        %v3008 = vcombine.high %v3000, %v3000
        %v3009 = vcombine.high %v3007, %v3007
        %v3010 = vcombine.high %v2962, %v2962
        %v3012 = vunpack.c.l.s4 1983009808
        %v3013 = vunpack.c.0.s8 %v3012
        %v3014 = vlaneseq
        %v3015 = vshrl.u32 %v3014, 7
        %v3016 = vsub.s32 %v3013, %v3015
        %v3017 = vrot.slane %v2962, %v3016
        %v3019 = vunpack.c.l.s4 1983009808
        %v3020 = vunpack.c.0.s8 %v3019
        %v3021 = vlaneseq
        %v3022 = vshrl.u32 %v3021, 7
        %v3023 = vsub.s32 %v3020, %v3022
        %v3024 = vrot.slane %v3010, %v3023
        %v3025 = vcombine.high %v3017, %v3017
        %v3026 = vcombine.high %v3024, %v3024
        %v3027 = vcombine.high %v2963, %v2963
        %v3029 = vunpack.c.l.s4 1983009808
        %v3030 = vunpack.c.0.s8 %v3029
        %v3031 = vlaneseq
        %v3032 = vshrl.u32 %v3031, 7
        %v3033 = vsub.s32 %v3030, %v3032
        %v3034 = vrot.slane %v2963, %v3033
        %v3036 = vunpack.c.l.s4 1983009808
        %v3037 = vunpack.c.0.s8 %v3036
        %v3038 = vlaneseq
        %v3039 = vshrl.u32 %v3038, 7
        %v3040 = vsub.s32 %v3037, %v3039
        %v3041 = vrot.slane %v3027, %v3040
        %v3042 = vcombine.high %v3034, %v3034
        %v3043 = vcombine.high %v3041, %v3041
        %v3044 = vcombine.high %v2964, %v2964
        %v3046 = vunpack.c.l.s4 1983009808
        %v3047 = vunpack.c.0.s8 %v3046
        %v3048 = vlaneseq
        %v3049 = vshrl.u32 %v3048, 7
        %v3050 = vsub.s32 %v3047, %v3049
        %v3051 = vrot.slane %v2964, %v3050
        %v3053 = vunpack.c.l.s4 1983009808
        %v3054 = vunpack.c.0.s8 %v3053
        %v3055 = vlaneseq
        %v3056 = vshrl.u32 %v3055, 7
        %v3057 = vsub.s32 %v3054, %v3056
        %v3058 = vrot.slane %v3044, %v3057
        %v3059 = vcombine.high %v3051, %v3051
        %v3060 = vcombine.high %v3058, %v3058
        %v3061 = vcombine.high %v2965, %v2965
        %v3063 = vunpack.c.l.s4 1983009808
        %v3064 = vunpack.c.0.s8 %v3063
        %v3065 = vlaneseq
        %v3066 = vshrl.u32 %v3065, 7
        %v3067 = vsub.s32 %v3064, %v3066
        %v3068 = vrot.slane %v2965, %v3067
        %v3070 = vunpack.c.l.s4 1983009808
        %v3071 = vunpack.c.0.s8 %v3070
        %v3072 = vlaneseq
        %v3073 = vshrl.u32 %v3072, 7
        %v3074 = vsub.s32 %v3071, %v3073
        %v3075 = vrot.slane %v3061, %v3074
        %v3076 = vcombine.high %v3068, %v3068
        %v3077 = vcombine.high %v3075, %v3075
        %v3078 = vcombine.high %v2966, %v2966
        %v3080 = vunpack.c.l.s4 1983009808
        %v3081 = vunpack.c.0.s8 %v3080
        %v3082 = vlaneseq
        %v3083 = vshrl.u32 %v3082, 7
        %v3084 = vsub.s32 %v3081, %v3083
        %v3085 = vrot.slane %v2966, %v3084
        %v3087 = vunpack.c.l.s4 1983009808
        %v3088 = vunpack.c.0.s8 %v3087
        %v3089 = vlaneseq
        %v3090 = vshrl.u32 %v3089, 7
        %v3091 = vsub.s32 %v3088, %v3090
        %v3092 = vrot.slane %v3078, %v3091
        %v3093 = vcombine.high %v3085, %v3085
        %v3094 = vcombine.high %v3092, %v3092
        %v3095 = vcombine.high %v2967, %v2967
        %v3097 = vunpack.c.l.s4 1983009808
        %v3098 = vunpack.c.0.s8 %v3097
        %v3099 = vlaneseq
        %v3100 = vshrl.u32 %v3099, 7
        %v3101 = vsub.s32 %v3098, %v3100
        %v3102 = vrot.slane %v2967, %v3101
        %v3104 = vunpack.c.l.s4 1983009808
        %v3105 = vunpack.c.0.s8 %v3104
        %v3106 = vlaneseq
        %v3107 = vshrl.u32 %v3106, 7
        %v3108 = vsub.s32 %v3105, %v3107
        %v3109 = vrot.slane %v3095, %v3108
        %v3110 = vcombine.high %v3102, %v3102
        %v3111 = vcombine.high %v3109, %v3109
        %vm3144 = vcmask 1041408
        %v3145 = vsel %vm3144, %v2983, -inf
        %v3146 = vrot.slane %v3145, 4
        %v3147 = vmax.f32 %v3145, %v3146
        %v3148 = vrot.slane %v3147, 2
        %v3149 = vmax.f32 %v3147, %v3148
        %v3150 = vrot.slane %v3149, 1
        %v3151 = vmax.f32 %v3149, %v3150
        %v3152 = vsel %vm3144, %v2991, -inf
        %v3153 = vrot.slane %v3152, 4
        %v3154 = vmax.f32 %v3152, %v3153
        %v3155 = vrot.slane %v3154, 2
        %v3156 = vmax.f32 %v3154, %v3155
        %v3157 = vrot.slane %v3156, 1
        %v3158 = vmax.f32 %v3156, %v3157
        %v3159 = vsel %vm3144, %v2990, -inf
        %v3160 = vrot.slane %v3159, 4
        %v3161 = vmax.f32 %v3159, %v3160
        %v3162 = vrot.slane %v3161, 2
        %v3163 = vmax.f32 %v3161, %v3162
        %v3164 = vrot.slane %v3163, 1
        %v3165 = vmax.f32 %v3163, %v3164
        %v3166 = vsel %vm3144, %v2992, -inf
        %v3167 = vrot.slane %v3166, 4
        %v3168 = vmax.f32 %v3166, %v3167
        %v3169 = vrot.slane %v3168, 2
        %v3170 = vmax.f32 %v3168, %v3169
        %v3171 = vrot.slane %v3170, 1
        %v3172 = vmax.f32 %v3170, %v3171
        %v3173 = vsel %vm3144, %v3000, -inf
        %v3174 = vrot.slane %v3173, 4
        %v3175 = vmax.f32 %v3173, %v3174
        %v3176 = vrot.slane %v3175, 2
        %v3177 = vmax.f32 %v3175, %v3176
        %v3178 = vrot.slane %v3177, 1
        %v3179 = vmax.f32 %v3177, %v3178
        %v3180 = vsel %vm3144, %v3008, -inf
        %v3181 = vrot.slane %v3180, 4
        %v3182 = vmax.f32 %v3180, %v3181
        %v3183 = vrot.slane %v3182, 2
        %v3184 = vmax.f32 %v3182, %v3183
        %v3185 = vrot.slane %v3184, 1
        %v3186 = vmax.f32 %v3184, %v3185
        %v3187 = vsel %vm3144, %v3007, -inf
        %v3188 = vrot.slane %v3187, 4
        %v3189 = vmax.f32 %v3187, %v3188
        %v3190 = vrot.slane %v3189, 2
        %v3191 = vmax.f32 %v3189, %v3190
        %v3192 = vrot.slane %v3191, 1
        %v3193 = vmax.f32 %v3191, %v3192
        %v3194 = vsel %vm3144, %v3009, -inf
        %v3195 = vrot.slane %v3194, 4
        %v3196 = vmax.f32 %v3194, %v3195
        %v3197 = vrot.slane %v3196, 2
        %v3198 = vmax.f32 %v3196, %v3197
        %v3199 = vrot.slane %v3198, 1
        %v3200 = vmax.f32 %v3198, %v3199
        %v3201 = vsel %vm3144, %v3017, -inf
        %v3202 = vrot.slane %v3201, 4
        %v3203 = vmax.f32 %v3201, %v3202
        %v3204 = vrot.slane %v3203, 2
        %v3205 = vmax.f32 %v3203, %v3204
        %v3206 = vrot.slane %v3205, 1
        %v3207 = vmax.f32 %v3205, %v3206
        %v3208 = vsel %vm3144, %v3025, -inf
        %v3209 = vrot.slane %v3208, 4
        %v3210 = vmax.f32 %v3208, %v3209
        %v3211 = vrot.slane %v3210, 2
        %v3212 = vmax.f32 %v3210, %v3211
        %v3213 = vrot.slane %v3212, 1
        %v3214 = vmax.f32 %v3212, %v3213
        %v3215 = vsel %vm3144, %v3024, -inf
        %v3216 = vrot.slane %v3215, 4
        %v3217 = vmax.f32 %v3215, %v3216
        %v3218 = vrot.slane %v3217, 2
        %v3219 = vmax.f32 %v3217, %v3218
        %v3220 = vrot.slane %v3219, 1
        %v3221 = vmax.f32 %v3219, %v3220
        %v3222 = vsel %vm3144, %v3026, -inf
        %v3223 = vrot.slane %v3222, 4
        %v3224 = vmax.f32 %v3222, %v3223
        %v3225 = vrot.slane %v3224, 2
        %v3226 = vmax.f32 %v3224, %v3225
        %v3227 = vrot.slane %v3226, 1
        %v3228 = vmax.f32 %v3226, %v3227
        %v3229 = vsel %vm3144, %v3034, -inf
        %v3230 = vrot.slane %v3229, 4
        %v3231 = vmax.f32 %v3229, %v3230
        %v3232 = vrot.slane %v3231, 2
        %v3233 = vmax.f32 %v3231, %v3232
        %v3234 = vrot.slane %v3233, 1
        %v3235 = vmax.f32 %v3233, %v3234
        %v3236 = vsel %vm3144, %v3042, -inf
        %v3237 = vrot.slane %v3236, 4
        %v3238 = vmax.f32 %v3236, %v3237
        %v3239 = vrot.slane %v3238, 2
        %v3240 = vmax.f32 %v3238, %v3239
        %v3241 = vrot.slane %v3240, 1
        %v3242 = vmax.f32 %v3240, %v3241
        %v3243 = vsel %vm3144, %v3041, -inf
        %v3244 = vrot.slane %v3243, 4
        %v3245 = vmax.f32 %v3243, %v3244
        %v3246 = vrot.slane %v3245, 2
        %v3247 = vmax.f32 %v3245, %v3246
        %v3248 = vrot.slane %v3247, 1
        %v3249 = vmax.f32 %v3247, %v3248
        %v3250 = vsel %vm3144, %v3043, -inf
        %v3251 = vrot.slane %v3250, 4
        %v3252 = vmax.f32 %v3250, %v3251
        %v3253 = vrot.slane %v3252, 2
        %v3254 = vmax.f32 %v3252, %v3253
        %v3255 = vrot.slane %v3254, 1
        %v3256 = vmax.f32 %v3254, %v3255
        %v3257 = vsel %vm3144, %v3051, -inf
        %v3258 = vrot.slane %v3257, 4
        %v3259 = vmax.f32 %v3257, %v3258
        %v3260 = vrot.slane %v3259, 2
        %v3261 = vmax.f32 %v3259, %v3260
        %v3262 = vrot.slane %v3261, 1
        %v3263 = vmax.f32 %v3261, %v3262
        %v3264 = vsel %vm3144, %v3059, -inf
        %v3265 = vrot.slane %v3264, 4
        %v3266 = vmax.f32 %v3264, %v3265
        %v3267 = vrot.slane %v3266, 2
        %v3268 = vmax.f32 %v3266, %v3267
        %v3269 = vrot.slane %v3268, 1
        %v3270 = vmax.f32 %v3268, %v3269
        %v3271 = vsel %vm3144, %v3058, -inf
        %v3272 = vrot.slane %v3271, 4
        %v3273 = vmax.f32 %v3271, %v3272
        %v3274 = vrot.slane %v3273, 2
        %v3275 = vmax.f32 %v3273, %v3274
        %v3276 = vrot.slane %v3275, 1
        %v3277 = vmax.f32 %v3275, %v3276
        %v3278 = vsel %vm3144, %v3060, -inf
        %v3279 = vrot.slane %v3278, 4
        %v3280 = vmax.f32 %v3278, %v3279
        %v3281 = vrot.slane %v3280, 2
        %v3282 = vmax.f32 %v3280, %v3281
        %v3283 = vrot.slane %v3282, 1
        %v3284 = vmax.f32 %v3282, %v3283
        %v3285 = vsel %vm3144, %v3068, -inf
        %v3286 = vrot.slane %v3285, 4
        %v3287 = vmax.f32 %v3285, %v3286
        %v3288 = vrot.slane %v3287, 2
        %v3289 = vmax.f32 %v3287, %v3288
        %v3290 = vrot.slane %v3289, 1
        %v3291 = vmax.f32 %v3289, %v3290
        %v3292 = vsel %vm3144, %v3076, -inf
        %v3293 = vrot.slane %v3292, 4
        %v3294 = vmax.f32 %v3292, %v3293
        %v3295 = vrot.slane %v3294, 2
        %v3296 = vmax.f32 %v3294, %v3295
        %v3297 = vrot.slane %v3296, 1
        %v3298 = vmax.f32 %v3296, %v3297
        %v3299 = vsel %vm3144, %v3075, -inf
        %v3300 = vrot.slane %v3299, 4
        %v3301 = vmax.f32 %v3299, %v3300
        %v3302 = vrot.slane %v3301, 2
        %v3303 = vmax.f32 %v3301, %v3302
        %v3304 = vrot.slane %v3303, 1
        %v3305 = vmax.f32 %v3303, %v3304
        %v3306 = vsel %vm3144, %v3077, -inf
        %v3307 = vrot.slane %v3306, 4
        %v3308 = vmax.f32 %v3306, %v3307
        %v3309 = vrot.slane %v3308, 2
        %v3310 = vmax.f32 %v3308, %v3309
        %v3311 = vrot.slane %v3310, 1
        %v3312 = vmax.f32 %v3310, %v3311
        %v3313 = vsel %vm3144, %v3085, -inf
        %v3314 = vrot.slane %v3313, 4
        %v3315 = vmax.f32 %v3313, %v3314
        %v3316 = vrot.slane %v3315, 2
        %v3317 = vmax.f32 %v3315, %v3316
        %v3318 = vrot.slane %v3317, 1
        %v3319 = vmax.f32 %v3317, %v3318
        %v3320 = vsel %vm3144, %v3093, -inf
        %v3321 = vrot.slane %v3320, 4
        %v3322 = vmax.f32 %v3320, %v3321
        %v3323 = vrot.slane %v3322, 2
        %v3324 = vmax.f32 %v3322, %v3323
        %v3325 = vrot.slane %v3324, 1
        %v3326 = vmax.f32 %v3324, %v3325
        %v3327 = vsel %vm3144, %v3092, -inf
        %v3328 = vrot.slane %v3327, 4
        %v3329 = vmax.f32 %v3327, %v3328
        %v3330 = vrot.slane %v3329, 2
        %v3331 = vmax.f32 %v3329, %v3330
        %v3332 = vrot.slane %v3331, 1
        %v3333 = vmax.f32 %v3331, %v3332
        %v3334 = vsel %vm3144, %v3094, -inf
        %v3335 = vrot.slane %v3334, 4
        %v3336 = vmax.f32 %v3334, %v3335
        %v3337 = vrot.slane %v3336, 2
        %v3338 = vmax.f32 %v3336, %v3337
        %v3339 = vrot.slane %v3338, 1
        %v3340 = vmax.f32 %v3338, %v3339
        %v3341 = vsel %vm3144, %v3102, -inf
        %v3342 = vrot.slane %v3341, 4
        %v3343 = vmax.f32 %v3341, %v3342
        %v3344 = vrot.slane %v3343, 2
        %v3345 = vmax.f32 %v3343, %v3344
        %v3346 = vrot.slane %v3345, 1
        %v3347 = vmax.f32 %v3345, %v3346
        %v3348 = vsel %vm3144, %v3110, -inf
        %v3349 = vrot.slane %v3348, 4
        %v3350 = vmax.f32 %v3348, %v3349
        %v3351 = vrot.slane %v3350, 2
        %v3352 = vmax.f32 %v3350, %v3351
        %v3353 = vrot.slane %v3352, 1
        %v3354 = vmax.f32 %v3352, %v3353
        %v3355 = vsel %vm3144, %v3109, -inf
        %v3356 = vrot.slane %v3355, 4
        %v3357 = vmax.f32 %v3355, %v3356
        %v3358 = vrot.slane %v3357, 2
        %v3359 = vmax.f32 %v3357, %v3358
        %v3360 = vrot.slane %v3359, 1
        %v3361 = vmax.f32 %v3359, %v3360
        %v3362 = vsel %vm3144, %v3111, -inf
        %v3363 = vrot.slane %v3362, 4
        %v3364 = vmax.f32 %v3362, %v3363
        %v3365 = vrot.slane %v3364, 2
        %v3366 = vmax.f32 %v3364, %v3365
        %v3367 = vrot.slane %v3366, 1
        %v3368 = vmax.f32 %v3366, %v3367
        %v3369 = vpack.c.bf16 %v3151, %v3151
        %v3370 = vpack.c.bf16 %v3158, %v3158
        %v3371 = vpack.c.bf16 %v3165, %v3165
        %v3372 = vpack.c.bf16 %v3172, %v3172
        %v3373 = vpack.c.bf16 %v3179, %v3179
        %v3374 = vpack.c.bf16 %v3186, %v3186
        %v3375 = vpack.c.bf16 %v3193, %v3193
        %v3376 = vpack.c.bf16 %v3200, %v3200
        %v3377 = vpack.c.bf16 %v3207, %v3207
        %v3378 = vpack.c.bf16 %v3214, %v3214
        %v3379 = vpack.c.bf16 %v3221, %v3221
        %v3380 = vpack.c.bf16 %v3228, %v3228
        %v3381 = vpack.c.bf16 %v3235, %v3235
        %v3382 = vpack.c.bf16 %v3242, %v3242
        %v3383 = vpack.c.bf16 %v3249, %v3249
        %v3384 = vpack.c.bf16 %v3256, %v3256
        %v3385 = vpack.c.bf16 %v3263, %v3263
        %v3386 = vpack.c.bf16 %v3270, %v3270
        %v3387 = vpack.c.bf16 %v3277, %v3277
        %v3388 = vpack.c.bf16 %v3284, %v3284
        %v3389 = vpack.c.bf16 %v3291, %v3291
        %v3390 = vpack.c.bf16 %v3298, %v3298
        %v3391 = vpack.c.bf16 %v3305, %v3305
        %v3392 = vpack.c.bf16 %v3312, %v3312
        %v3393 = vpack.c.bf16 %v3319, %v3319
        %v3394 = vpack.c.bf16 %v3326, %v3326
        %v3395 = vpack.c.bf16 %v3333, %v3333
        %v3396 = vpack.c.bf16 %v3340, %v3340
        %v3397 = vpack.c.bf16 %v3347, %v3347
        %v3398 = vpack.c.bf16 %v3354, %v3354
        %v3399 = vpack.c.bf16 %v3361, %v3361
        %v3400 = vpack.c.bf16 %v3368, %v3368
        %v3433 = vunpack.c.l.b16 %v3369
        %v3434 = vunpack.c.l.b16 %v3370
        %v3435 = vunpack.c.l.b16 %v3371
        %v3436 = vunpack.c.l.b16 %v3372
        %v3437 = vunpack.c.l.b16 %v3373
        %v3438 = vunpack.c.l.b16 %v3374
        %v3439 = vunpack.c.l.b16 %v3375
        %v3440 = vunpack.c.l.b16 %v3376
        %v3441 = vunpack.c.l.b16 %v3377
        %v3442 = vunpack.c.l.b16 %v3378
        %v3443 = vunpack.c.l.b16 %v3379
        %v3444 = vunpack.c.l.b16 %v3380
        %v3445 = vunpack.c.l.b16 %v3381
        %v3446 = vunpack.c.l.b16 %v3382
        %v3447 = vunpack.c.l.b16 %v3383
        %v3448 = vunpack.c.l.b16 %v3384
        %v3449 = vunpack.c.l.b16 %v3385
        %v3450 = vunpack.c.l.b16 %v3386
        %v3451 = vunpack.c.l.b16 %v3387
        %v3452 = vunpack.c.l.b16 %v3388
        %v3453 = vunpack.c.l.b16 %v3389
        %v3454 = vunpack.c.l.b16 %v3390
        %v3455 = vunpack.c.l.b16 %v3391
        %v3456 = vunpack.c.l.b16 %v3392
        %v3457 = vunpack.c.l.b16 %v3393
        %v3458 = vunpack.c.l.b16 %v3394
        %v3459 = vunpack.c.l.b16 %v3395
        %v3460 = vunpack.c.l.b16 %v3396
        %v3461 = vunpack.c.l.b16 %v3397
        %v3462 = vunpack.c.l.b16 %v3398
        %v3463 = vunpack.c.l.b16 %v3399
        %v3464 = vunpack.c.l.b16 %v3400
        %v3465 = vpack.c.b16 %v3433, %v3433
        %v3466 = vpack.c.b16 %v3434, %v3434
        %v3467 = vpack.c.b16 %v3435, %v3435
        %v3468 = vpack.c.b16 %v3436, %v3436
        %v3469 = vpack.c.b16 %v3437, %v3437
        %v3470 = vpack.c.b16 %v3438, %v3438
        %v3471 = vpack.c.b16 %v3439, %v3439
        %v3472 = vpack.c.b16 %v3440, %v3440
        %v3473 = vpack.c.b16 %v3441, %v3441
        %v3474 = vpack.c.b16 %v3442, %v3442
        %v3475 = vpack.c.b16 %v3443, %v3443
        %v3476 = vpack.c.b16 %v3444, %v3444
        %v3477 = vpack.c.b16 %v3445, %v3445
        %v3478 = vpack.c.b16 %v3446, %v3446
        %v3479 = vpack.c.b16 %v3447, %v3447
        %v3480 = vpack.c.b16 %v3448, %v3448
        %v3481 = vpack.c.b16 %v3449, %v3449
        %v3482 = vpack.c.b16 %v3450, %v3450
        %v3483 = vpack.c.b16 %v3451, %v3451
        %v3484 = vpack.c.b16 %v3452, %v3452
        %v3485 = vpack.c.b16 %v3453, %v3453
        %v3486 = vpack.c.b16 %v3454, %v3454
        %v3487 = vpack.c.b16 %v3455, %v3455
        %v3488 = vpack.c.b16 %v3456, %v3456
        %v3489 = vpack.c.b16 %v3457, %v3457
        %v3490 = vpack.c.b16 %v3458, %v3458
        %v3491 = vpack.c.b16 %v3459, %v3459
        %v3492 = vpack.c.b16 %v3460, %v3460
        %v3493 = vpack.c.b16 %v3461, %v3461
        %v3494 = vpack.c.b16 %v3462, %v3462
        %v3495 = vpack.c.b16 %v3463, %v3463
        %v3496 = vpack.c.b16 %v3464, %v3464
        %v3497 = vunpack.c.l.b16 %v3465
        %v3498 = vunpack.c.l.b16 %v3466
        %v3499 = vunpack.c.l.b16 %v3467
        %v3500 = vunpack.c.l.b16 %v3468
        %v3501 = vunpack.c.l.b16 %v3469
        %v3502 = vunpack.c.l.b16 %v3470
        %v3503 = vunpack.c.l.b16 %v3471
        %v3504 = vunpack.c.l.b16 %v3472
        %v3505 = vunpack.c.l.b16 %v3473
        %v3506 = vunpack.c.l.b16 %v3474
        %v3507 = vunpack.c.l.b16 %v3475
        %v3508 = vunpack.c.l.b16 %v3476
        %v3509 = vunpack.c.l.b16 %v3477
        %v3510 = vunpack.c.l.b16 %v3478
        %v3511 = vunpack.c.l.b16 %v3479
        %v3512 = vunpack.c.l.b16 %v3480
        %v3513 = vunpack.c.l.b16 %v3481
        %v3514 = vunpack.c.l.b16 %v3482
        %v3515 = vunpack.c.l.b16 %v3483
        %v3516 = vunpack.c.l.b16 %v3484
        %v3517 = vunpack.c.l.b16 %v3485
        %v3518 = vunpack.c.l.b16 %v3486
        %v3519 = vunpack.c.l.b16 %v3487
        %v3520 = vunpack.c.l.b16 %v3488
        %v3521 = vunpack.c.l.b16 %v3489
        %v3522 = vunpack.c.l.b16 %v3490
        %v3523 = vunpack.c.l.b16 %v3491
        %v3524 = vunpack.c.l.b16 %v3492
        %v3525 = vunpack.c.l.b16 %v3493
        %v3526 = vunpack.c.l.b16 %v3494
        %v3527 = vunpack.c.l.b16 %v3495
        %v3528 = vunpack.c.l.b16 %v3496
        %vm3529 = vcmask 1041409
        %v3530 = vsel %vm3529, %v3498, %v3497
        %vm3531 = vcmask 1042434
        %v3532 = vsel %vm3531, %v3499, %v3530
        %vm3533 = vcmask 1043459
        %v3534 = vsel %vm3533, %v3500, %v3532
        %vm3535 = vcmask 1044484
        %v3536 = vsel %vm3535, %v3501, %v3534
        %vm3537 = vcmask 1045509
        %v3538 = vsel %vm3537, %v3502, %v3536
        %vm3539 = vcmask 1046534
        %v3540 = vsel %vm3539, %v3503, %v3538
        %vm3541 = vcmask 1047559
        %v3542 = vsel %vm3541, %v3504, %v3540
        %v3543 = vsel %vm3529, %v3506, %v3505
        %v3544 = vsel %vm3531, %v3507, %v3543
        %v3545 = vsel %vm3533, %v3508, %v3544
        %v3546 = vsel %vm3535, %v3509, %v3545
        %v3547 = vsel %vm3537, %v3510, %v3546
        %v3548 = vsel %vm3539, %v3511, %v3547
        %v3549 = vsel %vm3541, %v3512, %v3548
        %v3550 = vsel %vm3529, %v3514, %v3513
        %v3551 = vsel %vm3531, %v3515, %v3550
        %v3552 = vsel %vm3533, %v3516, %v3551
        %v3553 = vsel %vm3535, %v3517, %v3552
        %v3554 = vsel %vm3537, %v3518, %v3553
        %v3555 = vsel %vm3539, %v3519, %v3554
        %v3556 = vsel %vm3541, %v3520, %v3555
        %v3557 = vsel %vm3529, %v3522, %v3521
        %v3558 = vsel %vm3531, %v3523, %v3557
        %v3559 = vsel %vm3533, %v3524, %v3558
        %v3560 = vsel %vm3535, %v3525, %v3559
        %v3561 = vsel %vm3537, %v3526, %v3560
        %v3562 = vsel %vm3539, %v3527, %v3561
        %v3563 = vsel %vm3541, %v3528, %v3562
        %v3564 = vpack.c.b16 %v3542, %v3542
        %v3565 = vpack.c.b16 %v3549, %v3549
        %v3566 = vpack.c.b16 %v3556, %v3556
        %v3567 = vpack.c.b16 %v3563, %v3563
        %3572 = vst [vmem:[%s313] sm:$0xf] %v3564
        %3573 = vst [vmem:[%s313 + $0x4] sm:$0xf] %v3565
        %3574 = vst [vmem:[%s313 + $0x8] sm:$0xf] %v3566
        %3575 = vst [vmem:[%s313 + $0xc] sm:$0xf] %v3567
        %s3576 = sand.u32 %s164, 1
        %s3577 = scalar_lea.sflag [#allocation4], %s3576
        %s3578 = sand.u32 %s164, 1
        %s3579 = smul.addr %s3578, 16
        %s3580 = scalar_lea.vmem [#allocation10], %s3579
        // Predicated region
        $region61: #{tpu_custom_call.1} parent=43 // pred_check
          %p3581 = pneg %p174
        $region62: #{tpu_custom_call.1} parent=43 // pred_check_branch
          %3583 = sbr.rel (%p3581) target = $region64
        $region63: #{tpu_custom_call.1} parent=43 // pred_region
          %s3585 = ssub.s32 256, 256
          %3586 = vsyncadd %s3577, %s3585
          %s3587 = smul.addr %s25, 4
          %s3588 = smul.addr %s3587, 64
          %s3589 = scalar_lea.hbm %s6, %s3588
          %s3590 = sshll.u32 %s3580, 4
          %s3591 = int_to_ptr.vmem [resolvable:$true] %s3590
          %3596 = dma.vmem_to_hbm [thread:$0]  %s3591, 256, %s3589, %s3577, 64, 64, 4
        $region64: #{tpu_custom_call.1} parent=43 // pred_fallthru
          _
      $region44: #{tpu_custom_call.1} parent=5 // pred_fallthru
        _
      %p3597 = scmp.le.s32.totalorder 2, %s20
      // Predicated region
      $region65: #{tpu_custom_call.1} parent=5 // pred_check
        %p3598 = pneg %p3597
      $region66: #{tpu_custom_call.1} parent=5 // pred_check_branch
        %3600 = sbr.rel (%p3598) target = $region68
      $region67: #{tpu_custom_call.1} parent=5 // pred_region
        %s3601 = ssub.s32 %s20, 2
        // Predicated region
        $region69: #{tpu_custom_call.1} parent=67 // pred_check
          %p3602 = pneg %p180
        $region70: #{tpu_custom_call.1} parent=67 // pred_check_branch
          %3604 = sbr.rel (%p3602) target = $region72
        $region71: #{tpu_custom_call.1} parent=67 // pred_region
          %s3605 = sand.u32 %s165, 1
          %s3606 = scalar_lea.sflag [#allocation4], %s3605
          %s3607 = sand.u32 %s165, 1
          %s3608 = smul.addr %s3607, 16
          %s3609 = scalar_lea.vmem [#allocation10], %s3608
          %3610 = dma.done %s3606, 256
        $region72: #{tpu_custom_call.1} parent=67 // pred_fallthru
          _
      $region68: #{tpu_custom_call.1} parent=5 // pred_fallthru
        _
    $region6: #{tpu_custom_call.1} parent=1 // loop_footer
      %s24 = sadd.s32 1, %s20
    $region7: #{tpu_custom_call.1} parent=1 // loop_footer_branch
      %19 = sbr.rel target = $region3
    $region8: #{tpu_custom_call.1} parent=1 // loop_exit
      _
    %3611 = vsyncpa [#allocation3], 1
    %s3612 = scalar_lea.sflag [#allocation3], 1
    %3613 = vsyncpa %s3612, 1
    %3614 = vsyncpa [#allocation6], 1
    %3615 = vsyncpa [#allocation9], 1
    %3616 = vsyncpa [#allocation4], 1
    %s3617 = scalar_lea.sflag [#allocation4], 1
    %3618 = vsyncpa %s3617, 1

</llo_original>
